<compile_context>
chip_gen: v7x
topology: tpu7x:2x2x1
jax: 0.10.0
libtpu: 0.0.40
codegen_flags: <defaults>
</compile_context>

<pallas_src>
import numpy as np
import jax
import jax.numpy as jnp
from jax.experimental import pallas as pl
from jax.experimental.pallas import tpu as pltpu

_EPS = 1e-5


# ------------------------------ fused kernel ------------------------------

def _encoder_kernel(p1_ref, w1_ref, gb1_ref,
                    s2_ref, w2_ref, gb2_ref,
                    s3_ref, w3_ref, gb3_ref,
                    s4_ref, w4_ref, b4_ref,
                    o_ref):
    """Whole encoder.  Activations are (C, M=B*H*W) f32 with M on lanes."""

    def bn_relu(y, gb_ref):
        # y: (C, M).  gb_ref: (2, C, 1) = [gamma, beta].  Training-mode BN:
        # per-channel batch mean / biased variance, single reduction pass.
        inv_m = 1.0 / y.shape[1]
        mean = jnp.sum(y, axis=1, keepdims=True) * inv_m
        ex2 = jnp.sum(y * y, axis=1, keepdims=True) * inv_m
        var = ex2 - mean * mean
        scale = gb_ref[0] * jax.lax.rsqrt(var + _EPS)      # gamma / std (EUP)
        shift = gb_ref[1] - mean * scale
        return jnp.maximum(y * scale + shift, 0.0)

    def conv2x2(a, s_ref, w_ref):
        # a: (Cin, Min).  s_ref: (4, Min, Mout) one-hot stride-2 patch gather.
        # w_ref: (4, Cout, Cin) with j = dy*2 + dx.  Returns (Cout, Mout).
        acc = None
        for j in range(4):
            slab = jnp.dot(a, s_ref[j], preferred_element_type=jnp.float32)
            contrib = jnp.dot(w_ref[j], slab, preferred_element_type=jnp.float32)
            acc = contrib if acc is None else acc + contrib
        return acc

    # layer 1: patches were pre-extracted once at the model boundary
    a = jnp.dot(w1_ref[...], p1_ref[...], preferred_element_type=jnp.float32)
    a = bn_relu(a, gb1_ref)                                  # (ngf,  B*14*14)
    a = bn_relu(conv2x2(a, s2_ref, w2_ref), gb2_ref)         # (2ngf, B*7*7)
    a = bn_relu(conv2x2(a, s3_ref, w3_ref), gb3_ref)         # (4ngf, B*3*3)
    o_ref[...] = conv2x2(a, s4_ref, w4_ref) + b4_ref[...]    # (h_dim, B*1*1)


# ------------------------------ glue (JAX) --------------------------------

def _patch_gather_mats(batch, hi, wi):
    """One-hot S[j]: (B*hi*wi, B*ho*wo).  Column m_out picks the input row
    (b, 2*ho+dy, 2*wo+dx) for j = dy*2+dx (kernel_size=2, stride=2; odd
    trailing row/col dropped, exactly like the conv)."""
    ho, wo = hi // 2, wi // 2
    m_in, m_out = batch * hi * wi, batch * ho * wo
    s = np.zeros((4, m_in, m_out), np.float32)
    b = np.arange(batch)[:, None, None]
    oy = np.arange(ho)[None, :, None]
    ox = np.arange(wo)[None, None, :]
    cols = ((b * ho + oy) * wo + ox).reshape(-1)
    for j in range(4):
        dy, dx = divmod(j, 2)
        rows = ((b * hi + 2 * oy + dy) * wi + 2 * ox + dx).reshape(-1)
        s[j, rows, cols] = 1.0
    return s, ho, wo


def _conv_w(w):
    """(Cout, Cin, 2, 2) torch layout -> (4, Cout, Cin), j = dy*2+dx."""
    co, ci = w.shape[0], w.shape[1]
    return jnp.transpose(w, (2, 3, 0, 1)).reshape(4, co, ci)


def _gamma_beta(g, b):
    """-> (2, C, 1): row 0 gamma, row 1 beta (packed, broadcastable over M)."""
    return jnp.stack([g, b], axis=0)[:, :, None]


def conv_encoder2(x, params):
    batch, cin, h, w = x.shape
    ngf = params["w1"].shape[0]
    h_dim = params["w4"].shape[0]

    # one-time boundary transform: layer-1 im2col, channel-major (Cin*4, M1).
    # K order is (ci, dy, dx) to match params["w1"].reshape(ngf, cin*4).
    h1, w1 = h // 2, w // 2
    xp = x[:, :, : 2 * h1, : 2 * w1].reshape(batch, cin, h1, 2, w1, 2)
    p1 = xp.transpose(1, 3, 5, 0, 2, 4).reshape(cin * 4, batch * h1 * w1)
    w1m = params["w1"].reshape(ngf, cin * 4)

    # shape-only one-hot gather matrices for layers 2..4 (trace-time numpy)
    s2, h2, w2 = _patch_gather_mats(batch, h1, w1)
    s3, h3, w3 = _patch_gather_mats(batch, h2, w2)
    s4, h4, w4 = _patch_gather_mats(batch, h3, w3)
    m4 = batch * h4 * w4

    args = (
        p1, w1m, _gamma_beta(params["g1"], params["b1"]),
        jnp.asarray(s2), _conv_w(params["w2"]), _gamma_beta(params["g2"], params["b2"]),
        jnp.asarray(s3), _conv_w(params["w3"]), _gamma_beta(params["g3"], params["b3"]),
        jnp.asarray(s4), _conv_w(params["w4"]), params["bias4"][:, None],
    )

    # advisory cost estimate (matmul flops incl. the gather matmuls)
    flops = 2 * (cin * 4) * ngf * (batch * h1 * w1)
    for s, wt in ((s2, params["w2"]), (s3, params["w3"]), (s4, params["w4"])):
        _, mi, mo = s.shape
        co, ci = wt.shape[0], wt.shape[1]
        flops += 8 * (ci * mi * mo + co * ci * mo)
    bytes_accessed = 4 * (sum(int(np.prod(a.shape)) for a in args) + h_dim * m4)

    zt = pl.pallas_call(
        _encoder_kernel,
        out_shape=jax.ShapeDtypeStruct((h_dim, m4), jnp.float32),
        in_specs=[pl.BlockSpec(memory_space=pltpu.MemorySpace.VMEM)] * len(args),
        out_specs=pl.BlockSpec(memory_space=pltpu.MemorySpace.VMEM),
        cost_estimate=pl.CostEstimate(
            flops=int(flops),
            transcendentals=int(7 * ngf),          # rsqrt over ngf+2ngf+4ngf channels
            bytes_accessed=int(bytes_accessed)),
    )(*args)

    # boundary conversion back to the PyTorch flatten order: (B, h_dim*h4*w4)
    z = zt.reshape(h_dim, batch, h4 * w4).transpose(1, 0, 2).reshape(batch, -1)
    return z


# --------------------------- pure-XLA reference ---------------------------

def _reference_forward(x, params):
    def conv(z, wt, b=None):
        y = jax.lax.conv_general_dilated(
            z, wt, window_strides=(2, 2), padding="VALID",
            dimension_numbers=("NCHW", "OIHW", "NCHW"),
            precision=jax.lax.Precision.HIGHEST)
        if b is not None:
            y = y + b.reshape(1, -1, 1, 1)
        return y

    def bn_relu(y, g, b):
        mean = jnp.mean(y, axis=(0, 2, 3), keepdims=True)
        var = jnp.mean(jnp.square(y - mean), axis=(0, 2, 3), keepdims=True)
        yh = (y - mean) * jax.lax.rsqrt(var + _EPS)
        return jnp.maximum(yh * g.reshape(1, -1, 1, 1) + b.reshape(1, -1, 1, 1), 0.0)

    z = bn_relu(conv(x, params["w1"]), params["g1"], params["b1"])
    z = bn_relu(conv(z, params["w2"]), params["g2"], params["b2"])
    z = bn_relu(conv(z, params["w3"]), params["g3"], params["b3"])
    z = conv(z, params["w4"], params["bias4"])
    return z.reshape(z.shape[0], -1)


# ----------------------------- parameter init -----------------------------

def init_params(key, num_channels, ngf, h_dim):
    k1, k2, k3, k4, kb = jax.random.split(key, 5)

    def conv_w(k, cout, cin):
        fan_in = cin * 2 * 2
        bound = 1.0 / jnp.sqrt(jnp.float32(fan_in))
        return jax.random.uniform(k, (cout, cin, 2, 2), jnp.float32, -bound, bound)

    bound4 = 1.0 / jnp.sqrt(jnp.float32(4 * ngf * 4))
    return {
        "w1": conv_w(k1, ngf, num_channels),
        "g1": jnp.ones((ngf,), jnp.float32),
        "b1": jnp.zeros((ngf,), jnp.float32),
        "w2": conv_w(k2, 2 * ngf, ngf),
        "g2": jnp.ones((2 * ngf,), jnp.float32),
        "b2": jnp.zeros((2 * ngf,), jnp.float32),
        "w3": conv_w(k3, 4 * ngf, 2 * ngf),
        "g3": jnp.ones((4 * ngf,), jnp.float32),
        "b3": jnp.zeros((4 * ngf,), jnp.float32),
        "w4": conv_w(k4, h_dim, 4 * ngf),
        "bias4": jax.random.uniform(kb, (h_dim,), jnp.float32, -bound4, bound4),
    }


# ---------------------------------- main -----------------------------------

if __name__ == "__main__":
    key = jax.random.PRNGKey(0)
    k_params, k_x = jax.random.split(key)

    batch, num_channels, ngf, h_dim = 2, 1, 8, 32
    params = init_params(k_params, num_channels, ngf, h_dim)
    x = jax.random.normal(k_x, (batch, num_channels, 28, 28), jnp.float32)

    fwd = jax.jit(conv_encoder2)
    z = jax.block_until_ready(fwd(x, params))

    assert z.shape == (batch, h_dim), z.shape
    assert z.dtype == jnp.float32
    assert bool(jnp.all(jnp.isfinite(z)))

    z_ref = _reference_forward(x, params)
    max_err = float(jnp.max(jnp.abs(z - z_ref)))
    assert bool(jnp.allclose(z, z_ref, rtol=2e-2, atol=2e-2)), max_err

    print("KERNEL_OK")
</pallas_src>

<mosaic_0001>
module attributes {stable_mosaic.version = 11 : i64} {
  func.func @_encoder_kernel(%arg0: memref<4x392xf32, #tpu.memory_space<vmem>>, %arg1: memref<8x4xf32, #tpu.memory_space<vmem>>, %arg2: memref<2x8x1xf32, #tpu.memory_space<vmem>>, %arg3: memref<4x392x98xf32, #tpu.memory_space<vmem>>, %arg4: memref<4x16x8xf32, #tpu.memory_space<vmem>>, %arg5: memref<2x16x1xf32, #tpu.memory_space<vmem>>, %arg6: memref<4x98x18xf32, #tpu.memory_space<vmem>>, %arg7: memref<4x32x16xf32, #tpu.memory_space<vmem>>, %arg8: memref<2x32x1xf32, #tpu.memory_space<vmem>>, %arg9: memref<4x18x2xf32, #tpu.memory_space<vmem>>, %arg10: memref<4x32x32xf32, #tpu.memory_space<vmem>>, %arg11: memref<32x1xf32, #tpu.memory_space<vmem>>, %arg12: memref<32x2xf32, #tpu.memory_space<vmem>>) attributes {dimension_semantics = [], scalar_prefetch = 0 : i64, scratch_operands = 0 : i64, tpu.core_type = #tpu.core_type<tc>} {
    %c0 = arith.constant 0 : index
    %c0_0 = arith.constant 0 : index
    %0 = vector.load %arg1[%c0, %c0_0] : memref<8x4xf32, #tpu.memory_space<vmem>>, vector<8x4xf32>
    %c0_1 = arith.constant 0 : index
    %c0_2 = arith.constant 0 : index
    %1 = vector.load %arg0[%c0_1, %c0_2] : memref<4x392xf32, #tpu.memory_space<vmem>>, vector<4x392xf32>
    %cst = arith.constant dense<0.000000e+00> : vector<8x392xf32>
    %2 = tpu.matmul %0, %1, %cst {dimension_numbers = #tpu.dot_dimension_numbers<[1], [0], [0], [1], [0, 0, 1, 1], [], []>} : vector<8x4xf32>, vector<4x392xf32>, vector<8x392xf32> -> vector<8x392xf32>
    %cst_3 = arith.constant dense<0.000000e+00> : vector<8xf32>
    %3 = vector.multi_reduction <add>, %2, %cst_3 [1] : vector<8x392xf32> to vector<8xf32>
    %4 = vector.shape_cast %3 : vector<8xf32> to vector<8x1xf32>
    %cst_4 = arith.constant 0.00255102036 : f32
    %5 = vector.broadcast %cst_4 : f32 to vector<8x1xf32>
    %6 = arith.mulf %4, %5 : vector<8x1xf32>
    %7 = arith.mulf %2, %2 : vector<8x392xf32>
    %cst_5 = arith.constant dense<0.000000e+00> : vector<8xf32>
    %8 = vector.multi_reduction <add>, %7, %cst_5 [1] : vector<8x392xf32> to vector<8xf32>
    %9 = vector.shape_cast %8 : vector<8xf32> to vector<8x1xf32>
    %cst_6 = arith.constant 0.00255102036 : f32
    %10 = vector.broadcast %cst_6 : f32 to vector<8x1xf32>
    %11 = arith.mulf %9, %10 : vector<8x1xf32>
    %12 = arith.mulf %6, %6 : vector<8x1xf32>
    %13 = arith.subf %11, %12 : vector<8x1xf32>
    %c0_7 = arith.constant 0 : index
    %c0_8 = arith.constant 0 : index
    %c0_9 = arith.constant 0 : index
    %14 = vector.load %arg2[%c0_7, %c0_8, %c0_9] : memref<2x8x1xf32, #tpu.memory_space<vmem>>, vector<1x8x1xf32>
    %15 = vector.shape_cast %14 : vector<1x8x1xf32> to vector<8x1xf32>
    %cst_10 = arith.constant 9.99999974E-6 : f32
    %16 = vector.broadcast %cst_10 : f32 to vector<8x1xf32>
    %17 = arith.addf %13, %16 : vector<8x1xf32>
    %18 = math.rsqrt %17 : vector<8x1xf32>
    %19 = arith.mulf %15, %18 : vector<8x1xf32>
    %c1 = arith.constant 1 : index
    %c0_11 = arith.constant 0 : index
    %c0_12 = arith.constant 0 : index
    %20 = vector.load %arg2[%c1, %c0_11, %c0_12] : memref<2x8x1xf32, #tpu.memory_space<vmem>>, vector<1x8x1xf32>
    %21 = vector.shape_cast %20 : vector<1x8x1xf32> to vector<8x1xf32>
    %22 = arith.mulf %6, %19 : vector<8x1xf32>
    %23 = arith.subf %21, %22 : vector<8x1xf32>
    %24 = vector.broadcast %19 : vector<8x1xf32> to vector<8x392xf32>
    %25 = arith.mulf %2, %24 : vector<8x392xf32>
    %26 = vector.broadcast %23 : vector<8x1xf32> to vector<8x392xf32>
    %27 = arith.addf %25, %26 : vector<8x392xf32>
    %cst_13 = arith.constant 0.000000e+00 : f32
    %28 = vector.broadcast %cst_13 : f32 to vector<8x392xf32>
    %29 = arith.maximumf %27, %28 : vector<8x392xf32>
    %c0_14 = arith.constant 0 : index
    %c0_15 = arith.constant 0 : index
    %c0_16 = arith.constant 0 : index
    %30 = vector.load %arg3[%c0_14, %c0_15, %c0_16] : memref<4x392x98xf32, #tpu.memory_space<vmem>>, vector<1x392x98xf32>
    %31 = vector.shape_cast %30 : vector<1x392x98xf32> to vector<392x98xf32>
    %cst_17 = arith.constant dense<0.000000e+00> : vector<8x98xf32>
    %32 = tpu.matmul %29, %31, %cst_17 {dimension_numbers = #tpu.dot_dimension_numbers<[1], [0], [0], [1], [0, 0, 1, 1], [], []>} : vector<8x392xf32>, vector<392x98xf32>, vector<8x98xf32> -> vector<8x98xf32>
    %c0_18 = arith.constant 0 : index
    %c0_19 = arith.constant 0 : index
    %c0_20 = arith.constant 0 : index
    %33 = vector.load %arg4[%c0_18, %c0_19, %c0_20] : memref<4x16x8xf32, #tpu.memory_space<vmem>>, vector<1x16x8xf32>
    %34 = vector.shape_cast %33 : vector<1x16x8xf32> to vector<16x8xf32>
    %cst_21 = arith.constant dense<0.000000e+00> : vector<16x98xf32>
    %35 = tpu.matmul %34, %32, %cst_21 {dimension_numbers = #tpu.dot_dimension_numbers<[1], [0], [0], [1], [0, 0, 1, 1], [], []>} : vector<16x8xf32>, vector<8x98xf32>, vector<16x98xf32> -> vector<16x98xf32>
    %c1_22 = arith.constant 1 : index
    %c0_23 = arith.constant 0 : index
    %c0_24 = arith.constant 0 : index
    %36 = vector.load %arg3[%c1_22, %c0_23, %c0_24] : memref<4x392x98xf32, #tpu.memory_space<vmem>>, vector<1x392x98xf32>
    %37 = vector.shape_cast %36 : vector<1x392x98xf32> to vector<392x98xf32>
    %cst_25 = arith.constant dense<0.000000e+00> : vector<8x98xf32>
    %38 = tpu.matmul %29, %37, %cst_25 {dimension_numbers = #tpu.dot_dimension_numbers<[1], [0], [0], [1], [0, 0, 1, 1], [], []>} : vector<8x392xf32>, vector<392x98xf32>, vector<8x98xf32> -> vector<8x98xf32>
    %c1_26 = arith.constant 1 : index
    %c0_27 = arith.constant 0 : index
    %c0_28 = arith.constant 0 : index
    %39 = vector.load %arg4[%c1_26, %c0_27, %c0_28] : memref<4x16x8xf32, #tpu.memory_space<vmem>>, vector<1x16x8xf32>
    %40 = vector.shape_cast %39 : vector<1x16x8xf32> to vector<16x8xf32>
    %cst_29 = arith.constant dense<0.000000e+00> : vector<16x98xf32>
    %41 = tpu.matmul %40, %38, %cst_29 {dimension_numbers = #tpu.dot_dimension_numbers<[1], [0], [0], [1], [0, 0, 1, 1], [], []>} : vector<16x8xf32>, vector<8x98xf32>, vector<16x98xf32> -> vector<16x98xf32>
    %42 = arith.addf %35, %41 : vector<16x98xf32>
    %c2 = arith.constant 2 : index
    %c0_30 = arith.constant 0 : index
    %c0_31 = arith.constant 0 : index
    %43 = vector.load %arg3[%c2, %c0_30, %c0_31] : memref<4x392x98xf32, #tpu.memory_space<vmem>>, vector<1x392x98xf32>
    %44 = vector.shape_cast %43 : vector<1x392x98xf32> to vector<392x98xf32>
    %cst_32 = arith.constant dense<0.000000e+00> : vector<8x98xf32>
    %45 = tpu.matmul %29, %44, %cst_32 {dimension_numbers = #tpu.dot_dimension_numbers<[1], [0], [0], [1], [0, 0, 1, 1], [], []>} : vector<8x392xf32>, vector<392x98xf32>, vector<8x98xf32> -> vector<8x98xf32>
    %c2_33 = arith.constant 2 : index
    %c0_34 = arith.constant 0 : index
    %c0_35 = arith.constant 0 : index
    %46 = vector.load %arg4[%c2_33, %c0_34, %c0_35] : memref<4x16x8xf32, #tpu.memory_space<vmem>>, vector<1x16x8xf32>
    %47 = vector.shape_cast %46 : vector<1x16x8xf32> to vector<16x8xf32>
    %cst_36 = arith.constant dense<0.000000e+00> : vector<16x98xf32>
    %48 = tpu.matmul %47, %45, %cst_36 {dimension_numbers = #tpu.dot_dimension_numbers<[1], [0], [0], [1], [0, 0, 1, 1], [], []>} : vector<16x8xf32>, vector<8x98xf32>, vector<16x98xf32> -> vector<16x98xf32>
    %49 = arith.addf %42, %48 : vector<16x98xf32>
    %c3 = arith.constant 3 : index
    %c0_37 = arith.constant 0 : index
    %c0_38 = arith.constant 0 : index
    %50 = vector.load %arg3[%c3, %c0_37, %c0_38] : memref<4x392x98xf32, #tpu.memory_space<vmem>>, vector<1x392x98xf32>
    %51 = vector.shape_cast %50 : vector<1x392x98xf32> to vector<392x98xf32>
    %cst_39 = arith.constant dense<0.000000e+00> : vector<8x98xf32>
    %52 = tpu.matmul %29, %51, %cst_39 {dimension_numbers = #tpu.dot_dimension_numbers<[1], [0], [0], [1], [0, 0, 1, 1], [], []>} : vector<8x392xf32>, vector<392x98xf32>, vector<8x98xf32> -> vector<8x98xf32>
    %c3_40 = arith.constant 3 : index
    %c0_41 = arith.constant 0 : index
    %c0_42 = arith.constant 0 : index
    %53 = vector.load %arg4[%c3_40, %c0_41, %c0_42] : memref<4x16x8xf32, #tpu.memory_space<vmem>>, vector<1x16x8xf32>
    %54 = vector.shape_cast %53 : vector<1x16x8xf32> to vector<16x8xf32>
    %cst_43 = arith.constant dense<0.000000e+00> : vector<16x98xf32>
    %55 = tpu.matmul %54, %52, %cst_43 {dimension_numbers = #tpu.dot_dimension_numbers<[1], [0], [0], [1], [0, 0, 1, 1], [], []>} : vector<16x8xf32>, vector<8x98xf32>, vector<16x98xf32> -> vector<16x98xf32>
    %56 = arith.addf %49, %55 : vector<16x98xf32>
    %cst_44 = arith.constant dense<0.000000e+00> : vector<16xf32>
    %57 = vector.multi_reduction <add>, %56, %cst_44 [1] : vector<16x98xf32> to vector<16xf32>
    %58 = vector.shape_cast %57 : vector<16xf32> to vector<16x1xf32>
    %cst_45 = arith.constant 0.0102040814 : f32
    %59 = vector.broadcast %cst_45 : f32 to vector<16x1xf32>
    %60 = arith.mulf %58, %59 : vector<16x1xf32>
    %61 = arith.mulf %56, %56 : vector<16x98xf32>
    %cst_46 = arith.constant dense<0.000000e+00> : vector<16xf32>
    %62 = vector.multi_reduction <add>, %61, %cst_46 [1] : vector<16x98xf32> to vector<16xf32>
    %63 = vector.shape_cast %62 : vector<16xf32> to vector<16x1xf32>
    %cst_47 = arith.constant 0.0102040814 : f32
    %64 = vector.broadcast %cst_47 : f32 to vector<16x1xf32>
    %65 = arith.mulf %63, %64 : vector<16x1xf32>
    %66 = arith.mulf %60, %60 : vector<16x1xf32>
    %67 = arith.subf %65, %66 : vector<16x1xf32>
    %c0_48 = arith.constant 0 : index
    %c0_49 = arith.constant 0 : index
    %c0_50 = arith.constant 0 : index
    %68 = vector.load %arg5[%c0_48, %c0_49, %c0_50] : memref<2x16x1xf32, #tpu.memory_space<vmem>>, vector<1x16x1xf32>
    %69 = vector.shape_cast %68 : vector<1x16x1xf32> to vector<16x1xf32>
    %cst_51 = arith.constant 9.99999974E-6 : f32
    %70 = vector.broadcast %cst_51 : f32 to vector<16x1xf32>
    %71 = arith.addf %67, %70 : vector<16x1xf32>
    %72 = math.rsqrt %71 : vector<16x1xf32>
    %73 = arith.mulf %69, %72 : vector<16x1xf32>
    %c1_52 = arith.constant 1 : index
    %c0_53 = arith.constant 0 : index
    %c0_54 = arith.constant 0 : index
    %74 = vector.load %arg5[%c1_52, %c0_53, %c0_54] : memref<2x16x1xf32, #tpu.memory_space<vmem>>, vector<1x16x1xf32>
    %75 = vector.shape_cast %74 : vector<1x16x1xf32> to vector<16x1xf32>
    %76 = arith.mulf %60, %73 : vector<16x1xf32>
    %77 = arith.subf %75, %76 : vector<16x1xf32>
    %78 = vector.broadcast %73 : vector<16x1xf32> to vector<16x98xf32>
    %79 = arith.mulf %56, %78 : vector<16x98xf32>
    %80 = vector.broadcast %77 : vector<16x1xf32> to vector<16x98xf32>
    %81 = arith.addf %79, %80 : vector<16x98xf32>
    %cst_55 = arith.constant 0.000000e+00 : f32
    %82 = vector.broadcast %cst_55 : f32 to vector<16x98xf32>
    %83 = arith.maximumf %81, %82 : vector<16x98xf32>
    %c0_56 = arith.constant 0 : index
    %c0_57 = arith.constant 0 : index
    %c0_58 = arith.constant 0 : index
    %84 = vector.load %arg6[%c0_56, %c0_57, %c0_58] : memref<4x98x18xf32, #tpu.memory_space<vmem>>, vector<1x98x18xf32>
    %85 = vector.shape_cast %84 : vector<1x98x18xf32> to vector<98x18xf32>
    %cst_59 = arith.constant dense<0.000000e+00> : vector<16x18xf32>
    %86 = tpu.matmul %83, %85, %cst_59 {dimension_numbers = #tpu.dot_dimension_numbers<[1], [0], [0], [1], [0, 0, 1, 1], [], []>} : vector<16x98xf32>, vector<98x18xf32>, vector<16x18xf32> -> vector<16x18xf32>
    %c0_60 = arith.constant 0 : index
    %c0_61 = arith.constant 0 : index
    %c0_62 = arith.constant 0 : index
    %87 = vector.load %arg7[%c0_60, %c0_61, %c0_62] : memref<4x32x16xf32, #tpu.memory_space<vmem>>, vector<1x32x16xf32>
    %88 = vector.shape_cast %87 : vector<1x32x16xf32> to vector<32x16xf32>
    %cst_63 = arith.constant dense<0.000000e+00> : vector<32x18xf32>
    %89 = tpu.matmul %88, %86, %cst_63 {dimension_numbers = #tpu.dot_dimension_numbers<[1], [0], [0], [1], [0, 0, 1, 1], [], []>} : vector<32x16xf32>, vector<16x18xf32>, vector<32x18xf32> -> vector<32x18xf32>
    %c1_64 = arith.constant 1 : index
    %c0_65 = arith.constant 0 : index
    %c0_66 = arith.constant 0 : index
    %90 = vector.load %arg6[%c1_64, %c0_65, %c0_66] : memref<4x98x18xf32, #tpu.memory_space<vmem>>, vector<1x98x18xf32>
    %91 = vector.shape_cast %90 : vector<1x98x18xf32> to vector<98x18xf32>
    %cst_67 = arith.constant dense<0.000000e+00> : vector<16x18xf32>
    %92 = tpu.matmul %83, %91, %cst_67 {dimension_numbers = #tpu.dot_dimension_numbers<[1], [0], [0], [1], [0, 0, 1, 1], [], []>} : vector<16x98xf32>, vector<98x18xf32>, vector<16x18xf32> -> vector<16x18xf32>
    %c1_68 = arith.constant 1 : index
    %c0_69 = arith.constant 0 : index
    %c0_70 = arith.constant 0 : index
    %93 = vector.load %arg7[%c1_68, %c0_69, %c0_70] : memref<4x32x16xf32, #tpu.memory_space<vmem>>, vector<1x32x16xf32>
    %94 = vector.shape_cast %93 : vector<1x32x16xf32> to vector<32x16xf32>
    %cst_71 = arith.constant dense<0.000000e+00> : vector<32x18xf32>
    %95 = tpu.matmul %94, %92, %cst_71 {dimension_numbers = #tpu.dot_dimension_numbers<[1], [0], [0], [1], [0, 0, 1, 1], [], []>} : vector<32x16xf32>, vector<16x18xf32>, vector<32x18xf32> -> vector<32x18xf32>
    %96 = arith.addf %89, %95 : vector<32x18xf32>
    %c2_72 = arith.constant 2 : index
    %c0_73 = arith.constant 0 : index
    %c0_74 = arith.constant 0 : index
    %97 = vector.load %arg6[%c2_72, %c0_73, %c0_74] : memref<4x98x18xf32, #tpu.memory_space<vmem>>, vector<1x98x18xf32>
    %98 = vector.shape_cast %97 : vector<1x98x18xf32> to vector<98x18xf32>
    %cst_75 = arith.constant dense<0.000000e+00> : vector<16x18xf32>
    %99 = tpu.matmul %83, %98, %cst_75 {dimension_numbers = #tpu.dot_dimension_numbers<[1], [0], [0], [1], [0, 0, 1, 1], [], []>} : vector<16x98xf32>, vector<98x18xf32>, vector<16x18xf32> -> vector<16x18xf32>
    %c2_76 = arith.constant 2 : index
    %c0_77 = arith.constant 0 : index
    %c0_78 = arith.constant 0 : index
    %100 = vector.load %arg7[%c2_76, %c0_77, %c0_78] : memref<4x32x16xf32, #tpu.memory_space<vmem>>, vector<1x32x16xf32>
    %101 = vector.shape_cast %100 : vector<1x32x16xf32> to vector<32x16xf32>
    %cst_79 = arith.constant dense<0.000000e+00> : vector<32x18xf32>
    %102 = tpu.matmul %101, %99, %cst_79 {dimension_numbers = #tpu.dot_dimension_numbers<[1], [0], [0], [1], [0, 0, 1, 1], [], []>} : vector<32x16xf32>, vector<16x18xf32>, vector<32x18xf32> -> vector<32x18xf32>
    %103 = arith.addf %96, %102 : vector<32x18xf32>
    %c3_80 = arith.constant 3 : index
    %c0_81 = arith.constant 0 : index
    %c0_82 = arith.constant 0 : index
    %104 = vector.load %arg6[%c3_80, %c0_81, %c0_82] : memref<4x98x18xf32, #tpu.memory_space<vmem>>, vector<1x98x18xf32>
    %105 = vector.shape_cast %104 : vector<1x98x18xf32> to vector<98x18xf32>
    %cst_83 = arith.constant dense<0.000000e+00> : vector<16x18xf32>
    %106 = tpu.matmul %83, %105, %cst_83 {dimension_numbers = #tpu.dot_dimension_numbers<[1], [0], [0], [1], [0, 0, 1, 1], [], []>} : vector<16x98xf32>, vector<98x18xf32>, vector<16x18xf32> -> vector<16x18xf32>
    %c3_84 = arith.constant 3 : index
    %c0_85 = arith.constant 0 : index
    %c0_86 = arith.constant 0 : index
    %107 = vector.load %arg7[%c3_84, %c0_85, %c0_86] : memref<4x32x16xf32, #tpu.memory_space<vmem>>, vector<1x32x16xf32>
    %108 = vector.shape_cast %107 : vector<1x32x16xf32> to vector<32x16xf32>
    %cst_87 = arith.constant dense<0.000000e+00> : vector<32x18xf32>
    %109 = tpu.matmul %108, %106, %cst_87 {dimension_numbers = #tpu.dot_dimension_numbers<[1], [0], [0], [1], [0, 0, 1, 1], [], []>} : vector<32x16xf32>, vector<16x18xf32>, vector<32x18xf32> -> vector<32x18xf32>
    %110 = arith.addf %103, %109 : vector<32x18xf32>
    %cst_88 = arith.constant dense<0.000000e+00> : vector<32xf32>
    %111 = vector.multi_reduction <add>, %110, %cst_88 [1] : vector<32x18xf32> to vector<32xf32>
    %112 = vector.shape_cast %111 : vector<32xf32> to vector<32x1xf32>
    %cst_89 = arith.constant 0.055555556 : f32
    %113 = vector.broadcast %cst_89 : f32 to vector<32x1xf32>
    %114 = arith.mulf %112, %113 : vector<32x1xf32>
    %115 = arith.mulf %110, %110 : vector<32x18xf32>
    %cst_90 = arith.constant dense<0.000000e+00> : vector<32xf32>
    %116 = vector.multi_reduction <add>, %115, %cst_90 [1] : vector<32x18xf32> to vector<32xf32>
    %117 = vector.shape_cast %116 : vector<32xf32> to vector<32x1xf32>
    %cst_91 = arith.constant 0.055555556 : f32
    %118 = vector.broadcast %cst_91 : f32 to vector<32x1xf32>
    %119 = arith.mulf %117, %118 : vector<32x1xf32>
    %120 = arith.mulf %114, %114 : vector<32x1xf32>
    %121 = arith.subf %119, %120 : vector<32x1xf32>
    %c0_92 = arith.constant 0 : index
    %c0_93 = arith.constant 0 : index
    %c0_94 = arith.constant 0 : index
    %122 = vector.load %arg8[%c0_92, %c0_93, %c0_94] : memref<2x32x1xf32, #tpu.memory_space<vmem>>, vector<1x32x1xf32>
    %123 = vector.shape_cast %122 : vector<1x32x1xf32> to vector<32x1xf32>
    %cst_95 = arith.constant 9.99999974E-6 : f32
    %124 = vector.broadcast %cst_95 : f32 to vector<32x1xf32>
    %125 = arith.addf %121, %124 : vector<32x1xf32>
    %126 = math.rsqrt %125 : vector<32x1xf32>
    %127 = arith.mulf %123, %126 : vector<32x1xf32>
    %c1_96 = arith.constant 1 : index
    %c0_97 = arith.constant 0 : index
    %c0_98 = arith.constant 0 : index
    %128 = vector.load %arg8[%c1_96, %c0_97, %c0_98] : memref<2x32x1xf32, #tpu.memory_space<vmem>>, vector<1x32x1xf32>
    %129 = vector.shape_cast %128 : vector<1x32x1xf32> to vector<32x1xf32>
    %130 = arith.mulf %114, %127 : vector<32x1xf32>
    %131 = arith.subf %129, %130 : vector<32x1xf32>
    %132 = vector.broadcast %127 : vector<32x1xf32> to vector<32x18xf32>
    %133 = arith.mulf %110, %132 : vector<32x18xf32>
    %134 = vector.broadcast %131 : vector<32x1xf32> to vector<32x18xf32>
    %135 = arith.addf %133, %134 : vector<32x18xf32>
    %cst_99 = arith.constant 0.000000e+00 : f32
    %136 = vector.broadcast %cst_99 : f32 to vector<32x18xf32>
    %137 = arith.maximumf %135, %136 : vector<32x18xf32>
    %c0_100 = arith.constant 0 : index
    %c0_101 = arith.constant 0 : index
    %c0_102 = arith.constant 0 : index
    %138 = vector.load %arg9[%c0_100, %c0_101, %c0_102] : memref<4x18x2xf32, #tpu.memory_space<vmem>>, vector<1x18x2xf32>
    %139 = vector.shape_cast %138 : vector<1x18x2xf32> to vector<18x2xf32>
    %cst_103 = arith.constant dense<0.000000e+00> : vector<32x2xf32>
    %140 = tpu.matmul %137, %139, %cst_103 {dimension_numbers = #tpu.dot_dimension_numbers<[1], [0], [0], [1], [0, 0, 1, 1], [], []>} : vector<32x18xf32>, vector<18x2xf32>, vector<32x2xf32> -> vector<32x2xf32>
    %c0_104 = arith.constant 0 : index
    %c0_105 = arith.constant 0 : index
    %c0_106 = arith.constant 0 : index
    %141 = vector.load %arg10[%c0_104, %c0_105, %c0_106] : memref<4x32x32xf32, #tpu.memory_space<vmem>>, vector<1x32x32xf32>
    %142 = vector.shape_cast %141 : vector<1x32x32xf32> to vector<32x32xf32>
    %cst_107 = arith.constant dense<0.000000e+00> : vector<32x2xf32>
    %143 = tpu.matmul %142, %140, %cst_107 {dimension_numbers = #tpu.dot_dimension_numbers<[1], [0], [0], [1], [0, 0, 1, 1], [], []>} : vector<32x32xf32>, vector<32x2xf32>, vector<32x2xf32> -> vector<32x2xf32>
    %c1_108 = arith.constant 1 : index
    %c0_109 = arith.constant 0 : index
    %c0_110 = arith.constant 0 : index
    %144 = vector.load %arg9[%c1_108, %c0_109, %c0_110] : memref<4x18x2xf32, #tpu.memory_space<vmem>>, vector<1x18x2xf32>
    %145 = vector.shape_cast %144 : vector<1x18x2xf32> to vector<18x2xf32>
    %cst_111 = arith.constant dense<0.000000e+00> : vector<32x2xf32>
    %146 = tpu.matmul %137, %145, %cst_111 {dimension_numbers = #tpu.dot_dimension_numbers<[1], [0], [0], [1], [0, 0, 1, 1], [], []>} : vector<32x18xf32>, vector<18x2xf32>, vector<32x2xf32> -> vector<32x2xf32>
    %c1_112 = arith.constant 1 : index
    %c0_113 = arith.constant 0 : index
    %c0_114 = arith.constant 0 : index
    %147 = vector.load %arg10[%c1_112, %c0_113, %c0_114] : memref<4x32x32xf32, #tpu.memory_space<vmem>>, vector<1x32x32xf32>
    %148 = vector.shape_cast %147 : vector<1x32x32xf32> to vector<32x32xf32>
    %cst_115 = arith.constant dense<0.000000e+00> : vector<32x2xf32>
    %149 = tpu.matmul %148, %146, %cst_115 {dimension_numbers = #tpu.dot_dimension_numbers<[1], [0], [0], [1], [0, 0, 1, 1], [], []>} : vector<32x32xf32>, vector<32x2xf32>, vector<32x2xf32> -> vector<32x2xf32>
    %150 = arith.addf %143, %149 : vector<32x2xf32>
    %c2_116 = arith.constant 2 : index
    %c0_117 = arith.constant 0 : index
    %c0_118 = arith.constant 0 : index
    %151 = vector.load %arg9[%c2_116, %c0_117, %c0_118] : memref<4x18x2xf32, #tpu.memory_space<vmem>>, vector<1x18x2xf32>
    %152 = vector.shape_cast %151 : vector<1x18x2xf32> to vector<18x2xf32>
    %cst_119 = arith.constant dense<0.000000e+00> : vector<32x2xf32>
    %153 = tpu.matmul %137, %152, %cst_119 {dimension_numbers = #tpu.dot_dimension_numbers<[1], [0], [0], [1], [0, 0, 1, 1], [], []>} : vector<32x18xf32>, vector<18x2xf32>, vector<32x2xf32> -> vector<32x2xf32>
    %c2_120 = arith.constant 2 : index
    %c0_121 = arith.constant 0 : index
    %c0_122 = arith.constant 0 : index
    %154 = vector.load %arg10[%c2_120, %c0_121, %c0_122] : memref<4x32x32xf32, #tpu.memory_space<vmem>>, vector<1x32x32xf32>
    %155 = vector.shape_cast %154 : vector<1x32x32xf32> to vector<32x32xf32>
    %cst_123 = arith.constant dense<0.000000e+00> : vector<32x2xf32>
    %156 = tpu.matmul %155, %153, %cst_123 {dimension_numbers = #tpu.dot_dimension_numbers<[1], [0], [0], [1], [0, 0, 1, 1], [], []>} : vector<32x32xf32>, vector<32x2xf32>, vector<32x2xf32> -> vector<32x2xf32>
    %157 = arith.addf %150, %156 : vector<32x2xf32>
    %c3_124 = arith.constant 3 : index
    %c0_125 = arith.constant 0 : index
    %c0_126 = arith.constant 0 : index
    %158 = vector.load %arg9[%c3_124, %c0_125, %c0_126] : memref<4x18x2xf32, #tpu.memory_space<vmem>>, vector<1x18x2xf32>
    %159 = vector.shape_cast %158 : vector<1x18x2xf32> to vector<18x2xf32>
    %cst_127 = arith.constant dense<0.000000e+00> : vector<32x2xf32>
    %160 = tpu.matmul %137, %159, %cst_127 {dimension_numbers = #tpu.dot_dimension_numbers<[1], [0], [0], [1], [0, 0, 1, 1], [], []>} : vector<32x18xf32>, vector<18x2xf32>, vector<32x2xf32> -> vector<32x2xf32>
    %c3_128 = arith.constant 3 : index
    %c0_129 = arith.constant 0 : index
    %c0_130 = arith.constant 0 : index
    %161 = vector.load %arg10[%c3_128, %c0_129, %c0_130] : memref<4x32x32xf32, #tpu.memory_space<vmem>>, vector<1x32x32xf32>
    %162 = vector.shape_cast %161 : vector<1x32x32xf32> to vector<32x32xf32>
    %cst_131 = arith.constant dense<0.000000e+00> : vector<32x2xf32>
    %163 = tpu.matmul %162, %160, %cst_131 {dimension_numbers = #tpu.dot_dimension_numbers<[1], [0], [0], [1], [0, 0, 1, 1], [], []>} : vector<32x32xf32>, vector<32x2xf32>, vector<32x2xf32> -> vector<32x2xf32>
    %164 = arith.addf %157, %163 : vector<32x2xf32>
    %c0_132 = arith.constant 0 : index
    %c0_133 = arith.constant 0 : index
    %165 = vector.load %arg11[%c0_132, %c0_133] : memref<32x1xf32, #tpu.memory_space<vmem>>, vector<32x1xf32>
    %166 = vector.broadcast %165 : vector<32x1xf32> to vector<32x2xf32>
    %167 = arith.addf %164, %166 : vector<32x2xf32>
    %c0_134 = arith.constant 0 : index
    %c0_135 = arith.constant 0 : index
    %168 = vector.load %arg12[%c0_134, %c0_135] : memref<32x2xf32, #tpu.memory_space<vmem>>, vector<32x2xf32>
    tpu.vector_store %arg12[%c0_134, %c0_135], %167 {strides = array<i32>} : memref<32x2xf32, #tpu.memory_space<vmem>>, vector<32x2xf32>,
    return
  }
}

</mosaic_0001>

<llo_original>
// kernel: conv_encoder2.1
$region0: #{conv_encoder2.1}
  #allocation0 [shape = 'u32[]', space=smem, size = 0x4, offset = 0x4, fixed_abs, tag = 'smem constant byte address 0x4 - core index']
  #allocation1 [shape = 'u32[144,128]{1,0:T(1,128)}', space=vmem, size = 0x12000, scoped, tag = 'internal scratch']
  %s0 = inlined_call_operand.vmem [shape: f32[4,392], index: 0, kind: input, shape index: {}]
  %s1 = inlined_call_operand.vmem [shape: f32[8,4], index: 1, kind: input, shape index: {}]
  %s2 = inlined_call_operand.vmem [shape: f32[2,8,1], index: 2, kind: input, shape index: {}]
  %s3 = inlined_call_operand.vmem [shape: f32[4,392,98], index: 3, kind: input, shape index: {}]
  %s4 = inlined_call_operand.vmem [shape: f32[4,16,8], index: 4, kind: input, shape index: {}]
  %s5 = inlined_call_operand.vmem [shape: f32[2,16,1], index: 5, kind: input, shape index: {}]
  %s6 = inlined_call_operand.vmem [shape: f32[4,98,18], index: 6, kind: input, shape index: {}]
  %s7 = inlined_call_operand.vmem [shape: f32[4,32,16], index: 7, kind: input, shape index: {}]
  %s8 = inlined_call_operand.vmem [shape: f32[2,32,1], index: 8, kind: input, shape index: {}]
  %s9 = inlined_call_operand.vmem [shape: f32[4,18,2], index: 9, kind: input, shape index: {}]
  %s10 = inlined_call_operand.vmem [shape: f32[4,32,32], index: 10, kind: input, shape index: {}]
  %s11 = inlined_call_operand.vmem [shape: f32[32,1], index: 11, kind: input, shape index: {}]
  %s12 = inlined_call_operand.vmem [shape: f32[32,2], index: 12, kind: output, shape index: {}]
  %s13 = sld [smem:[#allocation0]]
  $region58: #{conv_encoder2.1} parent=0
    _
  %s15 = ssub.s32 1, %s13
  %s16 = scalar_select 0, %s15, %s13
  // Predicated region
  $region2: #{conv_encoder2.1} parent=0 // pred_check
    _
  $region3: #{conv_encoder2.1} parent=0 // pred_check_branch
    %18 = sbr.rel (0) target = $region5
  $region4: #{conv_encoder2.1} parent=0 // pred_region
    _
  $region5: #{conv_encoder2.1} parent=0 // pred_fallthru
    _
  // Predicated region
  $region6: #{conv_encoder2.1} parent=0 // pred_check
    _
  $region7: #{conv_encoder2.1} parent=0 // pred_check_branch
    %20 = sbr.rel (0) target = $region9
  $region8: #{conv_encoder2.1} parent=0 // pred_region
    _
  $region9: #{conv_encoder2.1} parent=0 // pred_fallthru
    _
  // Predicated region
  $region10: #{conv_encoder2.1} parent=0 // pred_check
    _
  $region11: #{conv_encoder2.1} parent=0 // pred_check_branch
    %22 = sbr.rel (0) target = $region13
  $region12: #{conv_encoder2.1} parent=0 // pred_region
    _
  $region13: #{conv_encoder2.1} parent=0 // pred_fallthru
    _
  // Predicated region
  $region14: #{conv_encoder2.1} parent=0 // pred_check
    _
  $region15: #{conv_encoder2.1} parent=0 // pred_check_branch
    %24 = sbr.rel (0) target = $region17
  $region16: #{conv_encoder2.1} parent=0 // pred_region
    _
  $region17: #{conv_encoder2.1} parent=0 // pred_fallthru
    _
  // Predicated region
  $region18: #{conv_encoder2.1} parent=0 // pred_check
    _
  $region19: #{conv_encoder2.1} parent=0 // pred_check_branch
    %26 = sbr.rel (0) target = $region21
  $region20: #{conv_encoder2.1} parent=0 // pred_region
    _
  $region21: #{conv_encoder2.1} parent=0 // pred_fallthru
    _
  // Predicated region
  $region22: #{conv_encoder2.1} parent=0 // pred_check
    _
  $region23: #{conv_encoder2.1} parent=0 // pred_check_branch
    %28 = sbr.rel (0) target = $region25
  $region24: #{conv_encoder2.1} parent=0 // pred_region
    _
  $region25: #{conv_encoder2.1} parent=0 // pred_fallthru
    _
  // Predicated region
  $region26: #{conv_encoder2.1} parent=0 // pred_check
    _
  $region27: #{conv_encoder2.1} parent=0 // pred_check_branch
    %30 = sbr.rel (0) target = $region29
  $region28: #{conv_encoder2.1} parent=0 // pred_region
    _
  $region29: #{conv_encoder2.1} parent=0 // pred_fallthru
    _
  // Predicated region
  $region30: #{conv_encoder2.1} parent=0 // pred_check
    _
  $region31: #{conv_encoder2.1} parent=0 // pred_check_branch
    %32 = sbr.rel (0) target = $region33
  $region32: #{conv_encoder2.1} parent=0 // pred_region
    _
  $region33: #{conv_encoder2.1} parent=0 // pred_fallthru
    _
  // Predicated region
  $region34: #{conv_encoder2.1} parent=0 // pred_check
    _
  $region35: #{conv_encoder2.1} parent=0 // pred_check_branch
    %34 = sbr.rel (0) target = $region37
  $region36: #{conv_encoder2.1} parent=0 // pred_region
    _
  $region37: #{conv_encoder2.1} parent=0 // pred_fallthru
    _
  // Predicated region
  $region38: #{conv_encoder2.1} parent=0 // pred_check
    _
  $region39: #{conv_encoder2.1} parent=0 // pred_check_branch
    %36 = sbr.rel (0) target = $region41
  $region40: #{conv_encoder2.1} parent=0 // pred_region
    _
  $region41: #{conv_encoder2.1} parent=0 // pred_fallthru
    _
  // Predicated region
  $region42: #{conv_encoder2.1} parent=0 // pred_check
    _
  $region43: #{conv_encoder2.1} parent=0 // pred_check_branch
    %38 = sbr.rel (0) target = $region45
  $region44: #{conv_encoder2.1} parent=0 // pred_region
    _
  $region45: #{conv_encoder2.1} parent=0 // pred_fallthru
    _
  // Predicated region
  $region46: #{conv_encoder2.1} parent=0 // pred_check
    _
  $region47: #{conv_encoder2.1} parent=0 // pred_check_branch
    %40 = sbr.rel (0) target = $region49
  $region48: #{conv_encoder2.1} parent=0 // pred_region
    _
  $region49: #{conv_encoder2.1} parent=0 // pred_fallthru
    _
  %v41 = vld [vmem:[%s1] sm:$0xff]
  %v42 = vld [vmem:[%s0] sm:$0xff]
  %v43 = vld [vmem:[%s0 + $0x8] sm:$0xff]
  %v46 = vcombine.high %v42, %v42
  %v47 = vcombine.high %v43, %v43
  %vm48 = vcmask 31744
  %v50 = vsel %vm48, %v41, 0
  %vm52 = vcmask 1043456
  %v53 = vsel %vm52, %v42, 0
  %v55 = vsel %vm52, %v46, 0
  %v57 = vsel %vm52, %v43, 0
  %v59 = vsel %vm52, %v47, 0
  %61 = vmatprep.subr.mxu0 %v55
  %62 = vmatpush1.msra.mxu0 %v53
  %63 = vmatprep.subr.mxu0 0.0
  %64 = vmatpush1.msra.mxu0 0.0
  %65 = vmatprep.subr.mxu0 0.0
  %66 = vmatpush1.msra.mxu0 0.0
  %67 = vmatprep.subr.mxu0 0.0
  %68 = vmatpush1.msra.mxu0 0.0
  %69 = vmatprep.subr.mxu0 0.0
  %70 = vmatpush1.msra.mxu0 0.0
  %71 = vmatprep.subr.mxu0 0.0
  %72 = vmatpush1.msra.mxu0 0.0
  %73 = vmatprep.subr.mxu0 0.0
  %74 = vmatpush1.msra.mxu0 0.0
  %75 = vmatprep.subr.mxu0 0.0
  %76 = vmatpush1.msra.mxu0 0.0
  %77 = vmatprep.subr.mxu0 0.0
  %78 = vmatpush1.msra.mxu0 0.0
  %79 = vmatprep.subr.mxu0 0.0
  %80 = vmatpush1.msra.mxu0 0.0
  %81 = vmatprep.subr.mxu0 0.0
  %82 = vmatpush1.msra.mxu0 0.0
  %83 = vmatprep.subr.mxu0 0.0
  %84 = vmatpush1.msra.mxu0 0.0
  %85 = vmatprep.subr.mxu0 0.0
  %86 = vmatpush1.msra.mxu0 0.0
  %87 = vmatprep.subr.mxu0 0.0
  %88 = vmatpush1.msra.mxu0 0.0
  %89 = vmatprep.subr.mxu0 0.0
  %90 = vmatpush1.msra.mxu0 0.0
  %91 = vmatprep.subr.mxu0 0.0
  %92 = vmatpush1.msra.mxu0 0.0
  %93 = vmatprep.subr.mxu0 0.0
  %94 = vmatpush1.msra.mxu0 0.0
  %95 = vmatprep.subr.mxu0 0.0
  %96 = vmatpush1.msra.mxu0 0.0
  %97 = vmatprep.subr.mxu0 0.0
  %98 = vmatpush1.msra.mxu0 0.0
  %99 = vmatprep.subr.mxu0 0.0
  %100 = vmatpush1.msra.mxu0 0.0
  %101 = vmatprep.subr.mxu0 0.0
  %102 = vmatpush1.msra.mxu0 0.0
  %103 = vmatprep.subr.mxu0 0.0
  %104 = vmatpush1.msra.mxu0 0.0
  %105 = vmatprep.subr.mxu0 0.0
  %106 = vmatpush1.msra.mxu0 0.0
  %107 = vmatprep.subr.mxu0 0.0
  %108 = vmatpush1.msra.mxu0 0.0
  %109 = vmatprep.subr.mxu0 0.0
  %110 = vmatpush1.msra.mxu0 0.0
  %111 = vmatprep.subr.mxu0 0.0
  %112 = vmatpush1.msra.mxu0 0.0
  %113 = vmatprep.subr.mxu0 0.0
  %114 = vmatpush1.msra.mxu0 0.0
  %115 = vmatprep.subr.mxu0 0.0
  %116 = vmatpush1.msra.mxu0 0.0
  %117 = vmatprep.subr.mxu0 0.0
  %118 = vmatpush1.msra.mxu0 0.0
  %119 = vmatprep.subr.mxu0 0.0
  %120 = vmatpush1.msra.mxu0 0.0
  %121 = vmatprep.subr.mxu0 0.0
  %122 = vmatpush1.msra.mxu0 0.0
  %123 = vmatprep.subr.mxu0 0.0
  %124 = vmatpush1.msra.mxu0 0.0
  %125 = vmatprep.mubr.f32.mxu0 0.0
  %126 = vmatmul.mubr.f32.gmra.mrb[0].mxu0 %v50
  %v127 = vpop.f32.mrb[0].mxu0
  %v128 = vadd.f32 0.0, %v127
  %v129 = vpop.f32.mrb[0].mxu0
  %v130 = vadd.f32 0.0, %v129
  %131 = vdwg.mxu0
  %132 = vmatprep.subr.mxu0 %v59
  %133 = vmatpush1.msra.mxu0 %v57
  %134 = vmatprep.subr.mxu0 0.0
  %135 = vmatpush1.msra.mxu0 0.0
  %136 = vmatprep.subr.mxu0 0.0
  %137 = vmatpush1.msra.mxu0 0.0
  %138 = vmatprep.subr.mxu0 0.0
  %139 = vmatpush1.msra.mxu0 0.0
  %140 = vmatprep.subr.mxu0 0.0
  %141 = vmatpush1.msra.mxu0 0.0
  %142 = vmatprep.subr.mxu0 0.0
  %143 = vmatpush1.msra.mxu0 0.0
  %144 = vmatprep.subr.mxu0 0.0
  %145 = vmatpush1.msra.mxu0 0.0
  %146 = vmatprep.subr.mxu0 0.0
  %147 = vmatpush1.msra.mxu0 0.0
  %148 = vmatprep.subr.mxu0 0.0
  %149 = vmatpush1.msra.mxu0 0.0
  %150 = vmatprep.subr.mxu0 0.0
  %151 = vmatpush1.msra.mxu0 0.0
  %152 = vmatprep.subr.mxu0 0.0
  %153 = vmatpush1.msra.mxu0 0.0
  %154 = vmatprep.subr.mxu0 0.0
  %155 = vmatpush1.msra.mxu0 0.0
  %156 = vmatprep.subr.mxu0 0.0
  %157 = vmatpush1.msra.mxu0 0.0
  %158 = vmatprep.subr.mxu0 0.0
  %159 = vmatpush1.msra.mxu0 0.0
  %160 = vmatprep.subr.mxu0 0.0
  %161 = vmatpush1.msra.mxu0 0.0
  %162 = vmatprep.subr.mxu0 0.0
  %163 = vmatpush1.msra.mxu0 0.0
  %164 = vmatprep.subr.mxu0 0.0
  %165 = vmatpush1.msra.mxu0 0.0
  %166 = vmatprep.subr.mxu0 0.0
  %167 = vmatpush1.msra.mxu0 0.0
  %168 = vmatprep.subr.mxu0 0.0
  %169 = vmatpush1.msra.mxu0 0.0
  %170 = vmatprep.subr.mxu0 0.0
  %171 = vmatpush1.msra.mxu0 0.0
  %172 = vmatprep.subr.mxu0 0.0
  %173 = vmatpush1.msra.mxu0 0.0
  %174 = vmatprep.subr.mxu0 0.0
  %175 = vmatpush1.msra.mxu0 0.0
  %176 = vmatprep.subr.mxu0 0.0
  %177 = vmatpush1.msra.mxu0 0.0
  %178 = vmatprep.subr.mxu0 0.0
  %179 = vmatpush1.msra.mxu0 0.0
  %180 = vmatprep.subr.mxu0 0.0
  %181 = vmatpush1.msra.mxu0 0.0
  %182 = vmatprep.subr.mxu0 0.0
  %183 = vmatpush1.msra.mxu0 0.0
  %184 = vmatprep.subr.mxu0 0.0
  %185 = vmatpush1.msra.mxu0 0.0
  %186 = vmatprep.subr.mxu0 0.0
  %187 = vmatpush1.msra.mxu0 0.0
  %188 = vmatprep.subr.mxu0 0.0
  %189 = vmatpush1.msra.mxu0 0.0
  %190 = vmatprep.subr.mxu0 0.0
  %191 = vmatpush1.msra.mxu0 0.0
  %192 = vmatprep.subr.mxu0 0.0
  %193 = vmatpush1.msra.mxu0 0.0
  %194 = vmatprep.subr.mxu0 0.0
  %195 = vmatpush1.msra.mxu0 0.0
  %196 = vmatprep.mubr.f32.mxu0 0.0
  %197 = vmatmul.mubr.f32.gmra.mrb[0].mxu0 %v50
  %v198 = vpop.f32.mrb[0].mxu0
  %v199 = vadd.f32 0.0, %v198
  %v200 = vpop.f32.mrb[0].mxu0
  %v201 = vadd.f32 0.0, %v200
  %202 = vdwg.mxu0
  %v203 = vadd.f32 %v128, %v130
  %v204 = vadd.f32 %v203, %v199
  %vm205 = vcmask 64512
  %v206 = vsel %vm205, %v201, 0.0
  %v207 = vadd.f32 %v204, %v206
  %208 = vadd.xlane.f32.xlu0 %v207
  %v209 = vpop.xlane.xlu0 %208
  %v210 = vmul.f32 %v209, 0.0025510204
  %v211 = vmul.f32 %v128, %v128
  %v212 = vmul.f32 %v130, %v130
  %v213 = vmul.f32 %v199, %v199
  %v214 = vmul.f32 %v201, %v201
  %v215 = vadd.f32 %v211, %v212
  %v216 = vadd.f32 %v215, %v213
  %v217 = vsel %vm205, %v214, 0.0
  %v218 = vadd.f32 %v216, %v217
  %219 = vadd.xlane.f32.xlu0 %v218
  %v220 = vpop.xlane.xlu0 %219
  %v221 = vmul.f32 %v220, 0.0025510204
  %v222 = vmul.f32 %v210, %v210
  %v223 = vsub.f32 %v221, %v222
  %v224 = vld [vmem:[%s2] sm:$0xff]
  %v225 = vadd.f32 %v223, 1e-05
  %v226 = vrsqrt.pop %v225
  %v227 = vmul.f32 %v224, %v226
  %s228 = scalar_lea.vmem %s2, 8
  %v229 = vld [vmem:[%s228] sm:$0xff]
  %v230 = vmul.f32 %v210, %v227
  %v231 = vsub.f32 %v229, %v230
  %233 = vset.pattern.permute.xlu0 0
  %234 = vperm.xlu0 %233, %v227
  %v235 = vpop.permute.xlu0 %234
  %v237 = vmul.f32 %v128, %v235
  %v238 = vmul.f32 %v130, %v235
  %v239 = vmul.f32 %v199, %v235
  %v240 = vmul.f32 %v201, %v235
  %242 = vset.pattern.permute.xlu0 0
  %243 = vperm.xlu0 %242, %v231
  %v244 = vpop.permute.xlu0 %243
  %v246 = vadd.f32 %v237, %v244
  %v247 = vadd.f32 %v238, %v244
  %v248 = vadd.f32 %v239, %v244
  %v249 = vadd.f32 %v240, %v244
  %v250 = vmax.f32 %v246, 0.0
  %v251 = vmax.f32 %v247, 0.0
  %v252 = vmax.f32 %v248, 0.0
  %v253 = vmax.f32 %v249, 0.0
  %v254 = vld [vmem:[%s3] sm:$0xff]
  %v255 = vld [vmem:[%s3 + $0x8] sm:$0xff]
  %v256 = vld [vmem:[%s3 + $0x10] sm:$0xff]
  %v257 = vld [vmem:[%s3 + $0x18] sm:$0xff]
  %v258 = vld [vmem:[%s3 + $0x20] sm:$0xff]
  %v259 = vld [vmem:[%s3 + $0x28] sm:$0xff]
  %v260 = vld [vmem:[%s3 + $0x30] sm:$0xff]
  %v261 = vld [vmem:[%s3 + $0x38] sm:$0xff]
  %v262 = vld [vmem:[%s3 + $0x40] sm:$0xff]
  %v263 = vld [vmem:[%s3 + $0x48] sm:$0xff]
  %v264 = vld [vmem:[%s3 + $0x50] sm:$0xff]
  %v265 = vld [vmem:[%s3 + $0x58] sm:$0xff]
  %v266 = vld [vmem:[%s3 + $0x60] sm:$0xff]
  %v267 = vld [vmem:[%s3 + $0x68] sm:$0xff]
  %v268 = vld [vmem:[%s3 + $0x70] sm:$0xff]
  %v269 = vld [vmem:[%s3 + $0x78] sm:$0xff]
  %v270 = vld [vmem:[%s3 + $0x80] sm:$0xff]
  %v271 = vld [vmem:[%s3 + $0x88] sm:$0xff]
  %v272 = vld [vmem:[%s3 + $0x90] sm:$0xff]
  %v273 = vld [vmem:[%s3 + $0x98] sm:$0xff]
  %v274 = vld [vmem:[%s3 + $0xa0] sm:$0xff]
  %v275 = vld [vmem:[%s3 + $0xa8] sm:$0xff]
  %v276 = vld [vmem:[%s3 + $0xb0] sm:$0xff]
  %v277 = vld [vmem:[%s3 + $0xb8] sm:$0xff]
  %v278 = vld [vmem:[%s3 + $0xc0] sm:$0xff]
  %v279 = vld [vmem:[%s3 + $0xc8] sm:$0xff]
  %v280 = vld [vmem:[%s3 + $0xd0] sm:$0xff]
  %v281 = vld [vmem:[%s3 + $0xd8] sm:$0xff]
  %v282 = vld [vmem:[%s3 + $0xe0] sm:$0xff]
  %v283 = vld [vmem:[%s3 + $0xe8] sm:$0xff]
  %v284 = vld [vmem:[%s3 + $0xf0] sm:$0xff]
  %v285 = vld [vmem:[%s3 + $0xf8] sm:$0xff]
  %v286 = vld [vmem:[%s3 + $0x100] sm:$0xff]
  %v287 = vld [vmem:[%s3 + $0x108] sm:$0xff]
  %v288 = vld [vmem:[%s3 + $0x110] sm:$0xff]
  %v289 = vld [vmem:[%s3 + $0x118] sm:$0xff]
  %v290 = vld [vmem:[%s3 + $0x120] sm:$0xff]
  %v291 = vld [vmem:[%s3 + $0x128] sm:$0xff]
  %v292 = vld [vmem:[%s3 + $0x130] sm:$0xff]
  %v293 = vld [vmem:[%s3 + $0x138] sm:$0xff]
  %v294 = vld [vmem:[%s3 + $0x140] sm:$0xff]
  %v295 = vld [vmem:[%s3 + $0x148] sm:$0xff]
  %v296 = vld [vmem:[%s3 + $0x150] sm:$0xff]
  %v297 = vld [vmem:[%s3 + $0x158] sm:$0xff]
  %v298 = vld [vmem:[%s3 + $0x160] sm:$0xff]
  %v299 = vld [vmem:[%s3 + $0x168] sm:$0xff]
  %v300 = vld [vmem:[%s3 + $0x170] sm:$0xff]
  %v301 = vld [vmem:[%s3 + $0x178] sm:$0xff]
  %v302 = vld [vmem:[%s3 + $0x180] sm:$0xff]
  %v304 = vsel %vm205, %v253, 0
  %306 = vmatprep.subr.mxu0 0.0
  %307 = vmatpush1.msra.mxu0 %v254
  %308 = vmatprep.subr.mxu0 0.0
  %309 = vmatpush1.msra.mxu0 %v255
  %310 = vmatprep.subr.mxu0 0.0
  %311 = vmatpush1.msra.mxu0 %v256
  %312 = vmatprep.subr.mxu0 0.0
  %313 = vmatpush1.msra.mxu0 %v257
  %314 = vmatprep.subr.mxu0 0.0
  %315 = vmatpush1.msra.mxu0 %v258
  %316 = vmatprep.subr.mxu0 0.0
  %317 = vmatpush1.msra.mxu0 %v259
  %318 = vmatprep.subr.mxu0 0.0
  %319 = vmatpush1.msra.mxu0 %v260
  %320 = vmatprep.subr.mxu0 0.0
  %321 = vmatpush1.msra.mxu0 %v261
  %322 = vmatprep.subr.mxu0 0.0
  %323 = vmatpush1.msra.mxu0 %v262
  %324 = vmatprep.subr.mxu0 0.0
  %325 = vmatpush1.msra.mxu0 %v263
  %326 = vmatprep.subr.mxu0 0.0
  %327 = vmatpush1.msra.mxu0 %v264
  %328 = vmatprep.subr.mxu0 0.0
  %329 = vmatpush1.msra.mxu0 %v265
  %330 = vmatprep.subr.mxu0 0.0
  %331 = vmatpush1.msra.mxu0 %v266
  %332 = vmatprep.subr.mxu0 0.0
  %333 = vmatpush1.msra.mxu0 %v267
  %334 = vmatprep.subr.mxu0 0.0
  %335 = vmatpush1.msra.mxu0 %v268
  %336 = vmatprep.subr.mxu0 0.0
  %337 = vmatpush1.msra.mxu0 %v269
  %338 = vmatprep.subr.mxu0 0.0
  %339 = vmatpush1.msra.mxu0 %v270
  %340 = vmatprep.subr.mxu0 0.0
  %341 = vmatpush1.msra.mxu0 %v271
  %342 = vmatprep.subr.mxu0 0.0
  %343 = vmatpush1.msra.mxu0 %v272
  %344 = vmatprep.subr.mxu0 0.0
  %345 = vmatpush1.msra.mxu0 %v273
  %346 = vmatprep.subr.mxu0 0.0
  %347 = vmatpush1.msra.mxu0 %v274
  %348 = vmatprep.subr.mxu0 0.0
  %349 = vmatpush1.msra.mxu0 %v275
  %350 = vmatprep.subr.mxu0 0.0
  %351 = vmatpush1.msra.mxu0 %v276
  %352 = vmatprep.subr.mxu0 0.0
  %353 = vmatpush1.msra.mxu0 %v277
  %354 = vmatprep.subr.mxu0 0.0
  %355 = vmatpush1.msra.mxu0 %v278
  %356 = vmatprep.subr.mxu0 0.0
  %357 = vmatpush1.msra.mxu0 %v279
  %358 = vmatprep.subr.mxu0 0.0
  %359 = vmatpush1.msra.mxu0 %v280
  %360 = vmatprep.subr.mxu0 0.0
  %361 = vmatpush1.msra.mxu0 %v281
  %362 = vmatprep.subr.mxu0 0.0
  %363 = vmatpush1.msra.mxu0 %v282
  %364 = vmatprep.subr.mxu0 0.0
  %365 = vmatpush1.msra.mxu0 %v283
  %366 = vmatprep.subr.mxu0 0.0
  %367 = vmatpush1.msra.mxu0 %v284
  %368 = vmatprep.subr.mxu0 0.0
  %369 = vmatpush1.msra.mxu0 %v285
  %370 = vmatprep.mubr.f32.mxu0 %v251
  %371 = vmatmul.mubr.f32.gmra.mrb[0].mxu0 %v250
  %v372 = vpop.f32.mrb[0].mxu0
  %v373 = vadd.f32 0.0, %v372
  %v374 = vpop.f32.mrb[0].mxu0
  %375 = vdwg.mxu0
  %376 = vmatprep.subr.mxu0 0.0
  %377 = vmatpush1.msra.mxu0 %v286
  %378 = vmatprep.subr.mxu0 0.0
  %379 = vmatpush1.msra.mxu0 %v287
  %380 = vmatprep.subr.mxu0 0.0
  %381 = vmatpush1.msra.mxu0 %v288
  %382 = vmatprep.subr.mxu0 0.0
  %383 = vmatpush1.msra.mxu0 %v289
  %384 = vmatprep.subr.mxu0 0.0
  %385 = vmatpush1.msra.mxu0 %v290
  %386 = vmatprep.subr.mxu0 0.0
  %387 = vmatpush1.msra.mxu0 %v291
  %388 = vmatprep.subr.mxu0 0.0
  %389 = vmatpush1.msra.mxu0 %v292
  %390 = vmatprep.subr.mxu0 0.0
  %391 = vmatpush1.msra.mxu0 %v293
  %392 = vmatprep.subr.mxu0 0.0
  %393 = vmatpush1.msra.mxu0 %v294
  %394 = vmatprep.subr.mxu0 0.0
  %395 = vmatpush1.msra.mxu0 %v295
  %396 = vmatprep.subr.mxu0 0.0
  %397 = vmatpush1.msra.mxu0 %v296
  %398 = vmatprep.subr.mxu0 0.0
  %399 = vmatpush1.msra.mxu0 %v297
  %400 = vmatprep.subr.mxu0 0.0
  %401 = vmatpush1.msra.mxu0 %v298
  %402 = vmatprep.subr.mxu0 0.0
  %403 = vmatpush1.msra.mxu0 %v299
  %404 = vmatprep.subr.mxu0 0.0
  %405 = vmatpush1.msra.mxu0 %v300
  %406 = vmatprep.subr.mxu0 0.0
  %407 = vmatpush1.msra.mxu0 %v301
  %408 = vmatprep.subr.mxu0 0.0
  %409 = vmatpush1.msra.mxu0 %v302
  %410 = vmatprep.subr.mxu0 0.0
  %411 = vmatpush1.msra.mxu0 0.0
  %412 = vmatprep.subr.mxu0 0.0
  %413 = vmatpush1.msra.mxu0 0.0
  %414 = vmatprep.subr.mxu0 0.0
  %415 = vmatpush1.msra.mxu0 0.0
  %416 = vmatprep.subr.mxu0 0.0
  %417 = vmatpush1.msra.mxu0 0.0
  %418 = vmatprep.subr.mxu0 0.0
  %419 = vmatpush1.msra.mxu0 0.0
  %420 = vmatprep.subr.mxu0 0.0
  %421 = vmatpush1.msra.mxu0 0.0
  %422 = vmatprep.subr.mxu0 0.0
  %423 = vmatpush1.msra.mxu0 0.0
  %424 = vmatprep.subr.mxu0 0.0
  %425 = vmatpush1.msra.mxu0 0.0
  %426 = vmatprep.subr.mxu0 0.0
  %427 = vmatpush1.msra.mxu0 0.0
  %428 = vmatprep.subr.mxu0 0.0
  %429 = vmatpush1.msra.mxu0 0.0
  %430 = vmatprep.subr.mxu0 0.0
  %431 = vmatpush1.msra.mxu0 0.0
  %432 = vmatprep.subr.mxu0 0.0
  %433 = vmatpush1.msra.mxu0 0.0
  %434 = vmatprep.subr.mxu0 0.0
  %435 = vmatpush1.msra.mxu0 0.0
  %436 = vmatprep.subr.mxu0 0.0
  %437 = vmatpush1.msra.mxu0 0.0
  %438 = vmatprep.subr.mxu0 0.0
  %439 = vmatpush1.msra.mxu0 0.0
  %440 = vmatprep.mubr.f32.mxu0 %v304
  %441 = vmatmul.mubr.f32.gmra.mrb[0].mxu0 %v252
  %v442 = vpop.f32.mrb[0].mxu0
  %v443 = vadd.f32 %v373, %v442
  %v444 = vpop.f32.mrb[0].mxu0
  %445 = vdwg.mxu0
  %v446 = vld [vmem:[%s4] sm:$0xff]
  %v447 = vld [vmem:[%s4 + $0x8] sm:$0xff]
  %s448 = scalar_lea.vmem %s3, 392
  %v449 = vld [vmem:[%s448] sm:$0xff]
  %v450 = vld [vmem:[%s448 + $0x8] sm:$0xff]
  %v451 = vld [vmem:[%s448 + $0x10] sm:$0xff]
  %v452 = vld [vmem:[%s448 + $0x18] sm:$0xff]
  %v453 = vld [vmem:[%s448 + $0x20] sm:$0xff]
  %v454 = vld [vmem:[%s448 + $0x28] sm:$0xff]
  %v455 = vld [vmem:[%s448 + $0x30] sm:$0xff]
  %v456 = vld [vmem:[%s448 + $0x38] sm:$0xff]
  %v457 = vld [vmem:[%s448 + $0x40] sm:$0xff]
  %v458 = vld [vmem:[%s448 + $0x48] sm:$0xff]
  %v459 = vld [vmem:[%s448 + $0x50] sm:$0xff]
  %v460 = vld [vmem:[%s448 + $0x58] sm:$0xff]
  %v461 = vld [vmem:[%s448 + $0x60] sm:$0xff]
  %v462 = vld [vmem:[%s448 + $0x68] sm:$0xff]
  %v463 = vld [vmem:[%s448 + $0x70] sm:$0xff]
  %v464 = vld [vmem:[%s448 + $0x78] sm:$0xff]
  %v465 = vld [vmem:[%s448 + $0x80] sm:$0xff]
  %v466 = vld [vmem:[%s448 + $0x88] sm:$0xff]
  %v467 = vld [vmem:[%s448 + $0x90] sm:$0xff]
  %v468 = vld [vmem:[%s448 + $0x98] sm:$0xff]
  %v469 = vld [vmem:[%s448 + $0xa0] sm:$0xff]
  %v470 = vld [vmem:[%s448 + $0xa8] sm:$0xff]
  %v471 = vld [vmem:[%s448 + $0xb0] sm:$0xff]
  %v472 = vld [vmem:[%s448 + $0xb8] sm:$0xff]
  %v473 = vld [vmem:[%s448 + $0xc0] sm:$0xff]
  %v474 = vld [vmem:[%s448 + $0xc8] sm:$0xff]
  %v475 = vld [vmem:[%s448 + $0xd0] sm:$0xff]
  %v476 = vld [vmem:[%s448 + $0xd8] sm:$0xff]
  %v477 = vld [vmem:[%s448 + $0xe0] sm:$0xff]
  %v478 = vld [vmem:[%s448 + $0xe8] sm:$0xff]
  %v479 = vld [vmem:[%s448 + $0xf0] sm:$0xff]
  %v480 = vld [vmem:[%s448 + $0xf8] sm:$0xff]
  %v481 = vld [vmem:[%s448 + $0x100] sm:$0xff]
  %v482 = vld [vmem:[%s448 + $0x108] sm:$0xff]
  %v483 = vld [vmem:[%s448 + $0x110] sm:$0xff]
  %v484 = vld [vmem:[%s448 + $0x118] sm:$0xff]
  %v485 = vld [vmem:[%s448 + $0x120] sm:$0xff]
  %v486 = vld [vmem:[%s448 + $0x128] sm:$0xff]
  %v487 = vld [vmem:[%s448 + $0x130] sm:$0xff]
  %v488 = vld [vmem:[%s448 + $0x138] sm:$0xff]
  %v489 = vld [vmem:[%s448 + $0x140] sm:$0xff]
  %v490 = vld [vmem:[%s448 + $0x148] sm:$0xff]
  %v491 = vld [vmem:[%s448 + $0x150] sm:$0xff]
  %v492 = vld [vmem:[%s448 + $0x158] sm:$0xff]
  %v493 = vld [vmem:[%s448 + $0x160] sm:$0xff]
  %v494 = vld [vmem:[%s448 + $0x168] sm:$0xff]
  %v495 = vld [vmem:[%s448 + $0x170] sm:$0xff]
  %v496 = vld [vmem:[%s448 + $0x178] sm:$0xff]
  %v497 = vld [vmem:[%s448 + $0x180] sm:$0xff]
  %498 = vmatprep.subr.mxu0 0.0
  %499 = vmatpush1.msra.mxu0 %v449
  %500 = vmatprep.subr.mxu0 0.0
  %501 = vmatpush1.msra.mxu0 %v450
  %502 = vmatprep.subr.mxu0 0.0
  %503 = vmatpush1.msra.mxu0 %v451
  %504 = vmatprep.subr.mxu0 0.0
  %505 = vmatpush1.msra.mxu0 %v452
  %506 = vmatprep.subr.mxu0 0.0
  %507 = vmatpush1.msra.mxu0 %v453
  %508 = vmatprep.subr.mxu0 0.0
  %509 = vmatpush1.msra.mxu0 %v454
  %510 = vmatprep.subr.mxu0 0.0
  %511 = vmatpush1.msra.mxu0 %v455
  %512 = vmatprep.subr.mxu0 0.0
  %513 = vmatpush1.msra.mxu0 %v456
  %514 = vmatprep.subr.mxu0 0.0
  %515 = vmatpush1.msra.mxu0 %v457
  %516 = vmatprep.subr.mxu0 0.0
  %517 = vmatpush1.msra.mxu0 %v458
  %518 = vmatprep.subr.mxu0 0.0
  %519 = vmatpush1.msra.mxu0 %v459
  %520 = vmatprep.subr.mxu0 0.0
  %521 = vmatpush1.msra.mxu0 %v460
  %522 = vmatprep.subr.mxu0 0.0
  %523 = vmatpush1.msra.mxu0 %v461
  %524 = vmatprep.subr.mxu0 0.0
  %525 = vmatpush1.msra.mxu0 %v462
  %526 = vmatprep.subr.mxu0 0.0
  %527 = vmatpush1.msra.mxu0 %v463
  %528 = vmatprep.subr.mxu0 0.0
  %529 = vmatpush1.msra.mxu0 %v464
  %530 = vmatprep.subr.mxu0 0.0
  %531 = vmatpush1.msra.mxu0 %v465
  %532 = vmatprep.subr.mxu0 0.0
  %533 = vmatpush1.msra.mxu0 %v466
  %534 = vmatprep.subr.mxu0 0.0
  %535 = vmatpush1.msra.mxu0 %v467
  %536 = vmatprep.subr.mxu0 0.0
  %537 = vmatpush1.msra.mxu0 %v468
  %538 = vmatprep.subr.mxu0 0.0
  %539 = vmatpush1.msra.mxu0 %v469
  %540 = vmatprep.subr.mxu0 0.0
  %541 = vmatpush1.msra.mxu0 %v470
  %542 = vmatprep.subr.mxu0 0.0
  %543 = vmatpush1.msra.mxu0 %v471
  %544 = vmatprep.subr.mxu0 0.0
  %545 = vmatpush1.msra.mxu0 %v472
  %546 = vmatprep.subr.mxu0 0.0
  %547 = vmatpush1.msra.mxu0 %v473
  %548 = vmatprep.subr.mxu0 0.0
  %549 = vmatpush1.msra.mxu0 %v474
  %550 = vmatprep.subr.mxu0 0.0
  %551 = vmatpush1.msra.mxu0 %v475
  %552 = vmatprep.subr.mxu0 0.0
  %553 = vmatpush1.msra.mxu0 %v476
  %554 = vmatprep.subr.mxu0 0.0
  %555 = vmatpush1.msra.mxu0 %v477
  %556 = vmatprep.subr.mxu0 0.0
  %557 = vmatpush1.msra.mxu0 %v478
  %558 = vmatprep.subr.mxu0 0.0
  %559 = vmatpush1.msra.mxu0 %v479
  %560 = vmatprep.subr.mxu0 0.0
  %561 = vmatpush1.msra.mxu0 %v480
  %562 = vmatprep.mubr.f32.mxu0 %v251
  %563 = vmatmul.mubr.f32.gmra.mrb[0].mxu0 %v250
  %v564 = vpop.f32.mrb[0].mxu0
  %v565 = vadd.f32 0.0, %v564
  %v566 = vpop.f32.mrb[0].mxu0
  %567 = vdwg.mxu0
  %568 = vmatprep.subr.mxu0 0.0
  %569 = vmatpush1.msra.mxu0 %v481
  %570 = vmatprep.subr.mxu0 0.0
  %571 = vmatpush1.msra.mxu0 %v482
  %572 = vmatprep.subr.mxu0 0.0
  %573 = vmatpush1.msra.mxu0 %v483
  %574 = vmatprep.subr.mxu0 0.0
  %575 = vmatpush1.msra.mxu0 %v484
  %576 = vmatprep.subr.mxu0 0.0
  %577 = vmatpush1.msra.mxu0 %v485
  %578 = vmatprep.subr.mxu0 0.0
  %579 = vmatpush1.msra.mxu0 %v486
  %580 = vmatprep.subr.mxu0 0.0
  %581 = vmatpush1.msra.mxu0 %v487
  %582 = vmatprep.subr.mxu0 0.0
  %583 = vmatpush1.msra.mxu0 %v488
  %584 = vmatprep.subr.mxu0 0.0
  %585 = vmatpush1.msra.mxu0 %v489
  %586 = vmatprep.subr.mxu0 0.0
  %587 = vmatpush1.msra.mxu0 %v490
  %588 = vmatprep.subr.mxu0 0.0
  %589 = vmatpush1.msra.mxu0 %v491
  %590 = vmatprep.subr.mxu0 0.0
  %591 = vmatpush1.msra.mxu0 %v492
  %592 = vmatprep.subr.mxu0 0.0
  %593 = vmatpush1.msra.mxu0 %v493
  %594 = vmatprep.subr.mxu0 0.0
  %595 = vmatpush1.msra.mxu0 %v494
  %596 = vmatprep.subr.mxu0 0.0
  %597 = vmatpush1.msra.mxu0 %v495
  %598 = vmatprep.subr.mxu0 0.0
  %599 = vmatpush1.msra.mxu0 %v496
  %600 = vmatprep.subr.mxu0 0.0
  %601 = vmatpush1.msra.mxu0 %v497
  %602 = vmatprep.subr.mxu0 0.0
  %603 = vmatpush1.msra.mxu0 0.0
  %604 = vmatprep.subr.mxu0 0.0
  %605 = vmatpush1.msra.mxu0 0.0
  %606 = vmatprep.subr.mxu0 0.0
  %607 = vmatpush1.msra.mxu0 0.0
  %608 = vmatprep.subr.mxu0 0.0
  %609 = vmatpush1.msra.mxu0 0.0
  %610 = vmatprep.subr.mxu0 0.0
  %611 = vmatpush1.msra.mxu0 0.0
  %612 = vmatprep.subr.mxu0 0.0
  %613 = vmatpush1.msra.mxu0 0.0
  %614 = vmatprep.subr.mxu0 0.0
  %615 = vmatpush1.msra.mxu0 0.0
  %616 = vmatprep.subr.mxu0 0.0
  %617 = vmatpush1.msra.mxu0 0.0
  %618 = vmatprep.subr.mxu0 0.0
  %619 = vmatpush1.msra.mxu0 0.0
  %620 = vmatprep.subr.mxu0 0.0
  %621 = vmatpush1.msra.mxu0 0.0
  %622 = vmatprep.subr.mxu0 0.0
  %623 = vmatpush1.msra.mxu0 0.0
  %624 = vmatprep.subr.mxu0 0.0
  %625 = vmatpush1.msra.mxu0 0.0
  %626 = vmatprep.subr.mxu0 0.0
  %627 = vmatpush1.msra.mxu0 0.0
  %628 = vmatprep.subr.mxu0 0.0
  %629 = vmatpush1.msra.mxu0 0.0
  %630 = vmatprep.subr.mxu0 0.0
  %631 = vmatpush1.msra.mxu0 0.0
  %632 = vmatprep.mubr.f32.mxu0 %v304
  %633 = vmatmul.mubr.f32.gmra.mrb[0].mxu0 %v252
  %v634 = vpop.f32.mrb[0].mxu0
  %v635 = vadd.f32 %v565, %v634
  %v636 = vpop.f32.mrb[0].mxu0
  %637 = vdwg.mxu0
  %s638 = scalar_lea.vmem %s4, 16
  %v639 = vld [vmem:[%s638] sm:$0xff]
  %v640 = vld [vmem:[%s638 + $0x8] sm:$0xff]
  %v642 = vsel %vm205, %v639, 0
  %v645 = vsel %vm205, %v640, 0
  %647 = vmatprep.subr.mxu0 0.0
  %648 = vmatpush1.msra.mxu0 %v635
  %649 = vmatprep.subr.mxu0 0.0
  %650 = vmatpush1.msra.mxu0 0.0
  %651 = vmatprep.subr.mxu0 0.0
  %652 = vmatpush1.msra.mxu0 0.0
  %653 = vmatprep.subr.mxu0 0.0
  %654 = vmatpush1.msra.mxu0 0.0
  %655 = vmatprep.subr.mxu0 0.0
  %656 = vmatpush1.msra.mxu0 0.0
  %657 = vmatprep.subr.mxu0 0.0
  %658 = vmatpush1.msra.mxu0 0.0
  %659 = vmatprep.subr.mxu0 0.0
  %660 = vmatpush1.msra.mxu0 0.0
  %661 = vmatprep.subr.mxu0 0.0
  %662 = vmatpush1.msra.mxu0 0.0
  %663 = vmatprep.subr.mxu0 0.0
  %664 = vmatpush1.msra.mxu0 0.0
  %665 = vmatprep.subr.mxu0 0.0
  %666 = vmatpush1.msra.mxu0 0.0
  %667 = vmatprep.subr.mxu0 0.0
  %668 = vmatpush1.msra.mxu0 0.0
  %669 = vmatprep.subr.mxu0 0.0
  %670 = vmatpush1.msra.mxu0 0.0
  %671 = vmatprep.subr.mxu0 0.0
  %672 = vmatpush1.msra.mxu0 0.0
  %673 = vmatprep.subr.mxu0 0.0
  %674 = vmatpush1.msra.mxu0 0.0
  %675 = vmatprep.subr.mxu0 0.0
  %676 = vmatpush1.msra.mxu0 0.0
  %677 = vmatprep.subr.mxu0 0.0
  %678 = vmatpush1.msra.mxu0 0.0
  %679 = vmatprep.subr.mxu0 0.0
  %680 = vmatpush1.msra.mxu0 0.0
  %681 = vmatprep.subr.mxu0 0.0
  %682 = vmatpush1.msra.mxu0 0.0
  %683 = vmatprep.subr.mxu0 0.0
  %684 = vmatpush1.msra.mxu0 0.0
  %685 = vmatprep.subr.mxu0 0.0
  %686 = vmatpush1.msra.mxu0 0.0
  %687 = vmatprep.subr.mxu0 0.0
  %688 = vmatpush1.msra.mxu0 0.0
  %689 = vmatprep.subr.mxu0 0.0
  %690 = vmatpush1.msra.mxu0 0.0
  %691 = vmatprep.subr.mxu0 0.0
  %692 = vmatpush1.msra.mxu0 0.0
  %693 = vmatprep.subr.mxu0 0.0
  %694 = vmatpush1.msra.mxu0 0.0
  %695 = vmatprep.subr.mxu0 0.0
  %696 = vmatpush1.msra.mxu0 0.0
  %697 = vmatprep.subr.mxu0 0.0
  %698 = vmatpush1.msra.mxu0 0.0
  %699 = vmatprep.subr.mxu0 0.0
  %700 = vmatpush1.msra.mxu0 0.0
  %701 = vmatprep.subr.mxu0 0.0
  %702 = vmatpush1.msra.mxu0 0.0
  %703 = vmatprep.subr.mxu0 0.0
  %704 = vmatpush1.msra.mxu0 0.0
  %705 = vmatprep.subr.mxu0 0.0
  %706 = vmatpush1.msra.mxu0 0.0
  %707 = vmatprep.subr.mxu0 0.0
  %708 = vmatpush1.msra.mxu0 0.0
  %709 = vmatprep.subr.mxu0 0.0
  %710 = vmatpush1.msra.mxu0 0.0
  %711 = vmatprep.mubr.f32.mxu0 0.0
  %712 = vmatmul.mubr.f32.gmra.mrb[0].mxu0 %v642
  %v713 = vpop.f32.mrb[0].mxu0
  %v714 = vadd.f32 0.0, %v713
  %v715 = vpop.f32.mrb[0].mxu0
  %716 = vmatprep.mubr.f32.mxu0 0.0
  %717 = vmatmul.mubr.f32.gmra.mrb[0].mxu0 %v645
  %v718 = vpop.f32.mrb[0].mxu0
  %v719 = vadd.f32 0.0, %v718
  %v720 = vpop.f32.mrb[0].mxu0
  %721 = vdwg.mxu0
  %v723 = vsel %vm205, %v446, 0
  %v726 = vsel %vm205, %v447, 0
  %728 = vmatprep.subr.mxu0 0.0
  %729 = vmatpush1.msra.mxu0 %v443
  %730 = vmatprep.subr.mxu0 0.0
  %731 = vmatpush1.msra.mxu0 0.0
  %732 = vmatprep.subr.mxu0 0.0
  %733 = vmatpush1.msra.mxu0 0.0
  %734 = vmatprep.subr.mxu0 0.0
  %735 = vmatpush1.msra.mxu0 0.0
  %736 = vmatprep.subr.mxu0 0.0
  %737 = vmatpush1.msra.mxu0 0.0
  %738 = vmatprep.subr.mxu0 0.0
  %739 = vmatpush1.msra.mxu0 0.0
  %740 = vmatprep.subr.mxu0 0.0
  %741 = vmatpush1.msra.mxu0 0.0
  %742 = vmatprep.subr.mxu0 0.0
  %743 = vmatpush1.msra.mxu0 0.0
  %744 = vmatprep.subr.mxu0 0.0
  %745 = vmatpush1.msra.mxu0 0.0
  %746 = vmatprep.subr.mxu0 0.0
  %747 = vmatpush1.msra.mxu0 0.0
  %748 = vmatprep.subr.mxu0 0.0
  %749 = vmatpush1.msra.mxu0 0.0
  %750 = vmatprep.subr.mxu0 0.0
  %751 = vmatpush1.msra.mxu0 0.0
  %752 = vmatprep.subr.mxu0 0.0
  %753 = vmatpush1.msra.mxu0 0.0
  %754 = vmatprep.subr.mxu0 0.0
  %755 = vmatpush1.msra.mxu0 0.0
  %756 = vmatprep.subr.mxu0 0.0
  %757 = vmatpush1.msra.mxu0 0.0
  %758 = vmatprep.subr.mxu0 0.0
  %759 = vmatpush1.msra.mxu0 0.0
  %760 = vmatprep.subr.mxu0 0.0
  %761 = vmatpush1.msra.mxu0 0.0
  %762 = vmatprep.subr.mxu0 0.0
  %763 = vmatpush1.msra.mxu0 0.0
  %764 = vmatprep.subr.mxu0 0.0
  %765 = vmatpush1.msra.mxu0 0.0
  %766 = vmatprep.subr.mxu0 0.0
  %767 = vmatpush1.msra.mxu0 0.0
  %768 = vmatprep.subr.mxu0 0.0
  %769 = vmatpush1.msra.mxu0 0.0
  %770 = vmatprep.subr.mxu0 0.0
  %771 = vmatpush1.msra.mxu0 0.0
  %772 = vmatprep.subr.mxu0 0.0
  %773 = vmatpush1.msra.mxu0 0.0
  %774 = vmatprep.subr.mxu0 0.0
  %775 = vmatpush1.msra.mxu0 0.0
  %776 = vmatprep.subr.mxu0 0.0
  %777 = vmatpush1.msra.mxu0 0.0
  %778 = vmatprep.subr.mxu0 0.0
  %779 = vmatpush1.msra.mxu0 0.0
  %780 = vmatprep.subr.mxu0 0.0
  %781 = vmatpush1.msra.mxu0 0.0
  %782 = vmatprep.subr.mxu0 0.0
  %783 = vmatpush1.msra.mxu0 0.0
  %784 = vmatprep.subr.mxu0 0.0
  %785 = vmatpush1.msra.mxu0 0.0
  %786 = vmatprep.subr.mxu0 0.0
  %787 = vmatpush1.msra.mxu0 0.0
  %788 = vmatprep.subr.mxu0 0.0
  %789 = vmatpush1.msra.mxu0 0.0
  %790 = vmatprep.subr.mxu0 0.0
  %791 = vmatpush1.msra.mxu0 0.0
  %792 = vmatprep.mubr.f32.mxu0 0.0
  %793 = vmatmul.mubr.f32.gmra.mrb[0].mxu0 %v723
  %v794 = vpop.f32.mrb[0].mxu0
  %v795 = vadd.f32 %v714, %v794
  %v796 = vpop.f32.mrb[0].mxu0
  %797 = vmatprep.mubr.f32.mxu0 0.0
  %798 = vmatmul.mubr.f32.gmra.mrb[0].mxu0 %v726
  %v799 = vpop.f32.mrb[0].mxu0
  %v800 = vadd.f32 %v719, %v799
  %v801 = vpop.f32.mrb[0].mxu0
  %802 = vdwg.mxu0
  %s803 = scalar_lea.vmem %s3, 784
  %v804 = vld [vmem:[%s803] sm:$0xff]
  %v805 = vld [vmem:[%s803 + $0x8] sm:$0xff]
  %v806 = vld [vmem:[%s803 + $0x10] sm:$0xff]
  %v807 = vld [vmem:[%s803 + $0x18] sm:$0xff]
  %v808 = vld [vmem:[%s803 + $0x20] sm:$0xff]
  %v809 = vld [vmem:[%s803 + $0x28] sm:$0xff]
  %v810 = vld [vmem:[%s803 + $0x30] sm:$0xff]
  %v811 = vld [vmem:[%s803 + $0x38] sm:$0xff]
  %v812 = vld [vmem:[%s803 + $0x40] sm:$0xff]
  %v813 = vld [vmem:[%s803 + $0x48] sm:$0xff]
  %v814 = vld [vmem:[%s803 + $0x50] sm:$0xff]
  %v815 = vld [vmem:[%s803 + $0x58] sm:$0xff]
  %v816 = vld [vmem:[%s803 + $0x60] sm:$0xff]
  %v817 = vld [vmem:[%s803 + $0x68] sm:$0xff]
  %v818 = vld [vmem:[%s803 + $0x70] sm:$0xff]
  %v819 = vld [vmem:[%s803 + $0x78] sm:$0xff]
  %v820 = vld [vmem:[%s803 + $0x80] sm:$0xff]
  %v821 = vld [vmem:[%s803 + $0x88] sm:$0xff]
  %v822 = vld [vmem:[%s803 + $0x90] sm:$0xff]
  %v823 = vld [vmem:[%s803 + $0x98] sm:$0xff]
  %v824 = vld [vmem:[%s803 + $0xa0] sm:$0xff]
  %v825 = vld [vmem:[%s803 + $0xa8] sm:$0xff]
  %v826 = vld [vmem:[%s803 + $0xb0] sm:$0xff]
  %v827 = vld [vmem:[%s803 + $0xb8] sm:$0xff]
  %v828 = vld [vmem:[%s803 + $0xc0] sm:$0xff]
  %v829 = vld [vmem:[%s803 + $0xc8] sm:$0xff]
  %v830 = vld [vmem:[%s803 + $0xd0] sm:$0xff]
  %v831 = vld [vmem:[%s803 + $0xd8] sm:$0xff]
  %v832 = vld [vmem:[%s803 + $0xe0] sm:$0xff]
  %v833 = vld [vmem:[%s803 + $0xe8] sm:$0xff]
  %v834 = vld [vmem:[%s803 + $0xf0] sm:$0xff]
  %v835 = vld [vmem:[%s803 + $0xf8] sm:$0xff]
  %v836 = vld [vmem:[%s803 + $0x100] sm:$0xff]
  %v837 = vld [vmem:[%s803 + $0x108] sm:$0xff]
  %v838 = vld [vmem:[%s803 + $0x110] sm:$0xff]
  %v839 = vld [vmem:[%s803 + $0x118] sm:$0xff]
  %v840 = vld [vmem:[%s803 + $0x120] sm:$0xff]
  %v841 = vld [vmem:[%s803 + $0x128] sm:$0xff]
  %v842 = vld [vmem:[%s803 + $0x130] sm:$0xff]
  %v843 = vld [vmem:[%s803 + $0x138] sm:$0xff]
  %v844 = vld [vmem:[%s803 + $0x140] sm:$0xff]
  %v845 = vld [vmem:[%s803 + $0x148] sm:$0xff]
  %v846 = vld [vmem:[%s803 + $0x150] sm:$0xff]
  %v847 = vld [vmem:[%s803 + $0x158] sm:$0xff]
  %v848 = vld [vmem:[%s803 + $0x160] sm:$0xff]
  %v849 = vld [vmem:[%s803 + $0x168] sm:$0xff]
  %v850 = vld [vmem:[%s803 + $0x170] sm:$0xff]
  %v851 = vld [vmem:[%s803 + $0x178] sm:$0xff]
  %v852 = vld [vmem:[%s803 + $0x180] sm:$0xff]
  %853 = vmatprep.subr.mxu0 0.0
  %854 = vmatpush1.msra.mxu0 %v804
  %855 = vmatprep.subr.mxu0 0.0
  %856 = vmatpush1.msra.mxu0 %v805
  %857 = vmatprep.subr.mxu0 0.0
  %858 = vmatpush1.msra.mxu0 %v806
  %859 = vmatprep.subr.mxu0 0.0
  %860 = vmatpush1.msra.mxu0 %v807
  %861 = vmatprep.subr.mxu0 0.0
  %862 = vmatpush1.msra.mxu0 %v808
  %863 = vmatprep.subr.mxu0 0.0
  %864 = vmatpush1.msra.mxu0 %v809
  %865 = vmatprep.subr.mxu0 0.0
  %866 = vmatpush1.msra.mxu0 %v810
  %867 = vmatprep.subr.mxu0 0.0
  %868 = vmatpush1.msra.mxu0 %v811
  %869 = vmatprep.subr.mxu0 0.0
  %870 = vmatpush1.msra.mxu0 %v812
  %871 = vmatprep.subr.mxu0 0.0
  %872 = vmatpush1.msra.mxu0 %v813
  %873 = vmatprep.subr.mxu0 0.0
  %874 = vmatpush1.msra.mxu0 %v814
  %875 = vmatprep.subr.mxu0 0.0
  %876 = vmatpush1.msra.mxu0 %v815
  %877 = vmatprep.subr.mxu0 0.0
  %878 = vmatpush1.msra.mxu0 %v816
  %879 = vmatprep.subr.mxu0 0.0
  %880 = vmatpush1.msra.mxu0 %v817
  %881 = vmatprep.subr.mxu0 0.0
  %882 = vmatpush1.msra.mxu0 %v818
  %883 = vmatprep.subr.mxu0 0.0
  %884 = vmatpush1.msra.mxu0 %v819
  %885 = vmatprep.subr.mxu0 0.0
  %886 = vmatpush1.msra.mxu0 %v820
  %887 = vmatprep.subr.mxu0 0.0
  %888 = vmatpush1.msra.mxu0 %v821
  %889 = vmatprep.subr.mxu0 0.0
  %890 = vmatpush1.msra.mxu0 %v822
  %891 = vmatprep.subr.mxu0 0.0
  %892 = vmatpush1.msra.mxu0 %v823
  %893 = vmatprep.subr.mxu0 0.0
  %894 = vmatpush1.msra.mxu0 %v824
  %895 = vmatprep.subr.mxu0 0.0
  %896 = vmatpush1.msra.mxu0 %v825
  %897 = vmatprep.subr.mxu0 0.0
  %898 = vmatpush1.msra.mxu0 %v826
  %899 = vmatprep.subr.mxu0 0.0
  %900 = vmatpush1.msra.mxu0 %v827
  %901 = vmatprep.subr.mxu0 0.0
  %902 = vmatpush1.msra.mxu0 %v828
  %903 = vmatprep.subr.mxu0 0.0
  %904 = vmatpush1.msra.mxu0 %v829
  %905 = vmatprep.subr.mxu0 0.0
  %906 = vmatpush1.msra.mxu0 %v830
  %907 = vmatprep.subr.mxu0 0.0
  %908 = vmatpush1.msra.mxu0 %v831
  %909 = vmatprep.subr.mxu0 0.0
  %910 = vmatpush1.msra.mxu0 %v832
  %911 = vmatprep.subr.mxu0 0.0
  %912 = vmatpush1.msra.mxu0 %v833
  %913 = vmatprep.subr.mxu0 0.0
  %914 = vmatpush1.msra.mxu0 %v834
  %915 = vmatprep.subr.mxu0 0.0
  %916 = vmatpush1.msra.mxu0 %v835
  %917 = vmatprep.mubr.f32.mxu0 %v251
  %918 = vmatmul.mubr.f32.gmra.mrb[0].mxu0 %v250
  %v919 = vpop.f32.mrb[0].mxu0
  %v920 = vadd.f32 0.0, %v919
  %v921 = vpop.f32.mrb[0].mxu0
  %922 = vdwg.mxu0
  %923 = vmatprep.subr.mxu0 0.0
  %924 = vmatpush1.msra.mxu0 %v836
  %925 = vmatprep.subr.mxu0 0.0
  %926 = vmatpush1.msra.mxu0 %v837
  %927 = vmatprep.subr.mxu0 0.0
  %928 = vmatpush1.msra.mxu0 %v838
  %929 = vmatprep.subr.mxu0 0.0
  %930 = vmatpush1.msra.mxu0 %v839
  %931 = vmatprep.subr.mxu0 0.0
  %932 = vmatpush1.msra.mxu0 %v840
  %933 = vmatprep.subr.mxu0 0.0
  %934 = vmatpush1.msra.mxu0 %v841
  %935 = vmatprep.subr.mxu0 0.0
  %936 = vmatpush1.msra.mxu0 %v842
  %937 = vmatprep.subr.mxu0 0.0
  %938 = vmatpush1.msra.mxu0 %v843
  %939 = vmatprep.subr.mxu0 0.0
  %940 = vmatpush1.msra.mxu0 %v844
  %941 = vmatprep.subr.mxu0 0.0
  %942 = vmatpush1.msra.mxu0 %v845
  %943 = vmatprep.subr.mxu0 0.0
  %944 = vmatpush1.msra.mxu0 %v846
  %945 = vmatprep.subr.mxu0 0.0
  %946 = vmatpush1.msra.mxu0 %v847
  %947 = vmatprep.subr.mxu0 0.0
  %948 = vmatpush1.msra.mxu0 %v848
  %949 = vmatprep.subr.mxu0 0.0
  %950 = vmatpush1.msra.mxu0 %v849
  %951 = vmatprep.subr.mxu0 0.0
  %952 = vmatpush1.msra.mxu0 %v850
  %953 = vmatprep.subr.mxu0 0.0
  %954 = vmatpush1.msra.mxu0 %v851
  %955 = vmatprep.subr.mxu0 0.0
  %956 = vmatpush1.msra.mxu0 %v852
  %957 = vmatprep.subr.mxu0 0.0
  %958 = vmatpush1.msra.mxu0 0.0
  %959 = vmatprep.subr.mxu0 0.0
  %960 = vmatpush1.msra.mxu0 0.0
  %961 = vmatprep.subr.mxu0 0.0
  %962 = vmatpush1.msra.mxu0 0.0
  %963 = vmatprep.subr.mxu0 0.0
  %964 = vmatpush1.msra.mxu0 0.0
  %965 = vmatprep.subr.mxu0 0.0
  %966 = vmatpush1.msra.mxu0 0.0
  %967 = vmatprep.subr.mxu0 0.0
  %968 = vmatpush1.msra.mxu0 0.0
  %969 = vmatprep.subr.mxu0 0.0
  %970 = vmatpush1.msra.mxu0 0.0
  %971 = vmatprep.subr.mxu0 0.0
  %972 = vmatpush1.msra.mxu0 0.0
  %973 = vmatprep.subr.mxu0 0.0
  %974 = vmatpush1.msra.mxu0 0.0
  %975 = vmatprep.subr.mxu0 0.0
  %976 = vmatpush1.msra.mxu0 0.0
  %977 = vmatprep.subr.mxu0 0.0
  %978 = vmatpush1.msra.mxu0 0.0
  %979 = vmatprep.subr.mxu0 0.0
  %980 = vmatpush1.msra.mxu0 0.0
  %981 = vmatprep.subr.mxu0 0.0
  %982 = vmatpush1.msra.mxu0 0.0
  %983 = vmatprep.subr.mxu0 0.0
  %984 = vmatpush1.msra.mxu0 0.0
  %985 = vmatprep.subr.mxu0 0.0
  %986 = vmatpush1.msra.mxu0 0.0
  %987 = vmatprep.mubr.f32.mxu0 %v304
  %988 = vmatmul.mubr.f32.gmra.mrb[0].mxu0 %v252
  %v989 = vpop.f32.mrb[0].mxu0
  %v990 = vadd.f32 %v920, %v989
  %v991 = vpop.f32.mrb[0].mxu0
  %992 = vdwg.mxu0
  %s993 = scalar_lea.vmem %s4, 32
  %v994 = vld [vmem:[%s993] sm:$0xff]
  %v995 = vld [vmem:[%s993 + $0x8] sm:$0xff]
  %v997 = vsel %vm205, %v994, 0
  %v1000 = vsel %vm205, %v995, 0
  %1002 = vmatprep.subr.mxu0 0.0
  %1003 = vmatpush1.msra.mxu0 %v990
  %1004 = vmatprep.subr.mxu0 0.0
  %1005 = vmatpush1.msra.mxu0 0.0
  %1006 = vmatprep.subr.mxu0 0.0
  %1007 = vmatpush1.msra.mxu0 0.0
  %1008 = vmatprep.subr.mxu0 0.0
  %1009 = vmatpush1.msra.mxu0 0.0
  %1010 = vmatprep.subr.mxu0 0.0
  %1011 = vmatpush1.msra.mxu0 0.0
  %1012 = vmatprep.subr.mxu0 0.0
  %1013 = vmatpush1.msra.mxu0 0.0
  %1014 = vmatprep.subr.mxu0 0.0
  %1015 = vmatpush1.msra.mxu0 0.0
  %1016 = vmatprep.subr.mxu0 0.0
  %1017 = vmatpush1.msra.mxu0 0.0
  %1018 = vmatprep.subr.mxu0 0.0
  %1019 = vmatpush1.msra.mxu0 0.0
  %1020 = vmatprep.subr.mxu0 0.0
  %1021 = vmatpush1.msra.mxu0 0.0
  %1022 = vmatprep.subr.mxu0 0.0
  %1023 = vmatpush1.msra.mxu0 0.0
  %1024 = vmatprep.subr.mxu0 0.0
  %1025 = vmatpush1.msra.mxu0 0.0
  %1026 = vmatprep.subr.mxu0 0.0
  %1027 = vmatpush1.msra.mxu0 0.0
  %1028 = vmatprep.subr.mxu0 0.0
  %1029 = vmatpush1.msra.mxu0 0.0
  %1030 = vmatprep.subr.mxu0 0.0
  %1031 = vmatpush1.msra.mxu0 0.0
  %1032 = vmatprep.subr.mxu0 0.0
  %1033 = vmatpush1.msra.mxu0 0.0
  %1034 = vmatprep.subr.mxu0 0.0
  %1035 = vmatpush1.msra.mxu0 0.0
  %1036 = vmatprep.subr.mxu0 0.0
  %1037 = vmatpush1.msra.mxu0 0.0
  %1038 = vmatprep.subr.mxu0 0.0
  %1039 = vmatpush1.msra.mxu0 0.0
  %1040 = vmatprep.subr.mxu0 0.0
  %1041 = vmatpush1.msra.mxu0 0.0
  %1042 = vmatprep.subr.mxu0 0.0
  %1043 = vmatpush1.msra.mxu0 0.0
  %1044 = vmatprep.subr.mxu0 0.0
  %1045 = vmatpush1.msra.mxu0 0.0
  %1046 = vmatprep.subr.mxu0 0.0
  %1047 = vmatpush1.msra.mxu0 0.0
  %1048 = vmatprep.subr.mxu0 0.0
  %1049 = vmatpush1.msra.mxu0 0.0
  %1050 = vmatprep.subr.mxu0 0.0
  %1051 = vmatpush1.msra.mxu0 0.0
  %1052 = vmatprep.subr.mxu0 0.0
  %1053 = vmatpush1.msra.mxu0 0.0
  %1054 = vmatprep.subr.mxu0 0.0
  %1055 = vmatpush1.msra.mxu0 0.0
  %1056 = vmatprep.subr.mxu0 0.0
  %1057 = vmatpush1.msra.mxu0 0.0
  %1058 = vmatprep.subr.mxu0 0.0
  %1059 = vmatpush1.msra.mxu0 0.0
  %1060 = vmatprep.subr.mxu0 0.0
  %1061 = vmatpush1.msra.mxu0 0.0
  %1062 = vmatprep.subr.mxu0 0.0
  %1063 = vmatpush1.msra.mxu0 0.0
  %1064 = vmatprep.subr.mxu0 0.0
  %1065 = vmatpush1.msra.mxu0 0.0
  %1066 = vmatprep.mubr.f32.mxu0 0.0
  %1067 = vmatmul.mubr.f32.gmra.mrb[0].mxu0 %v997
  %v1068 = vpop.f32.mrb[0].mxu0
  %v1069 = vadd.f32 0.0, %v1068
  %v1070 = vpop.f32.mrb[0].mxu0
  %1071 = vmatprep.mubr.f32.mxu0 0.0
  %1072 = vmatmul.mubr.f32.gmra.mrb[0].mxu0 %v1000
  %v1073 = vpop.f32.mrb[0].mxu0
  %v1074 = vadd.f32 0.0, %v1073
  %v1075 = vpop.f32.mrb[0].mxu0
  %1076 = vdwg.mxu0
  %v1077 = vadd.f32 %v795, %v1069
  %v1078 = vadd.f32 %v800, %v1074
  %s1079 = scalar_lea.vmem %s3, 1176
  %v1080 = vld [vmem:[%s1079] sm:$0xff]
  %v1081 = vld [vmem:[%s1079 + $0x8] sm:$0xff]
  %v1082 = vld [vmem:[%s1079 + $0x10] sm:$0xff]
  %v1083 = vld [vmem:[%s1079 + $0x18] sm:$0xff]
  %v1084 = vld [vmem:[%s1079 + $0x20] sm:$0xff]
  %v1085 = vld [vmem:[%s1079 + $0x28] sm:$0xff]
  %v1086 = vld [vmem:[%s1079 + $0x30] sm:$0xff]
  %v1087 = vld [vmem:[%s1079 + $0x38] sm:$0xff]
  %v1088 = vld [vmem:[%s1079 + $0x40] sm:$0xff]
  %v1089 = vld [vmem:[%s1079 + $0x48] sm:$0xff]
  %v1090 = vld [vmem:[%s1079 + $0x50] sm:$0xff]
  %v1091 = vld [vmem:[%s1079 + $0x58] sm:$0xff]
  %v1092 = vld [vmem:[%s1079 + $0x60] sm:$0xff]
  %v1093 = vld [vmem:[%s1079 + $0x68] sm:$0xff]
  %v1094 = vld [vmem:[%s1079 + $0x70] sm:$0xff]
  %v1095 = vld [vmem:[%s1079 + $0x78] sm:$0xff]
  %v1096 = vld [vmem:[%s1079 + $0x80] sm:$0xff]
  %v1097 = vld [vmem:[%s1079 + $0x88] sm:$0xff]
  %v1098 = vld [vmem:[%s1079 + $0x90] sm:$0xff]
  %v1099 = vld [vmem:[%s1079 + $0x98] sm:$0xff]
  %v1100 = vld [vmem:[%s1079 + $0xa0] sm:$0xff]
  %v1101 = vld [vmem:[%s1079 + $0xa8] sm:$0xff]
  %v1102 = vld [vmem:[%s1079 + $0xb0] sm:$0xff]
  %v1103 = vld [vmem:[%s1079 + $0xb8] sm:$0xff]
  %v1104 = vld [vmem:[%s1079 + $0xc0] sm:$0xff]
  %v1105 = vld [vmem:[%s1079 + $0xc8] sm:$0xff]
  %v1106 = vld [vmem:[%s1079 + $0xd0] sm:$0xff]
  %v1107 = vld [vmem:[%s1079 + $0xd8] sm:$0xff]
  %v1108 = vld [vmem:[%s1079 + $0xe0] sm:$0xff]
  %v1109 = vld [vmem:[%s1079 + $0xe8] sm:$0xff]
  %v1110 = vld [vmem:[%s1079 + $0xf0] sm:$0xff]
  %v1111 = vld [vmem:[%s1079 + $0xf8] sm:$0xff]
  %v1112 = vld [vmem:[%s1079 + $0x100] sm:$0xff]
  %v1113 = vld [vmem:[%s1079 + $0x108] sm:$0xff]
  %v1114 = vld [vmem:[%s1079 + $0x110] sm:$0xff]
  %v1115 = vld [vmem:[%s1079 + $0x118] sm:$0xff]
  %v1116 = vld [vmem:[%s1079 + $0x120] sm:$0xff]
  %v1117 = vld [vmem:[%s1079 + $0x128] sm:$0xff]
  %v1118 = vld [vmem:[%s1079 + $0x130] sm:$0xff]
  %v1119 = vld [vmem:[%s1079 + $0x138] sm:$0xff]
  %v1120 = vld [vmem:[%s1079 + $0x140] sm:$0xff]
  %v1121 = vld [vmem:[%s1079 + $0x148] sm:$0xff]
  %v1122 = vld [vmem:[%s1079 + $0x150] sm:$0xff]
  %v1123 = vld [vmem:[%s1079 + $0x158] sm:$0xff]
  %v1124 = vld [vmem:[%s1079 + $0x160] sm:$0xff]
  %v1125 = vld [vmem:[%s1079 + $0x168] sm:$0xff]
  %v1126 = vld [vmem:[%s1079 + $0x170] sm:$0xff]
  %v1127 = vld [vmem:[%s1079 + $0x178] sm:$0xff]
  %v1128 = vld [vmem:[%s1079 + $0x180] sm:$0xff]
  %1129 = vmatprep.subr.mxu0 0.0
  %1130 = vmatpush1.msra.mxu0 %v1080
  %1131 = vmatprep.subr.mxu0 0.0
  %1132 = vmatpush1.msra.mxu0 %v1081
  %1133 = vmatprep.subr.mxu0 0.0
  %1134 = vmatpush1.msra.mxu0 %v1082
  %1135 = vmatprep.subr.mxu0 0.0
  %1136 = vmatpush1.msra.mxu0 %v1083
  %1137 = vmatprep.subr.mxu0 0.0
  %1138 = vmatpush1.msra.mxu0 %v1084
  %1139 = vmatprep.subr.mxu0 0.0
  %1140 = vmatpush1.msra.mxu0 %v1085
  %1141 = vmatprep.subr.mxu0 0.0
  %1142 = vmatpush1.msra.mxu0 %v1086
  %1143 = vmatprep.subr.mxu0 0.0
  %1144 = vmatpush1.msra.mxu0 %v1087
  %1145 = vmatprep.subr.mxu0 0.0
  %1146 = vmatpush1.msra.mxu0 %v1088
  %1147 = vmatprep.subr.mxu0 0.0
  %1148 = vmatpush1.msra.mxu0 %v1089
  %1149 = vmatprep.subr.mxu0 0.0
  %1150 = vmatpush1.msra.mxu0 %v1090
  %1151 = vmatprep.subr.mxu0 0.0
  %1152 = vmatpush1.msra.mxu0 %v1091
  %1153 = vmatprep.subr.mxu0 0.0
  %1154 = vmatpush1.msra.mxu0 %v1092
  %1155 = vmatprep.subr.mxu0 0.0
  %1156 = vmatpush1.msra.mxu0 %v1093
  %1157 = vmatprep.subr.mxu0 0.0
  %1158 = vmatpush1.msra.mxu0 %v1094
  %1159 = vmatprep.subr.mxu0 0.0
  %1160 = vmatpush1.msra.mxu0 %v1095
  %1161 = vmatprep.subr.mxu0 0.0
  %1162 = vmatpush1.msra.mxu0 %v1096
  %1163 = vmatprep.subr.mxu0 0.0
  %1164 = vmatpush1.msra.mxu0 %v1097
  %1165 = vmatprep.subr.mxu0 0.0
  %1166 = vmatpush1.msra.mxu0 %v1098
  %1167 = vmatprep.subr.mxu0 0.0
  %1168 = vmatpush1.msra.mxu0 %v1099
  %1169 = vmatprep.subr.mxu0 0.0
  %1170 = vmatpush1.msra.mxu0 %v1100
  %1171 = vmatprep.subr.mxu0 0.0
  %1172 = vmatpush1.msra.mxu0 %v1101
  %1173 = vmatprep.subr.mxu0 0.0
  %1174 = vmatpush1.msra.mxu0 %v1102
  %1175 = vmatprep.subr.mxu0 0.0
  %1176 = vmatpush1.msra.mxu0 %v1103
  %1177 = vmatprep.subr.mxu0 0.0
  %1178 = vmatpush1.msra.mxu0 %v1104
  %1179 = vmatprep.subr.mxu0 0.0
  %1180 = vmatpush1.msra.mxu0 %v1105
  %1181 = vmatprep.subr.mxu0 0.0
  %1182 = vmatpush1.msra.mxu0 %v1106
  %1183 = vmatprep.subr.mxu0 0.0
  %1184 = vmatpush1.msra.mxu0 %v1107
  %1185 = vmatprep.subr.mxu0 0.0
  %1186 = vmatpush1.msra.mxu0 %v1108
  %1187 = vmatprep.subr.mxu0 0.0
  %1188 = vmatpush1.msra.mxu0 %v1109
  %1189 = vmatprep.subr.mxu0 0.0
  %1190 = vmatpush1.msra.mxu0 %v1110
  %1191 = vmatprep.subr.mxu0 0.0
  %1192 = vmatpush1.msra.mxu0 %v1111
  %1193 = vmatprep.mubr.f32.mxu0 %v251
  %1194 = vmatmul.mubr.f32.gmra.mrb[0].mxu0 %v250
  %v1195 = vpop.f32.mrb[0].mxu0
  %v1196 = vadd.f32 0.0, %v1195
  %v1197 = vpop.f32.mrb[0].mxu0
  %1198 = vdwg.mxu0
  %1199 = vmatprep.subr.mxu0 0.0
  %1200 = vmatpush1.msra.mxu0 %v1112
  %1201 = vmatprep.subr.mxu0 0.0
  %1202 = vmatpush1.msra.mxu0 %v1113
  %1203 = vmatprep.subr.mxu0 0.0
  %1204 = vmatpush1.msra.mxu0 %v1114
  %1205 = vmatprep.subr.mxu0 0.0
  %1206 = vmatpush1.msra.mxu0 %v1115
  %1207 = vmatprep.subr.mxu0 0.0
  %1208 = vmatpush1.msra.mxu0 %v1116
  %1209 = vmatprep.subr.mxu0 0.0
  %1210 = vmatpush1.msra.mxu0 %v1117
  %1211 = vmatprep.subr.mxu0 0.0
  %1212 = vmatpush1.msra.mxu0 %v1118
  %1213 = vmatprep.subr.mxu0 0.0
  %1214 = vmatpush1.msra.mxu0 %v1119
  %1215 = vmatprep.subr.mxu0 0.0
  %1216 = vmatpush1.msra.mxu0 %v1120
  %1217 = vmatprep.subr.mxu0 0.0
  %1218 = vmatpush1.msra.mxu0 %v1121
  %1219 = vmatprep.subr.mxu0 0.0
  %1220 = vmatpush1.msra.mxu0 %v1122
  %1221 = vmatprep.subr.mxu0 0.0
  %1222 = vmatpush1.msra.mxu0 %v1123
  %1223 = vmatprep.subr.mxu0 0.0
  %1224 = vmatpush1.msra.mxu0 %v1124
  %1225 = vmatprep.subr.mxu0 0.0
  %1226 = vmatpush1.msra.mxu0 %v1125
  %1227 = vmatprep.subr.mxu0 0.0
  %1228 = vmatpush1.msra.mxu0 %v1126
  %1229 = vmatprep.subr.mxu0 0.0
  %1230 = vmatpush1.msra.mxu0 %v1127
  %1231 = vmatprep.subr.mxu0 0.0
  %1232 = vmatpush1.msra.mxu0 %v1128
  %1233 = vmatprep.subr.mxu0 0.0
  %1234 = vmatpush1.msra.mxu0 0.0
  %1235 = vmatprep.subr.mxu0 0.0
  %1236 = vmatpush1.msra.mxu0 0.0
  %1237 = vmatprep.subr.mxu0 0.0
  %1238 = vmatpush1.msra.mxu0 0.0
  %1239 = vmatprep.subr.mxu0 0.0
  %1240 = vmatpush1.msra.mxu0 0.0
  %1241 = vmatprep.subr.mxu0 0.0
  %1242 = vmatpush1.msra.mxu0 0.0
  %1243 = vmatprep.subr.mxu0 0.0
  %1244 = vmatpush1.msra.mxu0 0.0
  %1245 = vmatprep.subr.mxu0 0.0
  %1246 = vmatpush1.msra.mxu0 0.0
  %1247 = vmatprep.subr.mxu0 0.0
  %1248 = vmatpush1.msra.mxu0 0.0
  %1249 = vmatprep.subr.mxu0 0.0
  %1250 = vmatpush1.msra.mxu0 0.0
  %1251 = vmatprep.subr.mxu0 0.0
  %1252 = vmatpush1.msra.mxu0 0.0
  %1253 = vmatprep.subr.mxu0 0.0
  %1254 = vmatpush1.msra.mxu0 0.0
  %1255 = vmatprep.subr.mxu0 0.0
  %1256 = vmatpush1.msra.mxu0 0.0
  %1257 = vmatprep.subr.mxu0 0.0
  %1258 = vmatpush1.msra.mxu0 0.0
  %1259 = vmatprep.subr.mxu0 0.0
  %1260 = vmatpush1.msra.mxu0 0.0
  %1261 = vmatprep.subr.mxu0 0.0
  %1262 = vmatpush1.msra.mxu0 0.0
  %1263 = vmatprep.mubr.f32.mxu0 %v304
  %1264 = vmatmul.mubr.f32.gmra.mrb[0].mxu0 %v252
  %v1265 = vpop.f32.mrb[0].mxu0
  %v1266 = vadd.f32 %v1196, %v1265
  %v1267 = vpop.f32.mrb[0].mxu0
  %1268 = vdwg.mxu0
  %s1269 = scalar_lea.vmem %s4, 48
  %v1270 = vld [vmem:[%s1269] sm:$0xff]
  %v1271 = vld [vmem:[%s1269 + $0x8] sm:$0xff]
  %v1273 = vsel %vm205, %v1270, 0
  %v1276 = vsel %vm205, %v1271, 0
  %1278 = vmatprep.subr.mxu0 0.0
  %1279 = vmatpush1.msra.mxu0 %v1266
  %1280 = vmatprep.subr.mxu0 0.0
  %1281 = vmatpush1.msra.mxu0 0.0
  %1282 = vmatprep.subr.mxu0 0.0
  %1283 = vmatpush1.msra.mxu0 0.0
  %1284 = vmatprep.subr.mxu0 0.0
  %1285 = vmatpush1.msra.mxu0 0.0
  %1286 = vmatprep.subr.mxu0 0.0
  %1287 = vmatpush1.msra.mxu0 0.0
  %1288 = vmatprep.subr.mxu0 0.0
  %1289 = vmatpush1.msra.mxu0 0.0
  %1290 = vmatprep.subr.mxu0 0.0
  %1291 = vmatpush1.msra.mxu0 0.0
  %1292 = vmatprep.subr.mxu0 0.0
  %1293 = vmatpush1.msra.mxu0 0.0
  %1294 = vmatprep.subr.mxu0 0.0
  %1295 = vmatpush1.msra.mxu0 0.0
  %1296 = vmatprep.subr.mxu0 0.0
  %1297 = vmatpush1.msra.mxu0 0.0
  %1298 = vmatprep.subr.mxu0 0.0
  %1299 = vmatpush1.msra.mxu0 0.0
  %1300 = vmatprep.subr.mxu0 0.0
  %1301 = vmatpush1.msra.mxu0 0.0
  %1302 = vmatprep.subr.mxu0 0.0
  %1303 = vmatpush1.msra.mxu0 0.0
  %1304 = vmatprep.subr.mxu0 0.0
  %1305 = vmatpush1.msra.mxu0 0.0
  %1306 = vmatprep.subr.mxu0 0.0
  %1307 = vmatpush1.msra.mxu0 0.0
  %1308 = vmatprep.subr.mxu0 0.0
  %1309 = vmatpush1.msra.mxu0 0.0
  %1310 = vmatprep.subr.mxu0 0.0
  %1311 = vmatpush1.msra.mxu0 0.0
  %1312 = vmatprep.subr.mxu0 0.0
  %1313 = vmatpush1.msra.mxu0 0.0
  %1314 = vmatprep.subr.mxu0 0.0
  %1315 = vmatpush1.msra.mxu0 0.0
  %1316 = vmatprep.subr.mxu0 0.0
  %1317 = vmatpush1.msra.mxu0 0.0
  %1318 = vmatprep.subr.mxu0 0.0
  %1319 = vmatpush1.msra.mxu0 0.0
  %1320 = vmatprep.subr.mxu0 0.0
  %1321 = vmatpush1.msra.mxu0 0.0
  %1322 = vmatprep.subr.mxu0 0.0
  %1323 = vmatpush1.msra.mxu0 0.0
  %1324 = vmatprep.subr.mxu0 0.0
  %1325 = vmatpush1.msra.mxu0 0.0
  %1326 = vmatprep.subr.mxu0 0.0
  %1327 = vmatpush1.msra.mxu0 0.0
  %1328 = vmatprep.subr.mxu0 0.0
  %1329 = vmatpush1.msra.mxu0 0.0
  %1330 = vmatprep.subr.mxu0 0.0
  %1331 = vmatpush1.msra.mxu0 0.0
  %1332 = vmatprep.subr.mxu0 0.0
  %1333 = vmatpush1.msra.mxu0 0.0
  %1334 = vmatprep.subr.mxu0 0.0
  %1335 = vmatpush1.msra.mxu0 0.0
  %1336 = vmatprep.subr.mxu0 0.0
  %1337 = vmatpush1.msra.mxu0 0.0
  %1338 = vmatprep.subr.mxu0 0.0
  %1339 = vmatpush1.msra.mxu0 0.0
  %1340 = vmatprep.subr.mxu0 0.0
  %1341 = vmatpush1.msra.mxu0 0.0
  %1342 = vmatprep.mubr.f32.mxu0 0.0
  %1343 = vmatmul.mubr.f32.gmra.mrb[0].mxu0 %v1273
  %v1344 = vpop.f32.mrb[0].mxu0
  %v1345 = vadd.f32 0.0, %v1344
  %v1346 = vpop.f32.mrb[0].mxu0
  %1347 = vmatprep.mubr.f32.mxu0 0.0
  %1348 = vmatmul.mubr.f32.gmra.mrb[0].mxu0 %v1276
  %v1349 = vpop.f32.mrb[0].mxu0
  %v1350 = vadd.f32 0.0, %v1349
  %v1351 = vpop.f32.mrb[0].mxu0
  %1352 = vdwg.mxu0
  %v1353 = vadd.f32 %v1077, %v1345
  %v1354 = vadd.f32 %v1078, %v1350
  %vm1355 = vcmask 801792
  %v1356 = vsel %vm1355, %v1353, 0.0
  %1357 = vadd.xlane.f32.xlu0 %v1356
  %v1358 = vpop.xlane.xlu0 %1357
  %v1359 = vsel %vm1355, %v1354, 0.0
  %1360 = vadd.xlane.f32.xlu0 %v1359
  %v1361 = vpop.xlane.xlu0 %1360
  %v1362 = vmul.f32 %v1358, 0.010204081
  %v1363 = vmul.f32 %v1361, 0.010204081
  %v1364 = vmul.f32 %v1353, %v1353
  %v1365 = vmul.f32 %v1354, %v1354
  %v1366 = vsel %vm1355, %v1364, 0.0
  %1367 = vadd.xlane.f32.xlu0 %v1366
  %v1368 = vpop.xlane.xlu0 %1367
  %v1369 = vsel %vm1355, %v1365, 0.0
  %1370 = vadd.xlane.f32.xlu0 %v1369
  %v1371 = vpop.xlane.xlu0 %1370
  %v1372 = vmul.f32 %v1368, 0.010204081
  %v1373 = vmul.f32 %v1371, 0.010204081
  %v1374 = vmul.f32 %v1362, %v1362
  %v1375 = vmul.f32 %v1363, %v1363
  %v1376 = vsub.f32 %v1372, %v1374
  %v1377 = vsub.f32 %v1373, %v1375
  %v1378 = vld [vmem:[%s5] sm:$0xff]
  %v1379 = vld [vmem:[%s5 + $0x8] sm:$0xff]
  %v1380 = vadd.f32 %v1376, 1e-05
  %v1381 = vadd.f32 %v1377, 1e-05
  %v1382 = vrsqrt.pop %v1380
  %v1383 = vrsqrt.pop %v1381
  %v1384 = vmul.f32 %v1378, %v1382
  %v1385 = vmul.f32 %v1379, %v1383
  %s1386 = scalar_lea.vmem %s5, 16
  %v1387 = vld [vmem:[%s1386] sm:$0xff]
  %v1388 = vld [vmem:[%s1386 + $0x8] sm:$0xff]
  %v1389 = vmul.f32 %v1362, %v1384
  %v1390 = vmul.f32 %v1363, %v1385
  %v1391 = vsub.f32 %v1387, %v1389
  %v1392 = vsub.f32 %v1388, %v1390
  %1394 = vset.pattern.permute.xlu0 0
  %1395 = vperm.xlu0 %1394, %v1384
  %v1396 = vpop.permute.xlu0 %1395
  %1399 = vset.pattern.permute.xlu0 0
  %1400 = vperm.xlu0 %1399, %v1385
  %v1401 = vpop.permute.xlu0 %1400
  %v1403 = vmul.f32 %v1353, %v1396
  %v1404 = vmul.f32 %v1354, %v1401
  %1406 = vset.pattern.permute.xlu0 0
  %1407 = vperm.xlu0 %1406, %v1391
  %v1408 = vpop.permute.xlu0 %1407
  %1411 = vset.pattern.permute.xlu0 0
  %1412 = vperm.xlu0 %1411, %v1392
  %v1413 = vpop.permute.xlu0 %1412
  %v1415 = vadd.f32 %v1403, %v1408
  %v1416 = vadd.f32 %v1404, %v1413
  %v1417 = vmax.f32 %v1415, 0.0
  %v1418 = vmax.f32 %v1416, 0.0
  %v1419 = vld [vmem:[%s6] sm:$0xff]
  %v1420 = vld [vmem:[%s6 + $0x8] sm:$0xff]
  %v1421 = vld [vmem:[%s6 + $0x10] sm:$0xff]
  %v1422 = vld [vmem:[%s6 + $0x18] sm:$0xff]
  %v1423 = vld [vmem:[%s6 + $0x20] sm:$0xff]
  %v1424 = vld [vmem:[%s6 + $0x28] sm:$0xff]
  %v1425 = vld [vmem:[%s6 + $0x30] sm:$0xff]
  %v1426 = vld [vmem:[%s6 + $0x38] sm:$0xff]
  %v1427 = vld [vmem:[%s6 + $0x40] sm:$0xff]
  %v1428 = vld [vmem:[%s6 + $0x48] sm:$0xff]
  %v1429 = vld [vmem:[%s6 + $0x50] sm:$0xff]
  %v1430 = vld [vmem:[%s6 + $0x58] sm:$0xff]
  %v1431 = vld [vmem:[%s6 + $0x60] sm:$0x3]
  %v1433 = vsel %vm1355, %v1417, 0
  %v1436 = vsel %vm1355, %v1418, 0
  %vm1438 = vcmask 1041408
  %v1440 = vsel %vm1438, %v1431, 0
  %1442 = vmatprep.subr.mxu0 0.0
  %1443 = vmatpush1.msra.mxu0 %v1419
  %1444 = vmatprep.subr.mxu0 0.0
  %1445 = vmatpush1.msra.mxu0 %v1420
  %1446 = vmatprep.subr.mxu0 0.0
  %1447 = vmatpush1.msra.mxu0 %v1421
  %1448 = vmatprep.subr.mxu0 0.0
  %1449 = vmatpush1.msra.mxu0 %v1422
  %1450 = vmatprep.subr.mxu0 0.0
  %1451 = vmatpush1.msra.mxu0 %v1423
  %1452 = vmatprep.subr.mxu0 0.0
  %1453 = vmatpush1.msra.mxu0 %v1424
  %1454 = vmatprep.subr.mxu0 0.0
  %1455 = vmatpush1.msra.mxu0 %v1425
  %1456 = vmatprep.subr.mxu0 0.0
  %1457 = vmatpush1.msra.mxu0 %v1426
  %1458 = vmatprep.subr.mxu0 0.0
  %1459 = vmatpush1.msra.mxu0 %v1427
  %1460 = vmatprep.subr.mxu0 0.0
  %1461 = vmatpush1.msra.mxu0 %v1428
  %1462 = vmatprep.subr.mxu0 0.0
  %1463 = vmatpush1.msra.mxu0 %v1429
  %1464 = vmatprep.subr.mxu0 0.0
  %1465 = vmatpush1.msra.mxu0 %v1430
  %1466 = vmatprep.subr.mxu0 0.0
  %1467 = vmatpush1.msra.mxu0 %v1440
  %1468 = vmatprep.subr.mxu0 0.0
  %1469 = vmatpush1.msra.mxu0 0.0
  %1470 = vmatprep.subr.mxu0 0.0
  %1471 = vmatpush1.msra.mxu0 0.0
  %1472 = vmatprep.subr.mxu0 0.0
  %1473 = vmatpush1.msra.mxu0 0.0
  %1474 = vmatprep.subr.mxu0 0.0
  %1475 = vmatpush1.msra.mxu0 0.0
  %1476 = vmatprep.subr.mxu0 0.0
  %1477 = vmatpush1.msra.mxu0 0.0
  %1478 = vmatprep.subr.mxu0 0.0
  %1479 = vmatpush1.msra.mxu0 0.0
  %1480 = vmatprep.subr.mxu0 0.0
  %1481 = vmatpush1.msra.mxu0 0.0
  %1482 = vmatprep.subr.mxu0 0.0
  %1483 = vmatpush1.msra.mxu0 0.0
  %1484 = vmatprep.subr.mxu0 0.0
  %1485 = vmatpush1.msra.mxu0 0.0
  %1486 = vmatprep.subr.mxu0 0.0
  %1487 = vmatpush1.msra.mxu0 0.0
  %1488 = vmatprep.subr.mxu0 0.0
  %1489 = vmatpush1.msra.mxu0 0.0
  %1490 = vmatprep.subr.mxu0 0.0
  %1491 = vmatpush1.msra.mxu0 0.0
  %1492 = vmatprep.subr.mxu0 0.0
  %1493 = vmatpush1.msra.mxu0 0.0
  %1494 = vmatprep.subr.mxu0 0.0
  %1495 = vmatpush1.msra.mxu0 0.0
  %1496 = vmatprep.subr.mxu0 0.0
  %1497 = vmatpush1.msra.mxu0 0.0
  %1498 = vmatprep.subr.mxu0 0.0
  %1499 = vmatpush1.msra.mxu0 0.0
  %1500 = vmatprep.subr.mxu0 0.0
  %1501 = vmatpush1.msra.mxu0 0.0
  %1502 = vmatprep.subr.mxu0 0.0
  %1503 = vmatpush1.msra.mxu0 0.0
  %1504 = vmatprep.subr.mxu0 0.0
  %1505 = vmatpush1.msra.mxu0 0.0
  %1506 = vmatprep.mubr.f32.mxu0 0.0
  %1507 = vmatmul.mubr.f32.gmra.mrb[0].mxu0 %v1433
  %v1508 = vpop.f32.mrb[0].mxu0
  %v1509 = vadd.f32 0.0, %v1508
  %v1510 = vpop.f32.mrb[0].mxu0
  %1511 = vmatprep.mubr.f32.mxu0 0.0
  %1512 = vmatmul.mubr.f32.gmra.mrb[0].mxu0 %v1436
  %v1513 = vpop.f32.mrb[0].mxu0
  %v1514 = vadd.f32 0.0, %v1513
  %v1515 = vpop.f32.mrb[0].mxu0
  %1516 = vdwg.mxu0
  %v1517 = vld [vmem:[%s7] sm:$0xff]
  %v1518 = vld [vmem:[%s7 + $0x8] sm:$0xff]
  %v1519 = vld [vmem:[%s7 + $0x10] sm:$0xff]
  %v1520 = vld [vmem:[%s7 + $0x18] sm:$0xff]
  %s1521 = scalar_lea.vmem %s6, 104
  %v1522 = vld [vmem:[%s1521] sm:$0xff]
  %v1523 = vld [vmem:[%s1521 + $0x8] sm:$0xff]
  %v1524 = vld [vmem:[%s1521 + $0x10] sm:$0xff]
  %v1525 = vld [vmem:[%s1521 + $0x18] sm:$0xff]
  %v1526 = vld [vmem:[%s1521 + $0x20] sm:$0xff]
  %v1527 = vld [vmem:[%s1521 + $0x28] sm:$0xff]
  %v1528 = vld [vmem:[%s1521 + $0x30] sm:$0xff]
  %v1529 = vld [vmem:[%s1521 + $0x38] sm:$0xff]
  %v1530 = vld [vmem:[%s1521 + $0x40] sm:$0xff]
  %v1531 = vld [vmem:[%s1521 + $0x48] sm:$0xff]
  %v1532 = vld [vmem:[%s1521 + $0x50] sm:$0xff]
  %v1533 = vld [vmem:[%s1521 + $0x58] sm:$0xff]
  %v1534 = vld [vmem:[%s1521 + $0x60] sm:$0x3]
  %v1536 = vsel %vm1438, %v1534, 0
  %1538 = vmatprep.subr.mxu0 0.0
  %1539 = vmatpush1.msra.mxu0 %v1522
  %1540 = vmatprep.subr.mxu0 0.0
  %1541 = vmatpush1.msra.mxu0 %v1523
  %1542 = vmatprep.subr.mxu0 0.0
  %1543 = vmatpush1.msra.mxu0 %v1524
  %1544 = vmatprep.subr.mxu0 0.0
  %1545 = vmatpush1.msra.mxu0 %v1525
  %1546 = vmatprep.subr.mxu0 0.0
  %1547 = vmatpush1.msra.mxu0 %v1526
  %1548 = vmatprep.subr.mxu0 0.0
  %1549 = vmatpush1.msra.mxu0 %v1527
  %1550 = vmatprep.subr.mxu0 0.0
  %1551 = vmatpush1.msra.mxu0 %v1528
  %1552 = vmatprep.subr.mxu0 0.0
  %1553 = vmatpush1.msra.mxu0 %v1529
  %1554 = vmatprep.subr.mxu0 0.0
  %1555 = vmatpush1.msra.mxu0 %v1530
  %1556 = vmatprep.subr.mxu0 0.0
  %1557 = vmatpush1.msra.mxu0 %v1531
  %1558 = vmatprep.subr.mxu0 0.0
  %1559 = vmatpush1.msra.mxu0 %v1532
  %1560 = vmatprep.subr.mxu0 0.0
  %1561 = vmatpush1.msra.mxu0 %v1533
  %1562 = vmatprep.subr.mxu0 0.0
  %1563 = vmatpush1.msra.mxu0 %v1536
  %1564 = vmatprep.subr.mxu0 0.0
  %1565 = vmatpush1.msra.mxu0 0.0
  %1566 = vmatprep.subr.mxu0 0.0
  %1567 = vmatpush1.msra.mxu0 0.0
  %1568 = vmatprep.subr.mxu0 0.0
  %1569 = vmatpush1.msra.mxu0 0.0
  %1570 = vmatprep.subr.mxu0 0.0
  %1571 = vmatpush1.msra.mxu0 0.0
  %1572 = vmatprep.subr.mxu0 0.0
  %1573 = vmatpush1.msra.mxu0 0.0
  %1574 = vmatprep.subr.mxu0 0.0
  %1575 = vmatpush1.msra.mxu0 0.0
  %1576 = vmatprep.subr.mxu0 0.0
  %1577 = vmatpush1.msra.mxu0 0.0
  %1578 = vmatprep.subr.mxu0 0.0
  %1579 = vmatpush1.msra.mxu0 0.0
  %1580 = vmatprep.subr.mxu0 0.0
  %1581 = vmatpush1.msra.mxu0 0.0
  %1582 = vmatprep.subr.mxu0 0.0
  %1583 = vmatpush1.msra.mxu0 0.0
  %1584 = vmatprep.subr.mxu0 0.0
  %1585 = vmatpush1.msra.mxu0 0.0
  %1586 = vmatprep.subr.mxu0 0.0
  %1587 = vmatpush1.msra.mxu0 0.0
  %1588 = vmatprep.subr.mxu0 0.0
  %1589 = vmatpush1.msra.mxu0 0.0
  %1590 = vmatprep.subr.mxu0 0.0
  %1591 = vmatpush1.msra.mxu0 0.0
  %1592 = vmatprep.subr.mxu0 0.0
  %1593 = vmatpush1.msra.mxu0 0.0
  %1594 = vmatprep.subr.mxu0 0.0
  %1595 = vmatpush1.msra.mxu0 0.0
  %1596 = vmatprep.subr.mxu0 0.0
  %1597 = vmatpush1.msra.mxu0 0.0
  %1598 = vmatprep.subr.mxu0 0.0
  %1599 = vmatpush1.msra.mxu0 0.0
  %1600 = vmatprep.subr.mxu0 0.0
  %1601 = vmatpush1.msra.mxu0 0.0
  %1602 = vmatprep.mubr.f32.mxu0 0.0
  %1603 = vmatmul.mubr.f32.gmra.mrb[0].mxu0 %v1433
  %v1604 = vpop.f32.mrb[0].mxu0
  %v1605 = vadd.f32 0.0, %v1604
  %v1606 = vpop.f32.mrb[0].mxu0
  %1607 = vmatprep.mubr.f32.mxu0 0.0
  %1608 = vmatmul.mubr.f32.gmra.mrb[0].mxu0 %v1436
  %v1609 = vpop.f32.mrb[0].mxu0
  %v1610 = vadd.f32 0.0, %v1609
  %v1611 = vpop.f32.mrb[0].mxu0
  %1612 = vdwg.mxu0
  %s1613 = scalar_lea.vmem %s7, 32
  %v1614 = vld [vmem:[%s1613] sm:$0xff]
  %v1615 = vld [vmem:[%s1613 + $0x8] sm:$0xff]
  %v1616 = vld [vmem:[%s1613 + $0x10] sm:$0xff]
  %v1617 = vld [vmem:[%s1613 + $0x18] sm:$0xff]
  %vm1618 = vcmask 130048
  %v1620 = vsel %vm1618, %v1614, 0
  %v1623 = vsel %vm1618, %v1615, 0
  %v1626 = vsel %vm1618, %v1616, 0
  %v1629 = vsel %vm1618, %v1617, 0
  %1631 = vmatprep.subr.mxu0 0.0
  %1632 = vmatpush1.msra.mxu0 %v1605
  %1633 = vmatprep.subr.mxu0 0.0
  %1634 = vmatpush1.msra.mxu0 %v1610
  %1635 = vmatprep.subr.mxu0 0.0
  %1636 = vmatpush1.msra.mxu0 0.0
  %1637 = vmatprep.subr.mxu0 0.0
  %1638 = vmatpush1.msra.mxu0 0.0
  %1639 = vmatprep.subr.mxu0 0.0
  %1640 = vmatpush1.msra.mxu0 0.0
  %1641 = vmatprep.subr.mxu0 0.0
  %1642 = vmatpush1.msra.mxu0 0.0
  %1643 = vmatprep.subr.mxu0 0.0
  %1644 = vmatpush1.msra.mxu0 0.0
  %1645 = vmatprep.subr.mxu0 0.0
  %1646 = vmatpush1.msra.mxu0 0.0
  %1647 = vmatprep.subr.mxu0 0.0
  %1648 = vmatpush1.msra.mxu0 0.0
  %1649 = vmatprep.subr.mxu0 0.0
  %1650 = vmatpush1.msra.mxu0 0.0
  %1651 = vmatprep.subr.mxu0 0.0
  %1652 = vmatpush1.msra.mxu0 0.0
  %1653 = vmatprep.subr.mxu0 0.0
  %1654 = vmatpush1.msra.mxu0 0.0
  %1655 = vmatprep.subr.mxu0 0.0
  %1656 = vmatpush1.msra.mxu0 0.0
  %1657 = vmatprep.subr.mxu0 0.0
  %1658 = vmatpush1.msra.mxu0 0.0
  %1659 = vmatprep.subr.mxu0 0.0
  %1660 = vmatpush1.msra.mxu0 0.0
  %1661 = vmatprep.subr.mxu0 0.0
  %1662 = vmatpush1.msra.mxu0 0.0
  %1663 = vmatprep.subr.mxu0 0.0
  %1664 = vmatpush1.msra.mxu0 0.0
  %1665 = vmatprep.subr.mxu0 0.0
  %1666 = vmatpush1.msra.mxu0 0.0
  %1667 = vmatprep.subr.mxu0 0.0
  %1668 = vmatpush1.msra.mxu0 0.0
  %1669 = vmatprep.subr.mxu0 0.0
  %1670 = vmatpush1.msra.mxu0 0.0
  %1671 = vmatprep.subr.mxu0 0.0
  %1672 = vmatpush1.msra.mxu0 0.0
  %1673 = vmatprep.subr.mxu0 0.0
  %1674 = vmatpush1.msra.mxu0 0.0
  %1675 = vmatprep.subr.mxu0 0.0
  %1676 = vmatpush1.msra.mxu0 0.0
  %1677 = vmatprep.subr.mxu0 0.0
  %1678 = vmatpush1.msra.mxu0 0.0
  %1679 = vmatprep.subr.mxu0 0.0
  %1680 = vmatpush1.msra.mxu0 0.0
  %1681 = vmatprep.subr.mxu0 0.0
  %1682 = vmatpush1.msra.mxu0 0.0
  %1683 = vmatprep.subr.mxu0 0.0
  %1684 = vmatpush1.msra.mxu0 0.0
  %1685 = vmatprep.subr.mxu0 0.0
  %1686 = vmatpush1.msra.mxu0 0.0
  %1687 = vmatprep.subr.mxu0 0.0
  %1688 = vmatpush1.msra.mxu0 0.0
  %1689 = vmatprep.subr.mxu0 0.0
  %1690 = vmatpush1.msra.mxu0 0.0
  %1691 = vmatprep.subr.mxu0 0.0
  %1692 = vmatpush1.msra.mxu0 0.0
  %1693 = vmatprep.subr.mxu0 0.0
  %1694 = vmatpush1.msra.mxu0 0.0
  %1695 = vmatprep.mubr.f32.mxu0 0.0
  %1696 = vmatmul.mubr.f32.gmra.mrb[0].mxu0 %v1620
  %v1697 = vpop.f32.mrb[0].mxu0
  %v1698 = vadd.f32 0.0, %v1697
  %v1699 = vpop.f32.mrb[0].mxu0
  %1700 = vmatprep.mubr.f32.mxu0 0.0
  %1701 = vmatmul.mubr.f32.gmra.mrb[0].mxu0 %v1623
  %v1702 = vpop.f32.mrb[0].mxu0
  %v1703 = vadd.f32 0.0, %v1702
  %v1704 = vpop.f32.mrb[0].mxu0
  %1705 = vmatprep.mubr.f32.mxu0 0.0
  %1706 = vmatmul.mubr.f32.gmra.mrb[0].mxu0 %v1626
  %v1707 = vpop.f32.mrb[0].mxu0
  %v1708 = vadd.f32 0.0, %v1707
  %v1709 = vpop.f32.mrb[0].mxu0
  %1710 = vmatprep.mubr.f32.mxu0 0.0
  %1711 = vmatmul.mubr.f32.gmra.mrb[0].mxu0 %v1629
  %v1712 = vpop.f32.mrb[0].mxu0
  %v1713 = vadd.f32 0.0, %v1712
  %v1714 = vpop.f32.mrb[0].mxu0
  %1715 = vdwg.mxu0
  %v1717 = vsel %vm1618, %v1517, 0
  %v1720 = vsel %vm1618, %v1518, 0
  %v1723 = vsel %vm1618, %v1519, 0
  %v1726 = vsel %vm1618, %v1520, 0
  %1728 = vmatprep.subr.mxu0 0.0
  %1729 = vmatpush1.msra.mxu0 %v1509
  %1730 = vmatprep.subr.mxu0 0.0
  %1731 = vmatpush1.msra.mxu0 %v1514
  %1732 = vmatprep.subr.mxu0 0.0
  %1733 = vmatpush1.msra.mxu0 0.0
  %1734 = vmatprep.subr.mxu0 0.0
  %1735 = vmatpush1.msra.mxu0 0.0
  %1736 = vmatprep.subr.mxu0 0.0
  %1737 = vmatpush1.msra.mxu0 0.0
  %1738 = vmatprep.subr.mxu0 0.0
  %1739 = vmatpush1.msra.mxu0 0.0
  %1740 = vmatprep.subr.mxu0 0.0
  %1741 = vmatpush1.msra.mxu0 0.0
  %1742 = vmatprep.subr.mxu0 0.0
  %1743 = vmatpush1.msra.mxu0 0.0
  %1744 = vmatprep.subr.mxu0 0.0
  %1745 = vmatpush1.msra.mxu0 0.0
  %1746 = vmatprep.subr.mxu0 0.0
  %1747 = vmatpush1.msra.mxu0 0.0
  %1748 = vmatprep.subr.mxu0 0.0
  %1749 = vmatpush1.msra.mxu0 0.0
  %1750 = vmatprep.subr.mxu0 0.0
  %1751 = vmatpush1.msra.mxu0 0.0
  %1752 = vmatprep.subr.mxu0 0.0
  %1753 = vmatpush1.msra.mxu0 0.0
  %1754 = vmatprep.subr.mxu0 0.0
  %1755 = vmatpush1.msra.mxu0 0.0
  %1756 = vmatprep.subr.mxu0 0.0
  %1757 = vmatpush1.msra.mxu0 0.0
  %1758 = vmatprep.subr.mxu0 0.0
  %1759 = vmatpush1.msra.mxu0 0.0
  %1760 = vmatprep.subr.mxu0 0.0
  %1761 = vmatpush1.msra.mxu0 0.0
  %1762 = vmatprep.subr.mxu0 0.0
  %1763 = vmatpush1.msra.mxu0 0.0
  %1764 = vmatprep.subr.mxu0 0.0
  %1765 = vmatpush1.msra.mxu0 0.0
  %1766 = vmatprep.subr.mxu0 0.0
  %1767 = vmatpush1.msra.mxu0 0.0
  %1768 = vmatprep.subr.mxu0 0.0
  %1769 = vmatpush1.msra.mxu0 0.0
  %1770 = vmatprep.subr.mxu0 0.0
  %1771 = vmatpush1.msra.mxu0 0.0
  %1772 = vmatprep.subr.mxu0 0.0
  %1773 = vmatpush1.msra.mxu0 0.0
  %1774 = vmatprep.subr.mxu0 0.0
  %1775 = vmatpush1.msra.mxu0 0.0
  %1776 = vmatprep.subr.mxu0 0.0
  %1777 = vmatpush1.msra.mxu0 0.0
  %1778 = vmatprep.subr.mxu0 0.0
  %1779 = vmatpush1.msra.mxu0 0.0
  %1780 = vmatprep.subr.mxu0 0.0
  %1781 = vmatpush1.msra.mxu0 0.0
  %1782 = vmatprep.subr.mxu0 0.0
  %1783 = vmatpush1.msra.mxu0 0.0
  %1784 = vmatprep.subr.mxu0 0.0
  %1785 = vmatpush1.msra.mxu0 0.0
  %1786 = vmatprep.subr.mxu0 0.0
  %1787 = vmatpush1.msra.mxu0 0.0
  %1788 = vmatprep.subr.mxu0 0.0
  %1789 = vmatpush1.msra.mxu0 0.0
  %1790 = vmatprep.subr.mxu0 0.0
  %1791 = vmatpush1.msra.mxu0 0.0
  %1792 = vmatprep.mubr.f32.mxu0 0.0
  %1793 = vmatmul.mubr.f32.gmra.mrb[0].mxu0 %v1717
  %v1794 = vpop.f32.mrb[0].mxu0
  %v1795 = vadd.f32 %v1698, %v1794
  %v1796 = vpop.f32.mrb[0].mxu0
  %1797 = vmatprep.mubr.f32.mxu0 0.0
  %1798 = vmatmul.mubr.f32.gmra.mrb[0].mxu0 %v1720
  %v1799 = vpop.f32.mrb[0].mxu0
  %v1800 = vadd.f32 %v1703, %v1799
  %v1801 = vpop.f32.mrb[0].mxu0
  %1802 = vmatprep.mubr.f32.mxu0 0.0
  %1803 = vmatmul.mubr.f32.gmra.mrb[0].mxu0 %v1723
  %v1804 = vpop.f32.mrb[0].mxu0
  %v1805 = vadd.f32 %v1708, %v1804
  %v1806 = vpop.f32.mrb[0].mxu0
  %1807 = vmatprep.mubr.f32.mxu0 0.0
  %1808 = vmatmul.mubr.f32.gmra.mrb[0].mxu0 %v1726
  %v1809 = vpop.f32.mrb[0].mxu0
  %v1810 = vadd.f32 %v1713, %v1809
  %v1811 = vpop.f32.mrb[0].mxu0
  %1812 = vdwg.mxu0
  %s1813 = scalar_lea.vmem %s6, 208
  %v1814 = vld [vmem:[%s1813] sm:$0xff]
  %v1815 = vld [vmem:[%s1813 + $0x8] sm:$0xff]
  %v1816 = vld [vmem:[%s1813 + $0x10] sm:$0xff]
  %v1817 = vld [vmem:[%s1813 + $0x18] sm:$0xff]
  %v1818 = vld [vmem:[%s1813 + $0x20] sm:$0xff]
  %v1819 = vld [vmem:[%s1813 + $0x28] sm:$0xff]
  %v1820 = vld [vmem:[%s1813 + $0x30] sm:$0xff]
  %v1821 = vld [vmem:[%s1813 + $0x38] sm:$0xff]
  %v1822 = vld [vmem:[%s1813 + $0x40] sm:$0xff]
  %v1823 = vld [vmem:[%s1813 + $0x48] sm:$0xff]
  %v1824 = vld [vmem:[%s1813 + $0x50] sm:$0xff]
  %v1825 = vld [vmem:[%s1813 + $0x58] sm:$0xff]
  %v1826 = vld [vmem:[%s1813 + $0x60] sm:$0x3]
  %v1828 = vsel %vm1438, %v1826, 0
  %1830 = vmatprep.subr.mxu0 0.0
  %1831 = vmatpush1.msra.mxu0 %v1814
  %1832 = vmatprep.subr.mxu0 0.0
  %1833 = vmatpush1.msra.mxu0 %v1815
  %1834 = vmatprep.subr.mxu0 0.0
  %1835 = vmatpush1.msra.mxu0 %v1816
  %1836 = vmatprep.subr.mxu0 0.0
  %1837 = vmatpush1.msra.mxu0 %v1817
  %1838 = vmatprep.subr.mxu0 0.0
  %1839 = vmatpush1.msra.mxu0 %v1818
  %1840 = vmatprep.subr.mxu0 0.0
  %1841 = vmatpush1.msra.mxu0 %v1819
  %1842 = vmatprep.subr.mxu0 0.0
  %1843 = vmatpush1.msra.mxu0 %v1820
  %1844 = vmatprep.subr.mxu0 0.0
  %1845 = vmatpush1.msra.mxu0 %v1821
  %1846 = vmatprep.subr.mxu0 0.0
  %1847 = vmatpush1.msra.mxu0 %v1822
  %1848 = vmatprep.subr.mxu0 0.0
  %1849 = vmatpush1.msra.mxu0 %v1823
  %1850 = vmatprep.subr.mxu0 0.0
  %1851 = vmatpush1.msra.mxu0 %v1824
  %1852 = vmatprep.subr.mxu0 0.0
  %1853 = vmatpush1.msra.mxu0 %v1825
  %1854 = vmatprep.subr.mxu0 0.0
  %1855 = vmatpush1.msra.mxu0 %v1828
  %1856 = vmatprep.subr.mxu0 0.0
  %1857 = vmatpush1.msra.mxu0 0.0
  %1858 = vmatprep.subr.mxu0 0.0
  %1859 = vmatpush1.msra.mxu0 0.0
  %1860 = vmatprep.subr.mxu0 0.0
  %1861 = vmatpush1.msra.mxu0 0.0
  %1862 = vmatprep.subr.mxu0 0.0
  %1863 = vmatpush1.msra.mxu0 0.0
  %1864 = vmatprep.subr.mxu0 0.0
  %1865 = vmatpush1.msra.mxu0 0.0
  %1866 = vmatprep.subr.mxu0 0.0
  %1867 = vmatpush1.msra.mxu0 0.0
  %1868 = vmatprep.subr.mxu0 0.0
  %1869 = vmatpush1.msra.mxu0 0.0
  %1870 = vmatprep.subr.mxu0 0.0
  %1871 = vmatpush1.msra.mxu0 0.0
  %1872 = vmatprep.subr.mxu0 0.0
  %1873 = vmatpush1.msra.mxu0 0.0
  %1874 = vmatprep.subr.mxu0 0.0
  %1875 = vmatpush1.msra.mxu0 0.0
  %1876 = vmatprep.subr.mxu0 0.0
  %1877 = vmatpush1.msra.mxu0 0.0
  %1878 = vmatprep.subr.mxu0 0.0
  %1879 = vmatpush1.msra.mxu0 0.0
  %1880 = vmatprep.subr.mxu0 0.0
  %1881 = vmatpush1.msra.mxu0 0.0
  %1882 = vmatprep.subr.mxu0 0.0
  %1883 = vmatpush1.msra.mxu0 0.0
  %1884 = vmatprep.subr.mxu0 0.0
  %1885 = vmatpush1.msra.mxu0 0.0
  %1886 = vmatprep.subr.mxu0 0.0
  %1887 = vmatpush1.msra.mxu0 0.0
  %1888 = vmatprep.subr.mxu0 0.0
  %1889 = vmatpush1.msra.mxu0 0.0
  %1890 = vmatprep.subr.mxu0 0.0
  %1891 = vmatpush1.msra.mxu0 0.0
  %1892 = vmatprep.subr.mxu0 0.0
  %1893 = vmatpush1.msra.mxu0 0.0
  %1894 = vmatprep.mubr.f32.mxu0 0.0
  %1895 = vmatmul.mubr.f32.gmra.mrb[0].mxu0 %v1433
  %v1896 = vpop.f32.mrb[0].mxu0
  %v1897 = vadd.f32 0.0, %v1896
  %v1898 = vpop.f32.mrb[0].mxu0
  %1899 = vmatprep.mubr.f32.mxu0 0.0
  %1900 = vmatmul.mubr.f32.gmra.mrb[0].mxu0 %v1436
  %v1901 = vpop.f32.mrb[0].mxu0
  %v1902 = vadd.f32 0.0, %v1901
  %v1903 = vpop.f32.mrb[0].mxu0
  %1904 = vdwg.mxu0
  %s1905 = scalar_lea.vmem %s7, 64
  %v1906 = vld [vmem:[%s1905] sm:$0xff]
  %v1907 = vld [vmem:[%s1905 + $0x8] sm:$0xff]
  %v1908 = vld [vmem:[%s1905 + $0x10] sm:$0xff]
  %v1909 = vld [vmem:[%s1905 + $0x18] sm:$0xff]
  %v1911 = vsel %vm1618, %v1906, 0
  %v1914 = vsel %vm1618, %v1907, 0
  %v1917 = vsel %vm1618, %v1908, 0
  %v1920 = vsel %vm1618, %v1909, 0
  %1922 = vmatprep.subr.mxu0 0.0
  %1923 = vmatpush1.msra.mxu0 %v1897
  %1924 = vmatprep.subr.mxu0 0.0
  %1925 = vmatpush1.msra.mxu0 %v1902
  %1926 = vmatprep.subr.mxu0 0.0
  %1927 = vmatpush1.msra.mxu0 0.0
  %1928 = vmatprep.subr.mxu0 0.0
  %1929 = vmatpush1.msra.mxu0 0.0
  %1930 = vmatprep.subr.mxu0 0.0
  %1931 = vmatpush1.msra.mxu0 0.0
  %1932 = vmatprep.subr.mxu0 0.0
  %1933 = vmatpush1.msra.mxu0 0.0
  %1934 = vmatprep.subr.mxu0 0.0
  %1935 = vmatpush1.msra.mxu0 0.0
  %1936 = vmatprep.subr.mxu0 0.0
  %1937 = vmatpush1.msra.mxu0 0.0
  %1938 = vmatprep.subr.mxu0 0.0
  %1939 = vmatpush1.msra.mxu0 0.0
  %1940 = vmatprep.subr.mxu0 0.0
  %1941 = vmatpush1.msra.mxu0 0.0
  %1942 = vmatprep.subr.mxu0 0.0
  %1943 = vmatpush1.msra.mxu0 0.0
  %1944 = vmatprep.subr.mxu0 0.0
  %1945 = vmatpush1.msra.mxu0 0.0
  %1946 = vmatprep.subr.mxu0 0.0
  %1947 = vmatpush1.msra.mxu0 0.0
  %1948 = vmatprep.subr.mxu0 0.0
  %1949 = vmatpush1.msra.mxu0 0.0
  %1950 = vmatprep.subr.mxu0 0.0
  %1951 = vmatpush1.msra.mxu0 0.0
  %1952 = vmatprep.subr.mxu0 0.0
  %1953 = vmatpush1.msra.mxu0 0.0
  %1954 = vmatprep.subr.mxu0 0.0
  %1955 = vmatpush1.msra.mxu0 0.0
  %1956 = vmatprep.subr.mxu0 0.0
  %1957 = vmatpush1.msra.mxu0 0.0
  %1958 = vmatprep.subr.mxu0 0.0
  %1959 = vmatpush1.msra.mxu0 0.0
  %1960 = vmatprep.subr.mxu0 0.0
  %1961 = vmatpush1.msra.mxu0 0.0
  %1962 = vmatprep.subr.mxu0 0.0
  %1963 = vmatpush1.msra.mxu0 0.0
  %1964 = vmatprep.subr.mxu0 0.0
  %1965 = vmatpush1.msra.mxu0 0.0
  %1966 = vmatprep.subr.mxu0 0.0
  %1967 = vmatpush1.msra.mxu0 0.0
  %1968 = vmatprep.subr.mxu0 0.0
  %1969 = vmatpush1.msra.mxu0 0.0
  %1970 = vmatprep.subr.mxu0 0.0
  %1971 = vmatpush1.msra.mxu0 0.0
  %1972 = vmatprep.subr.mxu0 0.0
  %1973 = vmatpush1.msra.mxu0 0.0
  %1974 = vmatprep.subr.mxu0 0.0
  %1975 = vmatpush1.msra.mxu0 0.0
  %1976 = vmatprep.subr.mxu0 0.0
  %1977 = vmatpush1.msra.mxu0 0.0
  %1978 = vmatprep.subr.mxu0 0.0
  %1979 = vmatpush1.msra.mxu0 0.0
  %1980 = vmatprep.subr.mxu0 0.0
  %1981 = vmatpush1.msra.mxu0 0.0
  %1982 = vmatprep.subr.mxu0 0.0
  %1983 = vmatpush1.msra.mxu0 0.0
  %1984 = vmatprep.subr.mxu0 0.0
  %1985 = vmatpush1.msra.mxu0 0.0
  %1986 = vmatprep.mubr.f32.mxu0 0.0
  %1987 = vmatmul.mubr.f32.gmra.mrb[0].mxu0 %v1911
  %v1988 = vpop.f32.mrb[0].mxu0
  %v1989 = vadd.f32 0.0, %v1988
  %v1990 = vpop.f32.mrb[0].mxu0
  %1991 = vmatprep.mubr.f32.mxu0 0.0
  %1992 = vmatmul.mubr.f32.gmra.mrb[0].mxu0 %v1914
  %v1993 = vpop.f32.mrb[0].mxu0
  %v1994 = vadd.f32 0.0, %v1993
  %v1995 = vpop.f32.mrb[0].mxu0
  %1996 = vmatprep.mubr.f32.mxu0 0.0
  %1997 = vmatmul.mubr.f32.gmra.mrb[0].mxu0 %v1917
  %v1998 = vpop.f32.mrb[0].mxu0
  %v1999 = vadd.f32 0.0, %v1998
  %v2000 = vpop.f32.mrb[0].mxu0
  %2001 = vmatprep.mubr.f32.mxu0 0.0
  %2002 = vmatmul.mubr.f32.gmra.mrb[0].mxu0 %v1920
  %v2003 = vpop.f32.mrb[0].mxu0
  %v2004 = vadd.f32 0.0, %v2003
  %v2005 = vpop.f32.mrb[0].mxu0
  %2006 = vdwg.mxu0
  %v2007 = vadd.f32 %v1795, %v1989
  %v2008 = vadd.f32 %v1800, %v1994
  %v2009 = vadd.f32 %v1805, %v1999
  %v2010 = vadd.f32 %v1810, %v2004
  %s2011 = scalar_lea.vmem %s6, 312
  %v2012 = vld [vmem:[%s2011] sm:$0xff]
  %v2013 = vld [vmem:[%s2011 + $0x8] sm:$0xff]
  %v2014 = vld [vmem:[%s2011 + $0x10] sm:$0xff]
  %v2015 = vld [vmem:[%s2011 + $0x18] sm:$0xff]
  %v2016 = vld [vmem:[%s2011 + $0x20] sm:$0xff]
  %v2017 = vld [vmem:[%s2011 + $0x28] sm:$0xff]
  %v2018 = vld [vmem:[%s2011 + $0x30] sm:$0xff]
  %v2019 = vld [vmem:[%s2011 + $0x38] sm:$0xff]
  %v2020 = vld [vmem:[%s2011 + $0x40] sm:$0xff]
  %v2021 = vld [vmem:[%s2011 + $0x48] sm:$0xff]
  %v2022 = vld [vmem:[%s2011 + $0x50] sm:$0xff]
  %v2023 = vld [vmem:[%s2011 + $0x58] sm:$0xff]
  %v2024 = vld [vmem:[%s2011 + $0x60] sm:$0x3]
  %v2026 = vsel %vm1438, %v2024, 0
  %2028 = vmatprep.subr.mxu0 0.0
  %2029 = vmatpush1.msra.mxu0 %v2012
  %2030 = vmatprep.subr.mxu0 0.0
  %2031 = vmatpush1.msra.mxu0 %v2013
  %2032 = vmatprep.subr.mxu0 0.0
  %2033 = vmatpush1.msra.mxu0 %v2014
  %2034 = vmatprep.subr.mxu0 0.0
  %2035 = vmatpush1.msra.mxu0 %v2015
  %2036 = vmatprep.subr.mxu0 0.0
  %2037 = vmatpush1.msra.mxu0 %v2016
  %2038 = vmatprep.subr.mxu0 0.0
  %2039 = vmatpush1.msra.mxu0 %v2017
  %2040 = vmatprep.subr.mxu0 0.0
  %2041 = vmatpush1.msra.mxu0 %v2018
  %2042 = vmatprep.subr.mxu0 0.0
  %2043 = vmatpush1.msra.mxu0 %v2019
  %2044 = vmatprep.subr.mxu0 0.0
  %2045 = vmatpush1.msra.mxu0 %v2020
  %2046 = vmatprep.subr.mxu0 0.0
  %2047 = vmatpush1.msra.mxu0 %v2021
  %2048 = vmatprep.subr.mxu0 0.0
  %2049 = vmatpush1.msra.mxu0 %v2022
  %2050 = vmatprep.subr.mxu0 0.0
  %2051 = vmatpush1.msra.mxu0 %v2023
  %2052 = vmatprep.subr.mxu0 0.0
  %2053 = vmatpush1.msra.mxu0 %v2026
  %2054 = vmatprep.subr.mxu0 0.0
  %2055 = vmatpush1.msra.mxu0 0.0
  %2056 = vmatprep.subr.mxu0 0.0
  %2057 = vmatpush1.msra.mxu0 0.0
  %2058 = vmatprep.subr.mxu0 0.0
  %2059 = vmatpush1.msra.mxu0 0.0
  %2060 = vmatprep.subr.mxu0 0.0
  %2061 = vmatpush1.msra.mxu0 0.0
  %2062 = vmatprep.subr.mxu0 0.0
  %2063 = vmatpush1.msra.mxu0 0.0
  %2064 = vmatprep.subr.mxu0 0.0
  %2065 = vmatpush1.msra.mxu0 0.0
  %2066 = vmatprep.subr.mxu0 0.0
  %2067 = vmatpush1.msra.mxu0 0.0
  %2068 = vmatprep.subr.mxu0 0.0
  %2069 = vmatpush1.msra.mxu0 0.0
  %2070 = vmatprep.subr.mxu0 0.0
  %2071 = vmatpush1.msra.mxu0 0.0
  %2072 = vmatprep.subr.mxu0 0.0
  %2073 = vmatpush1.msra.mxu0 0.0
  %2074 = vmatprep.subr.mxu0 0.0
  %2075 = vmatpush1.msra.mxu0 0.0
  %2076 = vmatprep.subr.mxu0 0.0
  %2077 = vmatpush1.msra.mxu0 0.0
  %2078 = vmatprep.subr.mxu0 0.0
  %2079 = vmatpush1.msra.mxu0 0.0
  %2080 = vmatprep.subr.mxu0 0.0
  %2081 = vmatpush1.msra.mxu0 0.0
  %2082 = vmatprep.subr.mxu0 0.0
  %2083 = vmatpush1.msra.mxu0 0.0
  %2084 = vmatprep.subr.mxu0 0.0
  %2085 = vmatpush1.msra.mxu0 0.0
  %2086 = vmatprep.subr.mxu0 0.0
  %2087 = vmatpush1.msra.mxu0 0.0
  %2088 = vmatprep.subr.mxu0 0.0
  %2089 = vmatpush1.msra.mxu0 0.0
  %2090 = vmatprep.subr.mxu0 0.0
  %2091 = vmatpush1.msra.mxu0 0.0
  %2092 = vmatprep.mubr.f32.mxu0 0.0
  %2093 = vmatmul.mubr.f32.gmra.mrb[0].mxu0 %v1433
  %v2094 = vpop.f32.mrb[0].mxu0
  %v2095 = vadd.f32 0.0, %v2094
  %v2096 = vpop.f32.mrb[0].mxu0
  %2097 = vmatprep.mubr.f32.mxu0 0.0
  %2098 = vmatmul.mubr.f32.gmra.mrb[0].mxu0 %v1436
  %v2099 = vpop.f32.mrb[0].mxu0
  %v2100 = vadd.f32 0.0, %v2099
  %v2101 = vpop.f32.mrb[0].mxu0
  %2102 = vdwg.mxu0
  %s2103 = scalar_lea.vmem %s7, 96
  %v2104 = vld [vmem:[%s2103] sm:$0xff]
  %v2105 = vld [vmem:[%s2103 + $0x8] sm:$0xff]
  %v2106 = vld [vmem:[%s2103 + $0x10] sm:$0xff]
  %v2107 = vld [vmem:[%s2103 + $0x18] sm:$0xff]
  %v2109 = vsel %vm1618, %v2104, 0
  %v2112 = vsel %vm1618, %v2105, 0
  %v2115 = vsel %vm1618, %v2106, 0
  %v2118 = vsel %vm1618, %v2107, 0
  %2120 = vmatprep.subr.mxu0 0.0
  %2121 = vmatpush1.msra.mxu0 %v2095
  %2122 = vmatprep.subr.mxu0 0.0
  %2123 = vmatpush1.msra.mxu0 %v2100
  %2124 = vmatprep.subr.mxu0 0.0
  %2125 = vmatpush1.msra.mxu0 0.0
  %2126 = vmatprep.subr.mxu0 0.0
  %2127 = vmatpush1.msra.mxu0 0.0
  %2128 = vmatprep.subr.mxu0 0.0
  %2129 = vmatpush1.msra.mxu0 0.0
  %2130 = vmatprep.subr.mxu0 0.0
  %2131 = vmatpush1.msra.mxu0 0.0
  %2132 = vmatprep.subr.mxu0 0.0
  %2133 = vmatpush1.msra.mxu0 0.0
  %2134 = vmatprep.subr.mxu0 0.0
  %2135 = vmatpush1.msra.mxu0 0.0
  %2136 = vmatprep.subr.mxu0 0.0
  %2137 = vmatpush1.msra.mxu0 0.0
  %2138 = vmatprep.subr.mxu0 0.0
  %2139 = vmatpush1.msra.mxu0 0.0
  %2140 = vmatprep.subr.mxu0 0.0
  %2141 = vmatpush1.msra.mxu0 0.0
  %2142 = vmatprep.subr.mxu0 0.0
  %2143 = vmatpush1.msra.mxu0 0.0
  %2144 = vmatprep.subr.mxu0 0.0
  %2145 = vmatpush1.msra.mxu0 0.0
  %2146 = vmatprep.subr.mxu0 0.0
  %2147 = vmatpush1.msra.mxu0 0.0
  %2148 = vmatprep.subr.mxu0 0.0
  %2149 = vmatpush1.msra.mxu0 0.0
  %2150 = vmatprep.subr.mxu0 0.0
  %2151 = vmatpush1.msra.mxu0 0.0
  %2152 = vmatprep.subr.mxu0 0.0
  %2153 = vmatpush1.msra.mxu0 0.0
  %2154 = vmatprep.subr.mxu0 0.0
  %2155 = vmatpush1.msra.mxu0 0.0
  %2156 = vmatprep.subr.mxu0 0.0
  %2157 = vmatpush1.msra.mxu0 0.0
  %2158 = vmatprep.subr.mxu0 0.0
  %2159 = vmatpush1.msra.mxu0 0.0
  %2160 = vmatprep.subr.mxu0 0.0
  %2161 = vmatpush1.msra.mxu0 0.0
  %2162 = vmatprep.subr.mxu0 0.0
  %2163 = vmatpush1.msra.mxu0 0.0
  %2164 = vmatprep.subr.mxu0 0.0
  %2165 = vmatpush1.msra.mxu0 0.0
  %2166 = vmatprep.subr.mxu0 0.0
  %2167 = vmatpush1.msra.mxu0 0.0
  %2168 = vmatprep.subr.mxu0 0.0
  %2169 = vmatpush1.msra.mxu0 0.0
  %2170 = vmatprep.subr.mxu0 0.0
  %2171 = vmatpush1.msra.mxu0 0.0
  %2172 = vmatprep.subr.mxu0 0.0
  %2173 = vmatpush1.msra.mxu0 0.0
  %2174 = vmatprep.subr.mxu0 0.0
  %2175 = vmatpush1.msra.mxu0 0.0
  %2176 = vmatprep.subr.mxu0 0.0
  %2177 = vmatpush1.msra.mxu0 0.0
  %2178 = vmatprep.subr.mxu0 0.0
  %2179 = vmatpush1.msra.mxu0 0.0
  %2180 = vmatprep.subr.mxu0 0.0
  %2181 = vmatpush1.msra.mxu0 0.0
  %2182 = vmatprep.subr.mxu0 0.0
  %2183 = vmatpush1.msra.mxu0 0.0
  %2184 = vmatprep.mubr.f32.mxu0 0.0
  %2185 = vmatmul.mubr.f32.gmra.mrb[0].mxu0 %v2109
  %v2186 = vpop.f32.mrb[0].mxu0
  %v2187 = vadd.f32 0.0, %v2186
  %v2188 = vpop.f32.mrb[0].mxu0
  %2189 = vmatprep.mubr.f32.mxu0 0.0
  %2190 = vmatmul.mubr.f32.gmra.mrb[0].mxu0 %v2112
  %v2191 = vpop.f32.mrb[0].mxu0
  %v2192 = vadd.f32 0.0, %v2191
  %v2193 = vpop.f32.mrb[0].mxu0
  %2194 = vmatprep.mubr.f32.mxu0 0.0
  %2195 = vmatmul.mubr.f32.gmra.mrb[0].mxu0 %v2115
  %v2196 = vpop.f32.mrb[0].mxu0
  %v2197 = vadd.f32 0.0, %v2196
  %v2198 = vpop.f32.mrb[0].mxu0
  %2199 = vmatprep.mubr.f32.mxu0 0.0
  %2200 = vmatmul.mubr.f32.gmra.mrb[0].mxu0 %v2118
  %v2201 = vpop.f32.mrb[0].mxu0
  %v2202 = vadd.f32 0.0, %v2201
  %v2203 = vpop.f32.mrb[0].mxu0
  %2204 = vdwg.mxu0
  %v2205 = vadd.f32 %v2007, %v2187
  %v2206 = vadd.f32 %v2008, %v2192
  %v2207 = vadd.f32 %v2009, %v2197
  %v2208 = vadd.f32 %v2010, %v2202
  %vm2209 = vcmask 146432
  %v2210 = vsel %vm2209, %v2205, 0.0
  %2211 = vadd.xlane.f32.xlu0 %v2210
  %v2212 = vpop.xlane.xlu0 %2211
  %v2213 = vsel %vm2209, %v2206, 0.0
  %2214 = vadd.xlane.f32.xlu0 %v2213
  %v2215 = vpop.xlane.xlu0 %2214
  %v2216 = vsel %vm2209, %v2207, 0.0
  %2217 = vadd.xlane.f32.xlu0 %v2216
  %v2218 = vpop.xlane.xlu0 %2217
  %v2219 = vsel %vm2209, %v2208, 0.0
  %2220 = vadd.xlane.f32.xlu0 %v2219
  %v2221 = vpop.xlane.xlu0 %2220
  %v2222 = vmul.f32 %v2212, 0.055555556
  %v2223 = vmul.f32 %v2215, 0.055555556
  %v2224 = vmul.f32 %v2218, 0.055555556
  %v2225 = vmul.f32 %v2221, 0.055555556
  %v2226 = vmul.f32 %v2205, %v2205
  %v2227 = vmul.f32 %v2206, %v2206
  %v2228 = vmul.f32 %v2207, %v2207
  %v2229 = vmul.f32 %v2208, %v2208
  %v2230 = vsel %vm2209, %v2226, 0.0
  %2231 = vadd.xlane.f32.xlu0 %v2230
  %v2232 = vpop.xlane.xlu0 %2231
  %v2233 = vsel %vm2209, %v2227, 0.0
  %2234 = vadd.xlane.f32.xlu0 %v2233
  %v2235 = vpop.xlane.xlu0 %2234
  %v2236 = vsel %vm2209, %v2228, 0.0
  %2237 = vadd.xlane.f32.xlu0 %v2236
  %v2238 = vpop.xlane.xlu0 %2237
  %v2239 = vsel %vm2209, %v2229, 0.0
  %2240 = vadd.xlane.f32.xlu0 %v2239
  %v2241 = vpop.xlane.xlu0 %2240
  %v2242 = vmul.f32 %v2232, 0.055555556
  %v2243 = vmul.f32 %v2235, 0.055555556
  %v2244 = vmul.f32 %v2238, 0.055555556
  %v2245 = vmul.f32 %v2241, 0.055555556
  %v2246 = vmul.f32 %v2222, %v2222
  %v2247 = vmul.f32 %v2223, %v2223
  %v2248 = vmul.f32 %v2224, %v2224
  %v2249 = vmul.f32 %v2225, %v2225
  %v2250 = vsub.f32 %v2242, %v2246
  %v2251 = vsub.f32 %v2243, %v2247
  %v2252 = vsub.f32 %v2244, %v2248
  %v2253 = vsub.f32 %v2245, %v2249
  %v2254 = vld [vmem:[%s8] sm:$0xff]
  %v2255 = vld [vmem:[%s8 + $0x8] sm:$0xff]
  %v2256 = vld [vmem:[%s8 + $0x10] sm:$0xff]
  %v2257 = vld [vmem:[%s8 + $0x18] sm:$0xff]
  %v2258 = vadd.f32 %v2250, 1e-05
  %v2259 = vadd.f32 %v2251, 1e-05
  %v2260 = vadd.f32 %v2252, 1e-05
  %v2261 = vadd.f32 %v2253, 1e-05
  %v2262 = vrsqrt.pop %v2258
  %v2263 = vrsqrt.pop %v2259
  %v2264 = vrsqrt.pop %v2260
  %v2265 = vrsqrt.pop %v2261
  %v2266 = vmul.f32 %v2254, %v2262
  %v2267 = vmul.f32 %v2255, %v2263
  %v2268 = vmul.f32 %v2256, %v2264
  %v2269 = vmul.f32 %v2257, %v2265
  %s2270 = scalar_lea.vmem %s8, 32
  %v2271 = vld [vmem:[%s2270] sm:$0xff]
  %v2272 = vld [vmem:[%s2270 + $0x8] sm:$0xff]
  %v2273 = vld [vmem:[%s2270 + $0x10] sm:$0xff]
  %v2274 = vld [vmem:[%s2270 + $0x18] sm:$0xff]
  %v2275 = vmul.f32 %v2222, %v2266
  %v2276 = vmul.f32 %v2223, %v2267
  %v2277 = vmul.f32 %v2224, %v2268
  %v2278 = vmul.f32 %v2225, %v2269
  %v2279 = vsub.f32 %v2271, %v2275
  %v2280 = vsub.f32 %v2272, %v2276
  %v2281 = vsub.f32 %v2273, %v2277
  %v2282 = vsub.f32 %v2274, %v2278
  %2284 = vset.pattern.permute.xlu0 0
  %2285 = vperm.xlu0 %2284, %v2266
  %v2286 = vpop.permute.xlu0 %2285
  %2289 = vset.pattern.permute.xlu0 0
  %2290 = vperm.xlu0 %2289, %v2267
  %v2291 = vpop.permute.xlu0 %2290
  %2294 = vset.pattern.permute.xlu0 0
  %2295 = vperm.xlu0 %2294, %v2268
  %v2296 = vpop.permute.xlu0 %2295
  %2299 = vset.pattern.permute.xlu0 0
  %2300 = vperm.xlu0 %2299, %v2269
  %v2301 = vpop.permute.xlu0 %2300
  %v2303 = vmul.f32 %v2205, %v2286
  %v2304 = vmul.f32 %v2206, %v2291
  %v2305 = vmul.f32 %v2207, %v2296
  %v2306 = vmul.f32 %v2208, %v2301
  %2308 = vset.pattern.permute.xlu0 0
  %2309 = vperm.xlu0 %2308, %v2279
  %v2310 = vpop.permute.xlu0 %2309
  %2313 = vset.pattern.permute.xlu0 0
  %2314 = vperm.xlu0 %2313, %v2280
  %v2315 = vpop.permute.xlu0 %2314
  %2318 = vset.pattern.permute.xlu0 0
  %2319 = vperm.xlu0 %2318, %v2281
  %v2320 = vpop.permute.xlu0 %2319
  %2323 = vset.pattern.permute.xlu0 0
  %2324 = vperm.xlu0 %2323, %v2282
  %v2325 = vpop.permute.xlu0 %2324
  %v2327 = vadd.f32 %v2303, %v2310
  %v2328 = vadd.f32 %v2304, %v2315
  %v2329 = vadd.f32 %v2305, %v2320
  %v2330 = vadd.f32 %v2306, %v2325
  %v2331 = vmax.f32 %v2327, 0.0
  %v2332 = vmax.f32 %v2328, 0.0
  %v2333 = vmax.f32 %v2329, 0.0
  %v2334 = vmax.f32 %v2330, 0.0
  %v2335 = vld [vmem:[%s9] sm:$0xff]
  %v2336 = vld [vmem:[%s9 + $0x8] sm:$0xff]
  %v2337 = vld [vmem:[%s9 + $0x10] sm:$0x3]
  %v2339 = vsel %vm2209, %v2331, 0
  %v2342 = vsel %vm2209, %v2332, 0
  %v2345 = vsel %vm2209, %v2333, 0
  %v2348 = vsel %vm2209, %v2334, 0
  %v2351 = vsel %vm1438, %v2337, 0
  %2353 = vmatprep.subr.mxu0 0.0
  %2354 = vmatpush1.msra.mxu0 %v2335
  %2355 = vmatprep.subr.mxu0 0.0
  %2356 = vmatpush1.msra.mxu0 %v2336
  %2357 = vmatprep.subr.mxu0 0.0
  %2358 = vmatpush1.msra.mxu0 %v2351
  %2359 = vmatprep.subr.mxu0 0.0
  %2360 = vmatpush1.msra.mxu0 0.0
  %2361 = vmatprep.subr.mxu0 0.0
  %2362 = vmatpush1.msra.mxu0 0.0
  %2363 = vmatprep.subr.mxu0 0.0
  %2364 = vmatpush1.msra.mxu0 0.0
  %2365 = vmatprep.subr.mxu0 0.0
  %2366 = vmatpush1.msra.mxu0 0.0
  %2367 = vmatprep.subr.mxu0 0.0
  %2368 = vmatpush1.msra.mxu0 0.0
  %2369 = vmatprep.subr.mxu0 0.0
  %2370 = vmatpush1.msra.mxu0 0.0
  %2371 = vmatprep.subr.mxu0 0.0
  %2372 = vmatpush1.msra.mxu0 0.0
  %2373 = vmatprep.subr.mxu0 0.0
  %2374 = vmatpush1.msra.mxu0 0.0
  %2375 = vmatprep.subr.mxu0 0.0
  %2376 = vmatpush1.msra.mxu0 0.0
  %2377 = vmatprep.subr.mxu0 0.0
  %2378 = vmatpush1.msra.mxu0 0.0
  %2379 = vmatprep.subr.mxu0 0.0
  %2380 = vmatpush1.msra.mxu0 0.0
  %2381 = vmatprep.subr.mxu0 0.0
  %2382 = vmatpush1.msra.mxu0 0.0
  %2383 = vmatprep.subr.mxu0 0.0
  %2384 = vmatpush1.msra.mxu0 0.0
  %2385 = vmatprep.subr.mxu0 0.0
  %2386 = vmatpush1.msra.mxu0 0.0
  %2387 = vmatprep.subr.mxu0 0.0
  %2388 = vmatpush1.msra.mxu0 0.0
  %2389 = vmatprep.subr.mxu0 0.0
  %2390 = vmatpush1.msra.mxu0 0.0
  %2391 = vmatprep.subr.mxu0 0.0
  %2392 = vmatpush1.msra.mxu0 0.0
  %2393 = vmatprep.subr.mxu0 0.0
  %2394 = vmatpush1.msra.mxu0 0.0
  %2395 = vmatprep.subr.mxu0 0.0
  %2396 = vmatpush1.msra.mxu0 0.0
  %2397 = vmatprep.subr.mxu0 0.0
  %2398 = vmatpush1.msra.mxu0 0.0
  %2399 = vmatprep.subr.mxu0 0.0
  %2400 = vmatpush1.msra.mxu0 0.0
  %2401 = vmatprep.subr.mxu0 0.0
  %2402 = vmatpush1.msra.mxu0 0.0
  %2403 = vmatprep.subr.mxu0 0.0
  %2404 = vmatpush1.msra.mxu0 0.0
  %2405 = vmatprep.subr.mxu0 0.0
  %2406 = vmatpush1.msra.mxu0 0.0
  %2407 = vmatprep.subr.mxu0 0.0
  %2408 = vmatpush1.msra.mxu0 0.0
  %2409 = vmatprep.subr.mxu0 0.0
  %2410 = vmatpush1.msra.mxu0 0.0
  %2411 = vmatprep.subr.mxu0 0.0
  %2412 = vmatpush1.msra.mxu0 0.0
  %2413 = vmatprep.subr.mxu0 0.0
  %2414 = vmatpush1.msra.mxu0 0.0
  %2415 = vmatprep.subr.mxu0 0.0
  %2416 = vmatpush1.msra.mxu0 0.0
  %2417 = vmatprep.mubr.f32.mxu0 0.0
  %2418 = vmatmul.mubr.f32.gmra.mrb[0].mxu0 %v2339
  %v2419 = vpop.f32.mrb[0].mxu0
  %v2420 = vadd.f32 0.0, %v2419
  %v2421 = vpop.f32.mrb[0].mxu0
  %2422 = vmatprep.mubr.f32.mxu0 0.0
  %2423 = vmatmul.mubr.f32.gmra.mrb[0].mxu0 %v2342
  %v2424 = vpop.f32.mrb[0].mxu0
  %v2425 = vadd.f32 0.0, %v2424
  %v2426 = vpop.f32.mrb[0].mxu0
  %2427 = vmatprep.mubr.f32.mxu0 0.0
  %2428 = vmatmul.mubr.f32.gmra.mrb[0].mxu0 %v2345
  %v2429 = vpop.f32.mrb[0].mxu0
  %v2430 = vadd.f32 0.0, %v2429
  %v2431 = vpop.f32.mrb[0].mxu0
  %2432 = vmatprep.mubr.f32.mxu0 0.0
  %2433 = vmatmul.mubr.f32.gmra.mrb[0].mxu0 %v2348
  %v2434 = vpop.f32.mrb[0].mxu0
  %v2435 = vadd.f32 0.0, %v2434
  %v2436 = vpop.f32.mrb[0].mxu0
  %2437 = vdwg.mxu0
  %v2438 = vld [vmem:[%s10] sm:$0xff]
  %v2439 = vld [vmem:[%s10 + $0x8] sm:$0xff]
  %v2440 = vld [vmem:[%s10 + $0x10] sm:$0xff]
  %v2441 = vld [vmem:[%s10 + $0x18] sm:$0xff]
  %s2442 = scalar_lea.vmem %s9, 24
  %v2443 = vld [vmem:[%s2442] sm:$0xff]
  %v2444 = vld [vmem:[%s2442 + $0x8] sm:$0xff]
  %v2445 = vld [vmem:[%s2442 + $0x10] sm:$0x3]
  %v2447 = vsel %vm1438, %v2445, 0
  %2449 = vmatprep.subr.mxu0 0.0
  %2450 = vmatpush1.msra.mxu0 %v2443
  %2451 = vmatprep.subr.mxu0 0.0
  %2452 = vmatpush1.msra.mxu0 %v2444
  %2453 = vmatprep.subr.mxu0 0.0
  %2454 = vmatpush1.msra.mxu0 %v2447
  %2455 = vmatprep.subr.mxu0 0.0
  %2456 = vmatpush1.msra.mxu0 0.0
  %2457 = vmatprep.subr.mxu0 0.0
  %2458 = vmatpush1.msra.mxu0 0.0
  %2459 = vmatprep.subr.mxu0 0.0
  %2460 = vmatpush1.msra.mxu0 0.0
  %2461 = vmatprep.subr.mxu0 0.0
  %2462 = vmatpush1.msra.mxu0 0.0
  %2463 = vmatprep.subr.mxu0 0.0
  %2464 = vmatpush1.msra.mxu0 0.0
  %2465 = vmatprep.subr.mxu0 0.0
  %2466 = vmatpush1.msra.mxu0 0.0
  %2467 = vmatprep.subr.mxu0 0.0
  %2468 = vmatpush1.msra.mxu0 0.0
  %2469 = vmatprep.subr.mxu0 0.0
  %2470 = vmatpush1.msra.mxu0 0.0
  %2471 = vmatprep.subr.mxu0 0.0
  %2472 = vmatpush1.msra.mxu0 0.0
  %2473 = vmatprep.subr.mxu0 0.0
  %2474 = vmatpush1.msra.mxu0 0.0
  %2475 = vmatprep.subr.mxu0 0.0
  %2476 = vmatpush1.msra.mxu0 0.0
  %2477 = vmatprep.subr.mxu0 0.0
  %2478 = vmatpush1.msra.mxu0 0.0
  %2479 = vmatprep.subr.mxu0 0.0
  %2480 = vmatpush1.msra.mxu0 0.0
  %2481 = vmatprep.subr.mxu0 0.0
  %2482 = vmatpush1.msra.mxu0 0.0
  %2483 = vmatprep.subr.mxu0 0.0
  %2484 = vmatpush1.msra.mxu0 0.0
  %2485 = vmatprep.subr.mxu0 0.0
  %2486 = vmatpush1.msra.mxu0 0.0
  %2487 = vmatprep.subr.mxu0 0.0
  %2488 = vmatpush1.msra.mxu0 0.0
  %2489 = vmatprep.subr.mxu0 0.0
  %2490 = vmatpush1.msra.mxu0 0.0
  %2491 = vmatprep.subr.mxu0 0.0
  %2492 = vmatpush1.msra.mxu0 0.0
  %2493 = vmatprep.subr.mxu0 0.0
  %2494 = vmatpush1.msra.mxu0 0.0
  %2495 = vmatprep.subr.mxu0 0.0
  %2496 = vmatpush1.msra.mxu0 0.0
  %2497 = vmatprep.subr.mxu0 0.0
  %2498 = vmatpush1.msra.mxu0 0.0
  %2499 = vmatprep.subr.mxu0 0.0
  %2500 = vmatpush1.msra.mxu0 0.0
  %2501 = vmatprep.subr.mxu0 0.0
  %2502 = vmatpush1.msra.mxu0 0.0
  %2503 = vmatprep.subr.mxu0 0.0
  %2504 = vmatpush1.msra.mxu0 0.0
  %2505 = vmatprep.subr.mxu0 0.0
  %2506 = vmatpush1.msra.mxu0 0.0
  %2507 = vmatprep.subr.mxu0 0.0
  %2508 = vmatpush1.msra.mxu0 0.0
  %2509 = vmatprep.subr.mxu0 0.0
  %2510 = vmatpush1.msra.mxu0 0.0
  %2511 = vmatprep.subr.mxu0 0.0
  %2512 = vmatpush1.msra.mxu0 0.0
  %2513 = vmatprep.mubr.f32.mxu0 0.0
  %2514 = vmatmul.mubr.f32.gmra.mrb[0].mxu0 %v2339
  %v2515 = vpop.f32.mrb[0].mxu0
  %v2516 = vadd.f32 0.0, %v2515
  %v2517 = vpop.f32.mrb[0].mxu0
  %2518 = vmatprep.mubr.f32.mxu0 0.0
  %2519 = vmatmul.mubr.f32.gmra.mrb[0].mxu0 %v2342
  %v2520 = vpop.f32.mrb[0].mxu0
  %v2521 = vadd.f32 0.0, %v2520
  %v2522 = vpop.f32.mrb[0].mxu0
  %2523 = vmatprep.mubr.f32.mxu0 0.0
  %2524 = vmatmul.mubr.f32.gmra.mrb[0].mxu0 %v2345
  %v2525 = vpop.f32.mrb[0].mxu0
  %v2526 = vadd.f32 0.0, %v2525
  %v2527 = vpop.f32.mrb[0].mxu0
  %2528 = vmatprep.mubr.f32.mxu0 0.0
  %2529 = vmatmul.mubr.f32.gmra.mrb[0].mxu0 %v2348
  %v2530 = vpop.f32.mrb[0].mxu0
  %v2531 = vadd.f32 0.0, %v2530
  %v2532 = vpop.f32.mrb[0].mxu0
  %2533 = vdwg.mxu0
  %s2534 = scalar_lea.vmem %s10, 32
  %v2535 = vld [vmem:[%s2534] sm:$0xff]
  %v2536 = vld [vmem:[%s2534 + $0x8] sm:$0xff]
  %v2537 = vld [vmem:[%s2534 + $0x10] sm:$0xff]
  %v2538 = vld [vmem:[%s2534 + $0x18] sm:$0xff]
  %vm2539 = vcmask 261120
  %v2541 = vsel %vm2539, %v2535, 0
  %v2544 = vsel %vm2539, %v2536, 0
  %v2547 = vsel %vm2539, %v2537, 0
  %v2550 = vsel %vm2539, %v2538, 0
  %2552 = vmatprep.subr.mxu0 0.0
  %2553 = vmatpush1.msra.mxu0 %v2516
  %2554 = vmatprep.subr.mxu0 0.0
  %2555 = vmatpush1.msra.mxu0 %v2521
  %2556 = vmatprep.subr.mxu0 0.0
  %2557 = vmatpush1.msra.mxu0 %v2526
  %2558 = vmatprep.subr.mxu0 0.0
  %2559 = vmatpush1.msra.mxu0 %v2531
  %2560 = vmatprep.subr.mxu0 0.0
  %2561 = vmatpush1.msra.mxu0 0.0
  %2562 = vmatprep.subr.mxu0 0.0
  %2563 = vmatpush1.msra.mxu0 0.0
  %2564 = vmatprep.subr.mxu0 0.0
  %2565 = vmatpush1.msra.mxu0 0.0
  %2566 = vmatprep.subr.mxu0 0.0
  %2567 = vmatpush1.msra.mxu0 0.0
  %2568 = vmatprep.subr.mxu0 0.0
  %2569 = vmatpush1.msra.mxu0 0.0
  %2570 = vmatprep.subr.mxu0 0.0
  %2571 = vmatpush1.msra.mxu0 0.0
  %2572 = vmatprep.subr.mxu0 0.0
  %2573 = vmatpush1.msra.mxu0 0.0
  %2574 = vmatprep.subr.mxu0 0.0
  %2575 = vmatpush1.msra.mxu0 0.0
  %2576 = vmatprep.subr.mxu0 0.0
  %2577 = vmatpush1.msra.mxu0 0.0
  %2578 = vmatprep.subr.mxu0 0.0
  %2579 = vmatpush1.msra.mxu0 0.0
  %2580 = vmatprep.subr.mxu0 0.0
  %2581 = vmatpush1.msra.mxu0 0.0
  %2582 = vmatprep.subr.mxu0 0.0
  %2583 = vmatpush1.msra.mxu0 0.0
  %2584 = vmatprep.subr.mxu0 0.0
  %2585 = vmatpush1.msra.mxu0 0.0
  %2586 = vmatprep.subr.mxu0 0.0
  %2587 = vmatpush1.msra.mxu0 0.0
  %2588 = vmatprep.subr.mxu0 0.0
  %2589 = vmatpush1.msra.mxu0 0.0
  %2590 = vmatprep.subr.mxu0 0.0
  %2591 = vmatpush1.msra.mxu0 0.0
  %2592 = vmatprep.subr.mxu0 0.0
  %2593 = vmatpush1.msra.mxu0 0.0
  %2594 = vmatprep.subr.mxu0 0.0
  %2595 = vmatpush1.msra.mxu0 0.0
  %2596 = vmatprep.subr.mxu0 0.0
  %2597 = vmatpush1.msra.mxu0 0.0
  %2598 = vmatprep.subr.mxu0 0.0
  %2599 = vmatpush1.msra.mxu0 0.0
  %2600 = vmatprep.subr.mxu0 0.0
  %2601 = vmatpush1.msra.mxu0 0.0
  %2602 = vmatprep.subr.mxu0 0.0
  %2603 = vmatpush1.msra.mxu0 0.0
  %2604 = vmatprep.subr.mxu0 0.0
  %2605 = vmatpush1.msra.mxu0 0.0
  %2606 = vmatprep.subr.mxu0 0.0
  %2607 = vmatpush1.msra.mxu0 0.0
  %2608 = vmatprep.subr.mxu0 0.0
  %2609 = vmatpush1.msra.mxu0 0.0
  %2610 = vmatprep.subr.mxu0 0.0
  %2611 = vmatpush1.msra.mxu0 0.0
  %2612 = vmatprep.subr.mxu0 0.0
  %2613 = vmatpush1.msra.mxu0 0.0
  %2614 = vmatprep.subr.mxu0 0.0
  %2615 = vmatpush1.msra.mxu0 0.0
  %2616 = vmatprep.mubr.f32.mxu0 0.0
  %2617 = vmatmul.mubr.f32.gmra.mrb[0].mxu0 %v2541
  %v2618 = vpop.f32.mrb[0].mxu0
  %v2619 = vadd.f32 0.0, %v2618
  %v2620 = vpop.f32.mrb[0].mxu0
  %2621 = vmatprep.mubr.f32.mxu0 0.0
  %2622 = vmatmul.mubr.f32.gmra.mrb[0].mxu0 %v2544
  %v2623 = vpop.f32.mrb[0].mxu0
  %v2624 = vadd.f32 0.0, %v2623
  %v2625 = vpop.f32.mrb[0].mxu0
  %2626 = vmatprep.mubr.f32.mxu0 0.0
  %2627 = vmatmul.mubr.f32.gmra.mrb[0].mxu0 %v2547
  %v2628 = vpop.f32.mrb[0].mxu0
  %v2629 = vadd.f32 0.0, %v2628
  %v2630 = vpop.f32.mrb[0].mxu0
  %2631 = vmatprep.mubr.f32.mxu0 0.0
  %2632 = vmatmul.mubr.f32.gmra.mrb[0].mxu0 %v2550
  %v2633 = vpop.f32.mrb[0].mxu0
  %v2634 = vadd.f32 0.0, %v2633
  %v2635 = vpop.f32.mrb[0].mxu0
  %2636 = vdwg.mxu0
  %v2638 = vsel %vm2539, %v2438, 0
  %v2641 = vsel %vm2539, %v2439, 0
  %v2644 = vsel %vm2539, %v2440, 0
  %v2647 = vsel %vm2539, %v2441, 0
  %2649 = vmatprep.subr.mxu0 0.0
  %2650 = vmatpush1.msra.mxu0 %v2420
  %2651 = vmatprep.subr.mxu0 0.0
  %2652 = vmatpush1.msra.mxu0 %v2425
  %2653 = vmatprep.subr.mxu0 0.0
  %2654 = vmatpush1.msra.mxu0 %v2430
  %2655 = vmatprep.subr.mxu0 0.0
  %2656 = vmatpush1.msra.mxu0 %v2435
  %2657 = vmatprep.subr.mxu0 0.0
  %2658 = vmatpush1.msra.mxu0 0.0
  %2659 = vmatprep.subr.mxu0 0.0
  %2660 = vmatpush1.msra.mxu0 0.0
  %2661 = vmatprep.subr.mxu0 0.0
  %2662 = vmatpush1.msra.mxu0 0.0
  %2663 = vmatprep.subr.mxu0 0.0
  %2664 = vmatpush1.msra.mxu0 0.0
  %2665 = vmatprep.subr.mxu0 0.0
  %2666 = vmatpush1.msra.mxu0 0.0
  %2667 = vmatprep.subr.mxu0 0.0
  %2668 = vmatpush1.msra.mxu0 0.0
  %2669 = vmatprep.subr.mxu0 0.0
  %2670 = vmatpush1.msra.mxu0 0.0
  %2671 = vmatprep.subr.mxu0 0.0
  %2672 = vmatpush1.msra.mxu0 0.0
  %2673 = vmatprep.subr.mxu0 0.0
  %2674 = vmatpush1.msra.mxu0 0.0
  %2675 = vmatprep.subr.mxu0 0.0
  %2676 = vmatpush1.msra.mxu0 0.0
  %2677 = vmatprep.subr.mxu0 0.0
  %2678 = vmatpush1.msra.mxu0 0.0
  %2679 = vmatprep.subr.mxu0 0.0
  %2680 = vmatpush1.msra.mxu0 0.0
  %2681 = vmatprep.subr.mxu0 0.0
  %2682 = vmatpush1.msra.mxu0 0.0
  %2683 = vmatprep.subr.mxu0 0.0
  %2684 = vmatpush1.msra.mxu0 0.0
  %2685 = vmatprep.subr.mxu0 0.0
  %2686 = vmatpush1.msra.mxu0 0.0
  %2687 = vmatprep.subr.mxu0 0.0
  %2688 = vmatpush1.msra.mxu0 0.0
  %2689 = vmatprep.subr.mxu0 0.0
  %2690 = vmatpush1.msra.mxu0 0.0
  %2691 = vmatprep.subr.mxu0 0.0
  %2692 = vmatpush1.msra.mxu0 0.0
  %2693 = vmatprep.subr.mxu0 0.0
  %2694 = vmatpush1.msra.mxu0 0.0
  %2695 = vmatprep.subr.mxu0 0.0
  %2696 = vmatpush1.msra.mxu0 0.0
  %2697 = vmatprep.subr.mxu0 0.0
  %2698 = vmatpush1.msra.mxu0 0.0
  %2699 = vmatprep.subr.mxu0 0.0
  %2700 = vmatpush1.msra.mxu0 0.0
  %2701 = vmatprep.subr.mxu0 0.0
  %2702 = vmatpush1.msra.mxu0 0.0
  %2703 = vmatprep.subr.mxu0 0.0
  %2704 = vmatpush1.msra.mxu0 0.0
  %2705 = vmatprep.subr.mxu0 0.0
  %2706 = vmatpush1.msra.mxu0 0.0
  %2707 = vmatprep.subr.mxu0 0.0
  %2708 = vmatpush1.msra.mxu0 0.0
  %2709 = vmatprep.subr.mxu0 0.0
  %2710 = vmatpush1.msra.mxu0 0.0
  %2711 = vmatprep.subr.mxu0 0.0
  %2712 = vmatpush1.msra.mxu0 0.0
  %2713 = vmatprep.mubr.f32.mxu0 0.0
  %2714 = vmatmul.mubr.f32.gmra.mrb[0].mxu0 %v2638
  %v2715 = vpop.f32.mrb[0].mxu0
  %v2716 = vadd.f32 %v2619, %v2715
  %v2717 = vpop.f32.mrb[0].mxu0
  %2718 = vmatprep.mubr.f32.mxu0 0.0
  %2719 = vmatmul.mubr.f32.gmra.mrb[0].mxu0 %v2641
  %v2720 = vpop.f32.mrb[0].mxu0
  %v2721 = vadd.f32 %v2624, %v2720
  %v2722 = vpop.f32.mrb[0].mxu0
  %2723 = vmatprep.mubr.f32.mxu0 0.0
  %2724 = vmatmul.mubr.f32.gmra.mrb[0].mxu0 %v2644
  %v2725 = vpop.f32.mrb[0].mxu0
  %v2726 = vadd.f32 %v2629, %v2725
  %v2727 = vpop.f32.mrb[0].mxu0
  %2728 = vmatprep.mubr.f32.mxu0 0.0
  %2729 = vmatmul.mubr.f32.gmra.mrb[0].mxu0 %v2647
  %v2730 = vpop.f32.mrb[0].mxu0
  %v2731 = vadd.f32 %v2634, %v2730
  %v2732 = vpop.f32.mrb[0].mxu0
  %2733 = vdwg.mxu0
  %s2734 = scalar_lea.vmem %s9, 48
  %v2735 = vld [vmem:[%s2734] sm:$0xff]
  %v2736 = vld [vmem:[%s2734 + $0x8] sm:$0xff]
  %v2737 = vld [vmem:[%s2734 + $0x10] sm:$0x3]
  %v2739 = vsel %vm1438, %v2737, 0
  %2741 = vmatprep.subr.mxu0 0.0
  %2742 = vmatpush1.msra.mxu0 %v2735
  %2743 = vmatprep.subr.mxu0 0.0
  %2744 = vmatpush1.msra.mxu0 %v2736
  %2745 = vmatprep.subr.mxu0 0.0
  %2746 = vmatpush1.msra.mxu0 %v2739
  %2747 = vmatprep.subr.mxu0 0.0
  %2748 = vmatpush1.msra.mxu0 0.0
  %2749 = vmatprep.subr.mxu0 0.0
  %2750 = vmatpush1.msra.mxu0 0.0
  %2751 = vmatprep.subr.mxu0 0.0
  %2752 = vmatpush1.msra.mxu0 0.0
  %2753 = vmatprep.subr.mxu0 0.0
  %2754 = vmatpush1.msra.mxu0 0.0
  %2755 = vmatprep.subr.mxu0 0.0
  %2756 = vmatpush1.msra.mxu0 0.0
  %2757 = vmatprep.subr.mxu0 0.0
  %2758 = vmatpush1.msra.mxu0 0.0
  %2759 = vmatprep.subr.mxu0 0.0
  %2760 = vmatpush1.msra.mxu0 0.0
  %2761 = vmatprep.subr.mxu0 0.0
  %2762 = vmatpush1.msra.mxu0 0.0
  %2763 = vmatprep.subr.mxu0 0.0
  %2764 = vmatpush1.msra.mxu0 0.0
  %2765 = vmatprep.subr.mxu0 0.0
  %2766 = vmatpush1.msra.mxu0 0.0
  %2767 = vmatprep.subr.mxu0 0.0
  %2768 = vmatpush1.msra.mxu0 0.0
  %2769 = vmatprep.subr.mxu0 0.0
  %2770 = vmatpush1.msra.mxu0 0.0
  %2771 = vmatprep.subr.mxu0 0.0
  %2772 = vmatpush1.msra.mxu0 0.0
  %2773 = vmatprep.subr.mxu0 0.0
  %2774 = vmatpush1.msra.mxu0 0.0
  %2775 = vmatprep.subr.mxu0 0.0
  %2776 = vmatpush1.msra.mxu0 0.0
  %2777 = vmatprep.subr.mxu0 0.0
  %2778 = vmatpush1.msra.mxu0 0.0
  %2779 = vmatprep.subr.mxu0 0.0
  %2780 = vmatpush1.msra.mxu0 0.0
  %2781 = vmatprep.subr.mxu0 0.0
  %2782 = vmatpush1.msra.mxu0 0.0
  %2783 = vmatprep.subr.mxu0 0.0
  %2784 = vmatpush1.msra.mxu0 0.0
  %2785 = vmatprep.subr.mxu0 0.0
  %2786 = vmatpush1.msra.mxu0 0.0
  %2787 = vmatprep.subr.mxu0 0.0
  %2788 = vmatpush1.msra.mxu0 0.0
  %2789 = vmatprep.subr.mxu0 0.0
  %2790 = vmatpush1.msra.mxu0 0.0
  %2791 = vmatprep.subr.mxu0 0.0
  %2792 = vmatpush1.msra.mxu0 0.0
  %2793 = vmatprep.subr.mxu0 0.0
  %2794 = vmatpush1.msra.mxu0 0.0
  %2795 = vmatprep.subr.mxu0 0.0
  %2796 = vmatpush1.msra.mxu0 0.0
  %2797 = vmatprep.subr.mxu0 0.0
  %2798 = vmatpush1.msra.mxu0 0.0
  %2799 = vmatprep.subr.mxu0 0.0
  %2800 = vmatpush1.msra.mxu0 0.0
  %2801 = vmatprep.subr.mxu0 0.0
  %2802 = vmatpush1.msra.mxu0 0.0
  %2803 = vmatprep.subr.mxu0 0.0
  %2804 = vmatpush1.msra.mxu0 0.0
  %2805 = vmatprep.mubr.f32.mxu0 0.0
  %2806 = vmatmul.mubr.f32.gmra.mrb[0].mxu0 %v2339
  %v2807 = vpop.f32.mrb[0].mxu0
  %v2808 = vadd.f32 0.0, %v2807
  %v2809 = vpop.f32.mrb[0].mxu0
  %2810 = vmatprep.mubr.f32.mxu0 0.0
  %2811 = vmatmul.mubr.f32.gmra.mrb[0].mxu0 %v2342
  %v2812 = vpop.f32.mrb[0].mxu0
  %v2813 = vadd.f32 0.0, %v2812
  %v2814 = vpop.f32.mrb[0].mxu0
  %2815 = vmatprep.mubr.f32.mxu0 0.0
  %2816 = vmatmul.mubr.f32.gmra.mrb[0].mxu0 %v2345
  %v2817 = vpop.f32.mrb[0].mxu0
  %v2818 = vadd.f32 0.0, %v2817
  %v2819 = vpop.f32.mrb[0].mxu0
  %2820 = vmatprep.mubr.f32.mxu0 0.0
  %2821 = vmatmul.mubr.f32.gmra.mrb[0].mxu0 %v2348
  %v2822 = vpop.f32.mrb[0].mxu0
  %v2823 = vadd.f32 0.0, %v2822
  %v2824 = vpop.f32.mrb[0].mxu0
  %2825 = vdwg.mxu0
  %s2826 = scalar_lea.vmem %s10, 64
  %v2827 = vld [vmem:[%s2826] sm:$0xff]
  %v2828 = vld [vmem:[%s2826 + $0x8] sm:$0xff]
  %v2829 = vld [vmem:[%s2826 + $0x10] sm:$0xff]
  %v2830 = vld [vmem:[%s2826 + $0x18] sm:$0xff]
  %v2832 = vsel %vm2539, %v2827, 0
  %v2835 = vsel %vm2539, %v2828, 0
  %v2838 = vsel %vm2539, %v2829, 0
  %v2841 = vsel %vm2539, %v2830, 0
  %2843 = vmatprep.subr.mxu0 0.0
  %2844 = vmatpush1.msra.mxu0 %v2808
  %2845 = vmatprep.subr.mxu0 0.0
  %2846 = vmatpush1.msra.mxu0 %v2813
  %2847 = vmatprep.subr.mxu0 0.0
  %2848 = vmatpush1.msra.mxu0 %v2818
  %2849 = vmatprep.subr.mxu0 0.0
  %2850 = vmatpush1.msra.mxu0 %v2823
  %2851 = vmatprep.subr.mxu0 0.0
  %2852 = vmatpush1.msra.mxu0 0.0
  %2853 = vmatprep.subr.mxu0 0.0
  %2854 = vmatpush1.msra.mxu0 0.0
  %2855 = vmatprep.subr.mxu0 0.0
  %2856 = vmatpush1.msra.mxu0 0.0
  %2857 = vmatprep.subr.mxu0 0.0
  %2858 = vmatpush1.msra.mxu0 0.0
  %2859 = vmatprep.subr.mxu0 0.0
  %2860 = vmatpush1.msra.mxu0 0.0
  %2861 = vmatprep.subr.mxu0 0.0
  %2862 = vmatpush1.msra.mxu0 0.0
  %2863 = vmatprep.subr.mxu0 0.0
  %2864 = vmatpush1.msra.mxu0 0.0
  %2865 = vmatprep.subr.mxu0 0.0
  %2866 = vmatpush1.msra.mxu0 0.0
  %2867 = vmatprep.subr.mxu0 0.0
  %2868 = vmatpush1.msra.mxu0 0.0
  %2869 = vmatprep.subr.mxu0 0.0
  %2870 = vmatpush1.msra.mxu0 0.0
  %2871 = vmatprep.subr.mxu0 0.0
  %2872 = vmatpush1.msra.mxu0 0.0
  %2873 = vmatprep.subr.mxu0 0.0
  %2874 = vmatpush1.msra.mxu0 0.0
  %2875 = vmatprep.subr.mxu0 0.0
  %2876 = vmatpush1.msra.mxu0 0.0
  %2877 = vmatprep.subr.mxu0 0.0
  %2878 = vmatpush1.msra.mxu0 0.0
  %2879 = vmatprep.subr.mxu0 0.0
  %2880 = vmatpush1.msra.mxu0 0.0
  %2881 = vmatprep.subr.mxu0 0.0
  %2882 = vmatpush1.msra.mxu0 0.0
  %2883 = vmatprep.subr.mxu0 0.0
  %2884 = vmatpush1.msra.mxu0 0.0
  %2885 = vmatprep.subr.mxu0 0.0
  %2886 = vmatpush1.msra.mxu0 0.0
  %2887 = vmatprep.subr.mxu0 0.0
  %2888 = vmatpush1.msra.mxu0 0.0
  %2889 = vmatprep.subr.mxu0 0.0
  %2890 = vmatpush1.msra.mxu0 0.0
  %2891 = vmatprep.subr.mxu0 0.0
  %2892 = vmatpush1.msra.mxu0 0.0
  %2893 = vmatprep.subr.mxu0 0.0
  %2894 = vmatpush1.msra.mxu0 0.0
  %2895 = vmatprep.subr.mxu0 0.0
  %2896 = vmatpush1.msra.mxu0 0.0
  %2897 = vmatprep.subr.mxu0 0.0
  %2898 = vmatpush1.msra.mxu0 0.0
  %2899 = vmatprep.subr.mxu0 0.0
  %2900 = vmatpush1.msra.mxu0 0.0
  %2901 = vmatprep.subr.mxu0 0.0
  %2902 = vmatpush1.msra.mxu0 0.0
  %2903 = vmatprep.subr.mxu0 0.0
  %2904 = vmatpush1.msra.mxu0 0.0
  %2905 = vmatprep.subr.mxu0 0.0
  %2906 = vmatpush1.msra.mxu0 0.0
  %2907 = vmatprep.mubr.f32.mxu0 0.0
  %2908 = vmatmul.mubr.f32.gmra.mrb[0].mxu0 %v2832
  %v2909 = vpop.f32.mrb[0].mxu0
  %v2910 = vadd.f32 0.0, %v2909
  %v2911 = vpop.f32.mrb[0].mxu0
  %2912 = vmatprep.mubr.f32.mxu0 0.0
  %2913 = vmatmul.mubr.f32.gmra.mrb[0].mxu0 %v2835
  %v2914 = vpop.f32.mrb[0].mxu0
  %v2915 = vadd.f32 0.0, %v2914
  %v2916 = vpop.f32.mrb[0].mxu0
  %2917 = vmatprep.mubr.f32.mxu0 0.0
  %2918 = vmatmul.mubr.f32.gmra.mrb[0].mxu0 %v2838
  %v2919 = vpop.f32.mrb[0].mxu0
  %v2920 = vadd.f32 0.0, %v2919
  %v2921 = vpop.f32.mrb[0].mxu0
  %2922 = vmatprep.mubr.f32.mxu0 0.0
  %2923 = vmatmul.mubr.f32.gmra.mrb[0].mxu0 %v2841
  %v2924 = vpop.f32.mrb[0].mxu0
  %v2925 = vadd.f32 0.0, %v2924
  %v2926 = vpop.f32.mrb[0].mxu0
  %2927 = vdwg.mxu0
  %v2928 = vadd.f32 %v2716, %v2910
  %v2929 = vadd.f32 %v2721, %v2915
  %v2930 = vadd.f32 %v2726, %v2920
  %v2931 = vadd.f32 %v2731, %v2925
  %s2932 = scalar_lea.vmem %s9, 72
  %v2933 = vld [vmem:[%s2932] sm:$0xff]
  %v2934 = vld [vmem:[%s2932 + $0x8] sm:$0xff]
  %v2935 = vld [vmem:[%s2932 + $0x10] sm:$0x3]
  %v2937 = vsel %vm1438, %v2935, 0
  %2939 = vmatprep.subr.mxu0 0.0
  %2940 = vmatpush1.msra.mxu0 %v2933
  %2941 = vmatprep.subr.mxu0 0.0
  %2942 = vmatpush1.msra.mxu0 %v2934
  %2943 = vmatprep.subr.mxu0 0.0
  %2944 = vmatpush1.msra.mxu0 %v2937
  %2945 = vmatprep.subr.mxu0 0.0
  %2946 = vmatpush1.msra.mxu0 0.0
  %2947 = vmatprep.subr.mxu0 0.0
  %2948 = vmatpush1.msra.mxu0 0.0
  %2949 = vmatprep.subr.mxu0 0.0
  %2950 = vmatpush1.msra.mxu0 0.0
  %2951 = vmatprep.subr.mxu0 0.0
  %2952 = vmatpush1.msra.mxu0 0.0
  %2953 = vmatprep.subr.mxu0 0.0
  %2954 = vmatpush1.msra.mxu0 0.0
  %2955 = vmatprep.subr.mxu0 0.0
  %2956 = vmatpush1.msra.mxu0 0.0
  %2957 = vmatprep.subr.mxu0 0.0
  %2958 = vmatpush1.msra.mxu0 0.0
  %2959 = vmatprep.subr.mxu0 0.0
  %2960 = vmatpush1.msra.mxu0 0.0
  %2961 = vmatprep.subr.mxu0 0.0
  %2962 = vmatpush1.msra.mxu0 0.0
  %2963 = vmatprep.subr.mxu0 0.0
  %2964 = vmatpush1.msra.mxu0 0.0
  %2965 = vmatprep.subr.mxu0 0.0
  %2966 = vmatpush1.msra.mxu0 0.0
  %2967 = vmatprep.subr.mxu0 0.0
  %2968 = vmatpush1.msra.mxu0 0.0
  %2969 = vmatprep.subr.mxu0 0.0
  %2970 = vmatpush1.msra.mxu0 0.0
  %2971 = vmatprep.subr.mxu0 0.0
  %2972 = vmatpush1.msra.mxu0 0.0
  %2973 = vmatprep.subr.mxu0 0.0
  %2974 = vmatpush1.msra.mxu0 0.0
  %2975 = vmatprep.subr.mxu0 0.0
  %2976 = vmatpush1.msra.mxu0 0.0
  %2977 = vmatprep.subr.mxu0 0.0
  %2978 = vmatpush1.msra.mxu0 0.0
  %2979 = vmatprep.subr.mxu0 0.0
  %2980 = vmatpush1.msra.mxu0 0.0
  %2981 = vmatprep.subr.mxu0 0.0
  %2982 = vmatpush1.msra.mxu0 0.0
  %2983 = vmatprep.subr.mxu0 0.0
  %2984 = vmatpush1.msra.mxu0 0.0
  %2985 = vmatprep.subr.mxu0 0.0
  %2986 = vmatpush1.msra.mxu0 0.0
  %2987 = vmatprep.subr.mxu0 0.0
  %2988 = vmatpush1.msra.mxu0 0.0
  %2989 = vmatprep.subr.mxu0 0.0
  %2990 = vmatpush1.msra.mxu0 0.0
  %2991 = vmatprep.subr.mxu0 0.0
  %2992 = vmatpush1.msra.mxu0 0.0
  %2993 = vmatprep.subr.mxu0 0.0
  %2994 = vmatpush1.msra.mxu0 0.0
  %2995 = vmatprep.subr.mxu0 0.0
  %2996 = vmatpush1.msra.mxu0 0.0
  %2997 = vmatprep.subr.mxu0 0.0
  %2998 = vmatpush1.msra.mxu0 0.0
  %2999 = vmatprep.subr.mxu0 0.0
  %3000 = vmatpush1.msra.mxu0 0.0
  %3001 = vmatprep.subr.mxu0 0.0
  %3002 = vmatpush1.msra.mxu0 0.0
  %3003 = vmatprep.mubr.f32.mxu0 0.0
  %3004 = vmatmul.mubr.f32.gmra.mrb[0].mxu0 %v2339
  %v3005 = vpop.f32.mrb[0].mxu0
  %v3006 = vadd.f32 0.0, %v3005
  %v3007 = vpop.f32.mrb[0].mxu0
  %3008 = vmatprep.mubr.f32.mxu0 0.0
  %3009 = vmatmul.mubr.f32.gmra.mrb[0].mxu0 %v2342
  %v3010 = vpop.f32.mrb[0].mxu0
  %v3011 = vadd.f32 0.0, %v3010
  %v3012 = vpop.f32.mrb[0].mxu0
  %3013 = vmatprep.mubr.f32.mxu0 0.0
  %3014 = vmatmul.mubr.f32.gmra.mrb[0].mxu0 %v2345
  %v3015 = vpop.f32.mrb[0].mxu0
  %v3016 = vadd.f32 0.0, %v3015
  %v3017 = vpop.f32.mrb[0].mxu0
  %3018 = vmatprep.mubr.f32.mxu0 0.0
  %3019 = vmatmul.mubr.f32.gmra.mrb[0].mxu0 %v2348
  %v3020 = vpop.f32.mrb[0].mxu0
  %v3021 = vadd.f32 0.0, %v3020
  %v3022 = vpop.f32.mrb[0].mxu0
  %3023 = vdwg.mxu0
  %s3024 = scalar_lea.vmem %s10, 96
  %v3025 = vld [vmem:[%s3024] sm:$0xff]
  %v3026 = vld [vmem:[%s3024 + $0x8] sm:$0xff]
  %v3027 = vld [vmem:[%s3024 + $0x10] sm:$0xff]
  %v3028 = vld [vmem:[%s3024 + $0x18] sm:$0xff]
  %v3030 = vsel %vm2539, %v3025, 0
  %v3033 = vsel %vm2539, %v3026, 0
  %v3036 = vsel %vm2539, %v3027, 0
  %v3039 = vsel %vm2539, %v3028, 0
  %3041 = vmatprep.subr.mxu0 0.0
  %3042 = vmatpush1.msra.mxu0 %v3006
  %3043 = vmatprep.subr.mxu0 0.0
  %3044 = vmatpush1.msra.mxu0 %v3011
  %3045 = vmatprep.subr.mxu0 0.0
  %3046 = vmatpush1.msra.mxu0 %v3016
  %3047 = vmatprep.subr.mxu0 0.0
  %3048 = vmatpush1.msra.mxu0 %v3021
  %3049 = vmatprep.subr.mxu0 0.0
  %3050 = vmatpush1.msra.mxu0 0.0
  %3051 = vmatprep.subr.mxu0 0.0
  %3052 = vmatpush1.msra.mxu0 0.0
  %3053 = vmatprep.subr.mxu0 0.0
  %3054 = vmatpush1.msra.mxu0 0.0
  %3055 = vmatprep.subr.mxu0 0.0
  %3056 = vmatpush1.msra.mxu0 0.0
  %3057 = vmatprep.subr.mxu0 0.0
  %3058 = vmatpush1.msra.mxu0 0.0
  %3059 = vmatprep.subr.mxu0 0.0
  %3060 = vmatpush1.msra.mxu0 0.0
  %3061 = vmatprep.subr.mxu0 0.0
  %3062 = vmatpush1.msra.mxu0 0.0
  %3063 = vmatprep.subr.mxu0 0.0
  %3064 = vmatpush1.msra.mxu0 0.0
  %3065 = vmatprep.subr.mxu0 0.0
  %3066 = vmatpush1.msra.mxu0 0.0
  %3067 = vmatprep.subr.mxu0 0.0
  %3068 = vmatpush1.msra.mxu0 0.0
  %3069 = vmatprep.subr.mxu0 0.0
  %3070 = vmatpush1.msra.mxu0 0.0
  %3071 = vmatprep.subr.mxu0 0.0
  %3072 = vmatpush1.msra.mxu0 0.0
  %3073 = vmatprep.subr.mxu0 0.0
  %3074 = vmatpush1.msra.mxu0 0.0
  %3075 = vmatprep.subr.mxu0 0.0
  %3076 = vmatpush1.msra.mxu0 0.0
  %3077 = vmatprep.subr.mxu0 0.0
  %3078 = vmatpush1.msra.mxu0 0.0
  %3079 = vmatprep.subr.mxu0 0.0
  %3080 = vmatpush1.msra.mxu0 0.0
  %3081 = vmatprep.subr.mxu0 0.0
  %3082 = vmatpush1.msra.mxu0 0.0
  %3083 = vmatprep.subr.mxu0 0.0
  %3084 = vmatpush1.msra.mxu0 0.0
  %3085 = vmatprep.subr.mxu0 0.0
  %3086 = vmatpush1.msra.mxu0 0.0
  %3087 = vmatprep.subr.mxu0 0.0
  %3088 = vmatpush1.msra.mxu0 0.0
  %3089 = vmatprep.subr.mxu0 0.0
  %3090 = vmatpush1.msra.mxu0 0.0
  %3091 = vmatprep.subr.mxu0 0.0
  %3092 = vmatpush1.msra.mxu0 0.0
  %3093 = vmatprep.subr.mxu0 0.0
  %3094 = vmatpush1.msra.mxu0 0.0
  %3095 = vmatprep.subr.mxu0 0.0
  %3096 = vmatpush1.msra.mxu0 0.0
  %3097 = vmatprep.subr.mxu0 0.0
  %3098 = vmatpush1.msra.mxu0 0.0
  %3099 = vmatprep.subr.mxu0 0.0
  %3100 = vmatpush1.msra.mxu0 0.0
  %3101 = vmatprep.subr.mxu0 0.0
  %3102 = vmatpush1.msra.mxu0 0.0
  %3103 = vmatprep.subr.mxu0 0.0
  %3104 = vmatpush1.msra.mxu0 0.0
  %3105 = vmatprep.mubr.f32.mxu0 0.0
  %3106 = vmatmul.mubr.f32.gmra.mrb[0].mxu0 %v3030
  %v3107 = vpop.f32.mrb[0].mxu0
  %v3108 = vadd.f32 0.0, %v3107
  %v3109 = vpop.f32.mrb[0].mxu0
  %3110 = vmatprep.mubr.f32.mxu0 0.0
  %3111 = vmatmul.mubr.f32.gmra.mrb[0].mxu0 %v3033
  %v3112 = vpop.f32.mrb[0].mxu0
  %v3113 = vadd.f32 0.0, %v3112
  %v3114 = vpop.f32.mrb[0].mxu0
  %3115 = vmatprep.mubr.f32.mxu0 0.0
  %3116 = vmatmul.mubr.f32.gmra.mrb[0].mxu0 %v3036
  %v3117 = vpop.f32.mrb[0].mxu0
  %v3118 = vadd.f32 0.0, %v3117
  %v3119 = vpop.f32.mrb[0].mxu0
  %3120 = vmatprep.mubr.f32.mxu0 0.0
  %3121 = vmatmul.mubr.f32.gmra.mrb[0].mxu0 %v3039
  %v3122 = vpop.f32.mrb[0].mxu0
  %v3123 = vadd.f32 0.0, %v3122
  %v3124 = vpop.f32.mrb[0].mxu0
  %3125 = vdwg.mxu0
  %v3126 = vadd.f32 %v2928, %v3108
  %v3127 = vadd.f32 %v2929, %v3113
  %v3128 = vadd.f32 %v2930, %v3118
  %v3129 = vadd.f32 %v2931, %v3123
  %v3130 = vld [vmem:[%s11] sm:$0xff]
  %v3131 = vld [vmem:[%s11 + $0x8] sm:$0xff]
  %v3132 = vld [vmem:[%s11 + $0x10] sm:$0xff]
  %v3133 = vld [vmem:[%s11 + $0x18] sm:$0xff]
  %3135 = vset.pattern.permute.xlu0 0
  %3136 = vperm.xlu0 %3135, %v3130
  %v3137 = vpop.permute.xlu0 %3136
  %3140 = vset.pattern.permute.xlu0 0
  %3141 = vperm.xlu0 %3140, %v3131
  %v3142 = vpop.permute.xlu0 %3141
  %3145 = vset.pattern.permute.xlu0 0
  %3146 = vperm.xlu0 %3145, %v3132
  %v3147 = vpop.permute.xlu0 %3146
  %3150 = vset.pattern.permute.xlu0 0
  %3151 = vperm.xlu0 %3150, %v3133
  %v3152 = vpop.permute.xlu0 %3151
  %v3154 = vadd.f32 %v3126, %v3137
  %v3155 = vadd.f32 %v3127, %v3142
  %v3156 = vadd.f32 %v3128, %v3147
  %v3157 = vadd.f32 %v3129, %v3152
  %vm3158 = vcmask 15360
  %3159 = vst.msk [vmem:[%s12] sm:$0xff] %vm3158, %v3154
  %3160 = vst.msk [vmem:[%s12 + $0x8] sm:$0xff] %vm3158, %v3155
  %3161 = vst.msk [vmem:[%s12 + $0x10] sm:$0xff] %vm3158, %v3156
  %3162 = vst.msk [vmem:[%s12 + $0x18] sm:$0xff] %vm3158, %v3157
  // Predicated region
  $region50: #{conv_encoder2.1} parent=0 // pred_check
    _
  $region51: #{conv_encoder2.1} parent=0 // pred_check_branch
    %3164 = sbr.rel (0) target = $region53
  $region52: #{conv_encoder2.1} parent=0 // pred_region
    _
  $region53: #{conv_encoder2.1} parent=0 // pred_fallthru
    _
  // Predicated region
  $region54: #{conv_encoder2.1} parent=0 // pred_check
    _
  $region55: #{conv_encoder2.1} parent=0 // pred_check_branch
    %3166 = sbr.rel (0) target = $region57
  $region56: #{conv_encoder2.1} parent=0 // pred_region
    _
  $region57: #{conv_encoder2.1} parent=0 // pred_fallthru
    _

</llo_original>
